<compile_context>
chip_gen: v7x
topology: tpu7x:2x2x1
jax: 0.10.0
libtpu: 0.0.40
codegen_flags: <defaults>
</compile_context>

<pallas_src>
import numpy as np
import jax
import jax.numpy as jnp
from jax.experimental import pallas as pl
from jax.experimental.pallas import tpu as pltpu


# ----------------------------------------------------------------------------
# Fused CAB3D Pallas kernel (lane-packed layout: last axis = W * channels)
# ----------------------------------------------------------------------------
def _make_cab3d_kernel(D, H, W, C, mid, Cr):
    assert W & (W - 1) == 0, "W must be a power of two (lane-roll pooling)"
    DH = D * H
    LC = W * C          # lanes for C-channel activations   (= 128 here)
    LM = W * mid        # lanes for mid-channel activations
    LR = W * Cr         # lanes for C//r-channel activations

    def merged_dot(slab_ref, w, taps):
        """One MXU matmul with all `taps` merged into the contraction.

        slab_ref : VMEM ref (D + pd, H + ph, L_in) with zero halo on padded dims
        w        : (len(taps) * L_in, L_out) bf16, tap-major rows
        taps     : list of static (d_off, h_off) slab offsets
        The kw taps + 'same' zero padding along W live inside `w` (banded
        block-Toeplitz over the packed (w, cin) lane axis).
        Returns an f32 (D*H, L_out) result.
        """
        parts = [slab_ref[d0:d0 + D, h0:h0 + H, :].reshape(DH, -1)
                 for d0, h0 in taps]
        a = parts[0] if len(parts) == 1 else jnp.concatenate(parts, axis=-1)
        return jnp.dot(a.astype(jnp.bfloat16), w,
                       preferred_element_type=jnp.float32)

    def body_conv(slab_ref, w_ref):
        """3x3x3 'same' conv: kh merged into K (= 3*W*C), loop over kd only."""
        acc = merged_dot(slab_ref, w_ref[0], [(0, 0), (0, 1), (0, 2)])
        acc = acc + merged_dot(slab_ref, w_ref[1], [(1, 0), (1, 1), (1, 2)])
        acc = acc + merged_dot(slab_ref, w_ref[2], [(2, 0), (2, 1), (2, 2)])
        return acc                                           # (DH, LC) f32

    def pad_h(v):                    # zero halo rows along H (axis 1)
        z = jnp.zeros((v.shape[0], 1, v.shape[2]), v.dtype)
        return jnp.concatenate([z, v, z], axis=1)

    def pad_d(v):                    # zero halo planes along D (axis 0)
        z = jnp.zeros((1,) + v.shape[1:], v.dtype)
        return jnp.concatenate([z, v, z], axis=0)

    def kernel(x_ref, wb1_ref, wb2_ref, w1a_ref, w1b_ref, w2a_ref, w2b_ref,
               bn1s_ref, bn1h_ref, bn2s_ref, bn2h_ref, a_ref,
               o_ref,
               xpad, r1pad, rpad, t1pad, t2pad, t3pad):
        x = x_ref[0]                                         # (D, H, W*C) f32

        # Every padded slab is written whole with a single aligned store
        # (halo re-zeroed each step: required with ('parallel',) per-core
        # scratch on megacore parts).
        xpad[...] = pad_d(pad_h(x))

        # body: Conv3d(3x3x3) -> PReLU
        r1 = body_conv(xpad, wb1_ref)
        slope = a_ref[0]
        r1 = jnp.where(r1 >= 0.0, r1, slope * r1)
        r1pad[...] = pad_d(pad_h(r1.reshape(D, H, LC)))

        # body: Conv3d(3x3x3)  (this is `res`)
        r = body_conv(r1pad, wb2_ref)                        # (DH, LC) f32
        rpad[...] = pad_h(r.reshape(D, H, LC))

        # CA conv_du[0]: Conv3d(1,3,3) C->mid, BN(eval) + ReLU
        t1 = merged_dot(rpad, w1a_ref[...], [(0, 0), (0, 1), (0, 2)])
        t1 = jnp.maximum(t1 * bn1s_ref[...] + bn1h_ref[...], 0.0)
        t1pad[...] = pad_d(t1.reshape(D, H, LM).astype(jnp.bfloat16))

        # CA conv_du[0]: Conv3d(3,1,1) mid->C//r, then the outer ReLU
        t2 = merged_dot(t1pad, w1b_ref[...], [(0, 0), (1, 0), (2, 0)])
        t2 = jnp.maximum(t2, 0.0)
        t2pad[...] = pad_h(t2.reshape(D, H, LR))

        # CA conv_du[1]: Conv3d(1,3,3) C//r->mid, BN(eval) + ReLU
        t3 = merged_dot(t2pad, w2a_ref[...], [(0, 0), (0, 1), (0, 2)])
        t3 = jnp.maximum(t3 * bn2s_ref[...] + bn2h_ref[...], 0.0)
        t3pad[...] = pad_d(t3.reshape(D, H, LM).astype(jnp.bfloat16))

        # CA conv_du[1]: Conv3d(3,1,1) mid->C, Sigmoid, AdaptiveAvgPool3d(1)
        t4 = merged_dot(t3pad, w2b_ref[...], [(0, 0), (1, 0), (2, 0)])
        sg = jax.nn.sigmoid(t4)                              # (DH, LC) f32
        y = jnp.mean(sg, axis=0, keepdims=True)              # (1, LC): mean over D*H
        s = C                                                # circular roll tree over the
        while s < LC:                                        # W lane-blocks: per-channel
            y = y + pltpu.roll(y, shift=s, axis=1)           # sum, already lane-broadcast
            s *= 2
        y = y * (1.0 / float(W))                             # -> per-channel mean

        # channel attention + residual (lane-dense store):  out = res * y + x
        out = r * y + x.reshape(DH, LC)
        o_ref[...] = out[None, :, :]

    return kernel


def cab3d_pallas(x_packed, kp, D, H, W, C, mid, Cr):
    """x_packed: (N, D, H, W*C) f32  ->  (N, D*H, W*C) f32."""
    N = x_packed.shape[0]
    DH, LC, LM, LR = D * H, W * C, W * mid, W * Cr

    kernel = _make_cab3d_kernel(D, H, W, C, mid, Cr)

    def full3(w):
        return pl.BlockSpec(w.shape, lambda n: (0, 0, 0))

    def full2(w):
        return pl.BlockSpec(w.shape, lambda n: (0, 0))

    in_specs = [
        pl.BlockSpec((1, D, H, LC), lambda n: (n, 0, 0, 0)),
        full3(kp["wb1"]), full3(kp["wb2"]),
        full2(kp["w1a"]), full2(kp["w1b"]), full2(kp["w2a"]), full2(kp["w2b"]),
        full2(kp["bn1_scale"]), full2(kp["bn1_shift"]),
        full2(kp["bn2_scale"]), full2(kp["bn2_shift"]),
        pl.BlockSpec(memory_space=pltpu.MemorySpace.SMEM),        # PReLU slope
    ]

    scratch_shapes = [
        pltpu.VMEM((D + 2, H + 2, LC), jnp.float32),   # padded x (kh-offset reads -> f32)
        pltpu.VMEM((D + 2, H + 2, LC), jnp.float32),   # padded PReLU(conv1)
        pltpu.VMEM((D, H + 2, LC), jnp.float32),       # padded body output (res)
        pltpu.VMEM((D + 2, H, LM), jnp.bfloat16),      # padded BN+ReLU #1 (aligned reads)
        pltpu.VMEM((D, H + 2, LR), jnp.float32),       # padded ReLU (C//r)
        pltpu.VMEM((D + 2, H, LM), jnp.bfloat16),      # padded BN+ReLU #2 (aligned reads)
    ]

    return pl.pallas_call(
        kernel,
        grid=(N,),
        in_specs=in_specs,
        out_specs=pl.BlockSpec((1, DH, LC), lambda n: (n, 0, 0)),
        out_shape=jax.ShapeDtypeStruct((N, DH, LC), jnp.float32),
        scratch_shapes=scratch_shapes,
        compiler_params=pltpu.CompilerParams(
            dimension_semantics=("parallel",)),
    )(x_packed, kp["wb1"], kp["wb2"], kp["w1a"], kp["w1b"], kp["w2a"],
      kp["w2b"], kp["bn1_scale"], kp["bn1_shift"], kp["bn2_scale"],
      kp["bn2_shift"], kp["prelu_a"])


# ----------------------------------------------------------------------------
# Weight preparation: fold kw taps + W zero-padding into banded matrices
# ----------------------------------------------------------------------------
def _band_over_w(wt, W):
    """(KD, KH, KW, Cin, Cout) f32 -> (KD, KH, W*Cin, W*Cout).

    Folds the kw taps and the 'same' zero padding along W into a banded
    block-Toeplitz matrix acting on the lane-packed (w, cin) axis, so the
    conv over W becomes part of a plain matmul."""
    KD, KH, KW, Cin, Cout = wt.shape
    pad_w = (KW - 1) // 2
    sel = np.zeros((KW, W, W), np.float32)
    for kw in range(KW):
        for wo in range(W):
            wi = wo + kw - pad_w
            if 0 <= wi < W:
                sel[kw, wi, wo] = 1.0
    band = jnp.einsum("kio,dhkce->dhicoe", jnp.asarray(sel), wt)
    return band.reshape(KD, KH, W * Cin, W * Cout)


def prep_kernel_params(p, W):
    """Pre-pack all weights for the lane-packed kernel (done once, host side)."""
    def body_w(w):                 # (3,3,3,Cin,Cout) -> (3, 3*W*Cin, W*Cout) bf16
        b = _band_over_w(w, W)
        KD, KH, I, O = b.shape
        return b.reshape(KD, KH * I, O).astype(jnp.bfloat16)

    def flat_w(w):                 # (KD,KH,KW,...) with KD*KH == 3 -> (3*W*Cin, W*Cout)
        b = _band_over_w(w, W)
        KD, KH, I, O = b.shape
        return b.reshape(KD * KH * I, O).astype(jnp.bfloat16)

    def tile_bn(v):                # (1, mid) -> (1, W*mid); lane index = w*mid + c
        return jnp.tile(v, (1, W)).astype(jnp.float32)

    return {
        "wb1": body_w(p["w_body1"]), "wb2": body_w(p["w_body2"]),
        "w1a": flat_w(p["w_ca1a"]), "w1b": flat_w(p["w_ca1b"]),
        "w2a": flat_w(p["w_ca2a"]), "w2b": flat_w(p["w_ca2b"]),
        "bn1_scale": tile_bn(p["bn1_scale"]), "bn1_shift": tile_bn(p["bn1_shift"]),
        "bn2_scale": tile_bn(p["bn2_scale"]), "bn2_shift": tile_bn(p["bn2_shift"]),
        "prelu_a": p["prelu_a"],
    }


# ----------------------------------------------------------------------------
# CAB3D forward (Pallas path)
# ----------------------------------------------------------------------------
@jax.jit
def cab3d_forward(x_ncdhw, kp):
    N, C, D, H, W = x_ncdhw.shape
    mid = kp["bn1_scale"].shape[1] // W
    Cr = kp["w1b"].shape[1] // W
    x = jnp.transpose(x_ncdhw, (0, 2, 3, 4, 1)).astype(jnp.float32)   # -> NDHWC
    x = x.reshape(N, D, H, W * C)                                     # lane-packed
    out = cab3d_pallas(x, kp, D, H, W, C, mid, Cr)                    # (N, D*H, W*C)
    out = out.reshape(N, D, H, W, C)
    return jnp.transpose(out, (0, 4, 1, 2, 3))                        # back to NCDHW


# ----------------------------------------------------------------------------
# Parameters (deterministic, in-script)
# ----------------------------------------------------------------------------
def init_params(key, C, reduction):
    mid = C * C * 3 * 3 * 3 // (C * 3 * 3 + 3 * C)
    Cr = C // reduction
    keys = jax.random.split(key, 10)

    def w_init(k, cout, cin, kd, kh, kw):
        fan_in = cin * kd * kh * kw
        w = jax.random.normal(k, (cout, cin, kd, kh, kw), jnp.float32) / np.sqrt(fan_in)
        # PyTorch OIDHW -> kernel layout (kd, kh, kw, Cin, Cout)
        return jnp.transpose(w, (2, 3, 4, 1, 0))

    p = {}
    p["w_body1"] = w_init(keys[0], C, C, 3, 3, 3)
    p["w_body2"] = w_init(keys[1], C, C, 3, 3, 3)
    p["prelu_a"] = jnp.full((1,), 0.25, jnp.float32)     # nn.PReLU() default init

    p["w_ca1a"] = w_init(keys[2], mid, C, 1, 3, 3)
    p["w_ca1b"] = w_init(keys[3], Cr, mid, 3, 1, 1)
    p["w_ca2a"] = w_init(keys[4], mid, Cr, 1, 3, 3)
    p["w_ca2b"] = w_init(keys[5], C, mid, 3, 1, 1)

    eps = 1e-5
    for i, (kg, kb) in enumerate(((keys[6], keys[7]), (keys[8], keys[9])), start=1):
        gamma = 1.0 + 0.1 * jax.random.normal(kg, (mid,), jnp.float32)
        beta = 0.1 * jax.random.normal(kb, (mid,), jnp.float32)
        rmean = jnp.zeros((mid,), jnp.float32)
        rvar = jnp.ones((mid,), jnp.float32)
        scale = gamma / jnp.sqrt(rvar + eps)
        shift = beta - rmean * scale
        p[f"bn{i}_scale"] = scale.reshape(1, mid)
        p[f"bn{i}_shift"] = shift.reshape(1, mid)
    return p


# ----------------------------------------------------------------------------
# Pure-JAX reference (NCDHW, lax.conv) for validation
# ----------------------------------------------------------------------------
def ref_forward(x, p):
    def conv(x, w, pad):
        w_oidhw = jnp.transpose(w, (4, 3, 0, 1, 2))
        return jax.lax.conv_general_dilated(
            x, w_oidhw, window_strides=(1, 1, 1),
            padding=[(pad[0], pad[0]), (pad[1], pad[1]), (pad[2], pad[2])],
            dimension_numbers=("NCDHW", "OIDHW", "NCDHW"),
            precision=jax.lax.Precision.HIGHEST)

    def bcast(v):
        return v[0][None, :, None, None, None]

    a = p["prelu_a"][0]
    r = conv(x, p["w_body1"], (1, 1, 1))
    r = jnp.where(r >= 0.0, r, a * r)
    r = conv(r, p["w_body2"], (1, 1, 1))

    t = conv(r, p["w_ca1a"], (0, 1, 1))
    t = jnp.maximum(t * bcast(p["bn1_scale"]) + bcast(p["bn1_shift"]), 0.0)
    t = conv(t, p["w_ca1b"], (1, 0, 0))
    t = jnp.maximum(t, 0.0)
    t = conv(t, p["w_ca2a"], (0, 1, 1))
    t = jnp.maximum(t * bcast(p["bn2_scale"]) + bcast(p["bn2_shift"]), 0.0)
    t = conv(t, p["w_ca2b"], (1, 0, 0))
    y = jnp.mean(jax.nn.sigmoid(t), axis=(2, 3, 4), keepdims=True)
    return r * y + x


# ----------------------------------------------------------------------------
if __name__ == "__main__":
    N, C, D, H, W = 2, 16, 4, 8, 8
    reduction = 4                       # CAB3D(n_feat=16, reduction=4)

    key = jax.random.PRNGKey(0)
    key_x, key_p = jax.random.split(key)
    x = jax.random.normal(key_x, (N, C, D, H, W), jnp.float32)   # NCDHW like PyTorch
    params = init_params(key_p, C, reduction)
    kparams = prep_kernel_params(params, W)

    out = cab3d_forward(x, kparams)
    out = jax.block_until_ready(out)

    ref = ref_forward(x, params)
    np.testing.assert_allclose(np.asarray(out), np.asarray(ref), rtol=5e-2, atol=5e-2)

    print("KERNEL_OK")
</pallas_src>

<mosaic_0001>
module attributes {stable_mosaic.version = 11 : i64} {
  func.func @kernel(%arg0: i32, %arg1: memref<1x4x8x128xf32, #tpu.memory_space<vmem>>, %arg2: memref<3x384x128xbf16, #tpu.memory_space<vmem>>, %arg3: memref<3x384x128xbf16, #tpu.memory_space<vmem>>, %arg4: memref<384x288xbf16, #tpu.memory_space<vmem>>, %arg5: memref<864x32xbf16, #tpu.memory_space<vmem>>, %arg6: memref<96x288xbf16, #tpu.memory_space<vmem>>, %arg7: memref<864x128xbf16, #tpu.memory_space<vmem>>, %arg8: memref<1x288xf32, #tpu.memory_space<vmem>>, %arg9: memref<1x288xf32, #tpu.memory_space<vmem>>, %arg10: memref<1x288xf32, #tpu.memory_space<vmem>>, %arg11: memref<1x288xf32, #tpu.memory_space<vmem>>, %arg12: memref<1xf32, #tpu.memory_space<smem>>, %arg13: memref<1x32x128xf32, #tpu.memory_space<vmem>>, %arg14: memref<6x10x128xf32, #tpu.memory_space<vmem>>, %arg15: memref<6x10x128xf32, #tpu.memory_space<vmem>>, %arg16: memref<4x10x128xf32, #tpu.memory_space<vmem>>, %arg17: memref<6x8x288xbf16, #tpu.memory_space<vmem>>, %arg18: memref<4x10x32xf32, #tpu.memory_space<vmem>>, %arg19: memref<6x8x288xbf16, #tpu.memory_space<vmem>>) attributes {dimension_semantics = [#tpu.dimension_semantics<parallel>], iteration_bounds = array<i64: 2>, scalar_prefetch = 0 : i64, scratch_operands = 6 : i64, tpu.core_type = #tpu.core_type<tc>, window_params = [{transform_indices = @transform_0, window_bounds = array<i64: 1, 4, 8, 128>}, {pipeline_mode = #tpu.pipeline_mode<synchronous>, transform_indices = @transform_1, window_bounds = array<i64: 3, 384, 128>}, {pipeline_mode = #tpu.pipeline_mode<synchronous>, transform_indices = @transform_2, window_bounds = array<i64: 3, 384, 128>}, {pipeline_mode = #tpu.pipeline_mode<synchronous>, transform_indices = @transform_3, window_bounds = array<i64: 384, 288>}, {pipeline_mode = #tpu.pipeline_mode<synchronous>, transform_indices = @transform_4, window_bounds = array<i64: 864, 32>}, {pipeline_mode = #tpu.pipeline_mode<synchronous>, transform_indices = @transform_5, window_bounds = array<i64: 96, 288>}, {pipeline_mode = #tpu.pipeline_mode<synchronous>, transform_indices = @transform_6, window_bounds = array<i64: 864, 128>}, {pipeline_mode = #tpu.pipeline_mode<synchronous>, transform_indices = @transform_7, window_bounds = array<i64: 1, 288>}, {pipeline_mode = #tpu.pipeline_mode<synchronous>, transform_indices = @transform_8, window_bounds = array<i64: 1, 288>}, {pipeline_mode = #tpu.pipeline_mode<synchronous>, transform_indices = @transform_9, window_bounds = array<i64: 1, 288>}, {pipeline_mode = #tpu.pipeline_mode<synchronous>, transform_indices = @transform_10, window_bounds = array<i64: 1, 288>}, {transform_indices = @transform_11, window_bounds = array<i64: 1>}, {transform_indices = @transform_12, window_bounds = array<i64: 1, 32, 128>}]} {
    %c0 = arith.constant 0 : index
    %c0_0 = arith.constant 0 : index
    %c0_1 = arith.constant 0 : index
    %c0_2 = arith.constant 0 : index
    %0 = vector.load %arg1[%c0, %c0_0, %c0_1, %c0_2] : memref<1x4x8x128xf32, #tpu.memory_space<vmem>>, vector<1x4x8x128xf32>
    %1 = vector.shape_cast %0 : vector<1x4x8x128xf32> to vector<4x8x128xf32>
    %cst = arith.constant 0.000000e+00 : f32
    %2 = vector.broadcast %cst : f32 to vector<4x1x128xf32>
    %3 = tpu.concatenate %2, %1, %2 in 1 : vector<4x1x128xf32>, vector<4x8x128xf32>, vector<4x1x128xf32> -> vector<4x10x128xf32>
    %cst_3 = arith.constant 0.000000e+00 : f32
    %4 = vector.broadcast %cst_3 : f32 to vector<1x10x128xf32>
    %5 = tpu.concatenate %4, %3, %4 in 0 : vector<1x10x128xf32>, vector<4x10x128xf32>, vector<1x10x128xf32> -> vector<6x10x128xf32>
    %c0_4 = arith.constant 0 : index
    %c0_5 = arith.constant 0 : index
    %c0_6 = arith.constant 0 : index
    %6 = vector.load %arg14[%c0_4, %c0_5, %c0_6] : memref<6x10x128xf32, #tpu.memory_space<vmem>>, vector<6x10x128xf32>
    tpu.vector_store %arg14[%c0_4, %c0_5, %c0_6], %5 {strides = array<i32>} : memref<6x10x128xf32, #tpu.memory_space<vmem>>, vector<6x10x128xf32>,
    %c0_7 = arith.constant 0 : index
    %c0_8 = arith.constant 0 : index
    %c0_9 = arith.constant 0 : index
    %7 = vector.load %arg2[%c0_7, %c0_8, %c0_9] : memref<3x384x128xbf16, #tpu.memory_space<vmem>>, vector<1x384x128xbf16>
    %8 = vector.shape_cast %7 : vector<1x384x128xbf16> to vector<384x128xbf16>
    %c0_10 = arith.constant 0 : index
    %c0_11 = arith.constant 0 : index
    %c0_12 = arith.constant 0 : index
    %9 = vector.load %arg14[%c0_10, %c0_11, %c0_12] : memref<6x10x128xf32, #tpu.memory_space<vmem>>, vector<4x8x128xf32>
    %10 = vector.shape_cast %9 : vector<4x8x128xf32> to vector<32x128xf32>
    %c0_13 = arith.constant 0 : index
    %c1 = arith.constant 1 : index
    %c0_14 = arith.constant 0 : index
    %11 = vector.load %arg14[%c0_13, %c1, %c0_14] : memref<6x10x128xf32, #tpu.memory_space<vmem>>, vector<4x8x128xf32>
    %12 = vector.shape_cast %11 : vector<4x8x128xf32> to vector<32x128xf32>
    %c0_15 = arith.constant 0 : index
    %c2 = arith.constant 2 : index
    %c0_16 = arith.constant 0 : index
    %13 = vector.load %arg14[%c0_15, %c2, %c0_16] : memref<6x10x128xf32, #tpu.memory_space<vmem>>, vector<4x8x128xf32>
    %14 = vector.shape_cast %13 : vector<4x8x128xf32> to vector<32x128xf32>
    %15 = tpu.concatenate %10, %12, %14 in 1 : vector<32x128xf32>, vector<32x128xf32>, vector<32x128xf32> -> vector<32x384xf32>
    %16 = arith.truncf %15 : vector<32x384xf32> to vector<32x384xbf16>
    %cst_17 = arith.constant dense<0.000000e+00> : vector<32x128xf32>
    %17 = tpu.matmul %16, %8, %cst_17 {dimension_numbers = #tpu.dot_dimension_numbers<[1], [0], [0], [1], [0, 0, 1, 1], [], []>} : vector<32x384xbf16>, vector<384x128xbf16>, vector<32x128xf32> -> vector<32x128xf32>
    %c1_18 = arith.constant 1 : index
    %c0_19 = arith.constant 0 : index
    %c0_20 = arith.constant 0 : index
    %18 = vector.load %arg2[%c1_18, %c0_19, %c0_20] : memref<3x384x128xbf16, #tpu.memory_space<vmem>>, vector<1x384x128xbf16>
    %19 = vector.shape_cast %18 : vector<1x384x128xbf16> to vector<384x128xbf16>
    %c1_21 = arith.constant 1 : index
    %c0_22 = arith.constant 0 : index
    %c0_23 = arith.constant 0 : index
    %20 = vector.load %arg14[%c1_21, %c0_22, %c0_23] : memref<6x10x128xf32, #tpu.memory_space<vmem>>, vector<4x8x128xf32>
    %21 = vector.shape_cast %20 : vector<4x8x128xf32> to vector<32x128xf32>
    %c1_24 = arith.constant 1 : index
    %c1_25 = arith.constant 1 : index
    %c0_26 = arith.constant 0 : index
    %22 = vector.load %arg14[%c1_24, %c1_25, %c0_26] : memref<6x10x128xf32, #tpu.memory_space<vmem>>, vector<4x8x128xf32>
    %23 = vector.shape_cast %22 : vector<4x8x128xf32> to vector<32x128xf32>
    %c1_27 = arith.constant 1 : index
    %c2_28 = arith.constant 2 : index
    %c0_29 = arith.constant 0 : index
    %24 = vector.load %arg14[%c1_27, %c2_28, %c0_29] : memref<6x10x128xf32, #tpu.memory_space<vmem>>, vector<4x8x128xf32>
    %25 = vector.shape_cast %24 : vector<4x8x128xf32> to vector<32x128xf32>
    %26 = tpu.concatenate %21, %23, %25 in 1 : vector<32x128xf32>, vector<32x128xf32>, vector<32x128xf32> -> vector<32x384xf32>
    %27 = arith.truncf %26 : vector<32x384xf32> to vector<32x384xbf16>
    %cst_30 = arith.constant dense<0.000000e+00> : vector<32x128xf32>
    %28 = tpu.matmul %27, %19, %cst_30 {dimension_numbers = #tpu.dot_dimension_numbers<[1], [0], [0], [1], [0, 0, 1, 1], [], []>} : vector<32x384xbf16>, vector<384x128xbf16>, vector<32x128xf32> -> vector<32x128xf32>
    %29 = arith.addf %17, %28 : vector<32x128xf32>
    %c2_31 = arith.constant 2 : index
    %c0_32 = arith.constant 0 : index
    %c0_33 = arith.constant 0 : index
    %30 = vector.load %arg2[%c2_31, %c0_32, %c0_33] : memref<3x384x128xbf16, #tpu.memory_space<vmem>>, vector<1x384x128xbf16>
    %31 = vector.shape_cast %30 : vector<1x384x128xbf16> to vector<384x128xbf16>
    %c2_34 = arith.constant 2 : index
    %c0_35 = arith.constant 0 : index
    %c0_36 = arith.constant 0 : index
    %32 = vector.load %arg14[%c2_34, %c0_35, %c0_36] : memref<6x10x128xf32, #tpu.memory_space<vmem>>, vector<4x8x128xf32>
    %33 = vector.shape_cast %32 : vector<4x8x128xf32> to vector<32x128xf32>
    %c2_37 = arith.constant 2 : index
    %c1_38 = arith.constant 1 : index
    %c0_39 = arith.constant 0 : index
    %34 = vector.load %arg14[%c2_37, %c1_38, %c0_39] : memref<6x10x128xf32, #tpu.memory_space<vmem>>, vector<4x8x128xf32>
    %35 = vector.shape_cast %34 : vector<4x8x128xf32> to vector<32x128xf32>
    %c2_40 = arith.constant 2 : index
    %c2_41 = arith.constant 2 : index
    %c0_42 = arith.constant 0 : index
    %36 = vector.load %arg14[%c2_40, %c2_41, %c0_42] : memref<6x10x128xf32, #tpu.memory_space<vmem>>, vector<4x8x128xf32>
    %37 = vector.shape_cast %36 : vector<4x8x128xf32> to vector<32x128xf32>
    %38 = tpu.concatenate %33, %35, %37 in 1 : vector<32x128xf32>, vector<32x128xf32>, vector<32x128xf32> -> vector<32x384xf32>
    %39 = arith.truncf %38 : vector<32x384xf32> to vector<32x384xbf16>
    %cst_43 = arith.constant dense<0.000000e+00> : vector<32x128xf32>
    %40 = tpu.matmul %39, %31, %cst_43 {dimension_numbers = #tpu.dot_dimension_numbers<[1], [0], [0], [1], [0, 0, 1, 1], [], []>} : vector<32x384xbf16>, vector<384x128xbf16>, vector<32x128xf32> -> vector<32x128xf32>
    %41 = arith.addf %29, %40 : vector<32x128xf32>
    %c0_44 = arith.constant 0 : index
    %42 = memref.load %arg12[%c0_44] : memref<1xf32, #tpu.memory_space<smem>>
    %cst_45 = arith.constant 0.000000e+00 : f32
    %43 = vector.broadcast %cst_45 : f32 to vector<32x128xf32>
    %44 = arith.cmpf oge, %41, %43 : vector<32x128xf32>
    %45 = vector.broadcast %42 : f32 to vector<32x128xf32>
    %46 = arith.mulf %45, %41 : vector<32x128xf32>
    %47 = arith.select %44, %41, %46 : vector<32x128xi1>, vector<32x128xf32>
    %48 = vector.shape_cast %47 : vector<32x128xf32> to vector<4x8x128xf32>
    %cst_46 = arith.constant 0.000000e+00 : f32
    %49 = vector.broadcast %cst_46 : f32 to vector<4x1x128xf32>
    %50 = tpu.concatenate %49, %48, %49 in 1 : vector<4x1x128xf32>, vector<4x8x128xf32>, vector<4x1x128xf32> -> vector<4x10x128xf32>
    %cst_47 = arith.constant 0.000000e+00 : f32
    %51 = vector.broadcast %cst_47 : f32 to vector<1x10x128xf32>
    %52 = tpu.concatenate %51, %50, %51 in 0 : vector<1x10x128xf32>, vector<4x10x128xf32>, vector<1x10x128xf32> -> vector<6x10x128xf32>
    %c0_48 = arith.constant 0 : index
    %c0_49 = arith.constant 0 : index
    %c0_50 = arith.constant 0 : index
    %53 = vector.load %arg15[%c0_48, %c0_49, %c0_50] : memref<6x10x128xf32, #tpu.memory_space<vmem>>, vector<6x10x128xf32>
    tpu.vector_store %arg15[%c0_48, %c0_49, %c0_50], %52 {strides = array<i32>} : memref<6x10x128xf32, #tpu.memory_space<vmem>>, vector<6x10x128xf32>,
    %c0_51 = arith.constant 0 : index
    %c0_52 = arith.constant 0 : index
    %c0_53 = arith.constant 0 : index
    %54 = vector.load %arg3[%c0_51, %c0_52, %c0_53] : memref<3x384x128xbf16, #tpu.memory_space<vmem>>, vector<1x384x128xbf16>
    %55 = vector.shape_cast %54 : vector<1x384x128xbf16> to vector<384x128xbf16>
    %c0_54 = arith.constant 0 : index
    %c0_55 = arith.constant 0 : index
    %c0_56 = arith.constant 0 : index
    %56 = vector.load %arg15[%c0_54, %c0_55, %c0_56] : memref<6x10x128xf32, #tpu.memory_space<vmem>>, vector<4x8x128xf32>
    %57 = vector.shape_cast %56 : vector<4x8x128xf32> to vector<32x128xf32>
    %c0_57 = arith.constant 0 : index
    %c1_58 = arith.constant 1 : index
    %c0_59 = arith.constant 0 : index
    %58 = vector.load %arg15[%c0_57, %c1_58, %c0_59] : memref<6x10x128xf32, #tpu.memory_space<vmem>>, vector<4x8x128xf32>
    %59 = vector.shape_cast %58 : vector<4x8x128xf32> to vector<32x128xf32>
    %c0_60 = arith.constant 0 : index
    %c2_61 = arith.constant 2 : index
    %c0_62 = arith.constant 0 : index
    %60 = vector.load %arg15[%c0_60, %c2_61, %c0_62] : memref<6x10x128xf32, #tpu.memory_space<vmem>>, vector<4x8x128xf32>
    %61 = vector.shape_cast %60 : vector<4x8x128xf32> to vector<32x128xf32>
    %62 = tpu.concatenate %57, %59, %61 in 1 : vector<32x128xf32>, vector<32x128xf32>, vector<32x128xf32> -> vector<32x384xf32>
    %63 = arith.truncf %62 : vector<32x384xf32> to vector<32x384xbf16>
    %cst_63 = arith.constant dense<0.000000e+00> : vector<32x128xf32>
    %64 = tpu.matmul %63, %55, %cst_63 {dimension_numbers = #tpu.dot_dimension_numbers<[1], [0], [0], [1], [0, 0, 1, 1], [], []>} : vector<32x384xbf16>, vector<384x128xbf16>, vector<32x128xf32> -> vector<32x128xf32>
    %c1_64 = arith.constant 1 : index
    %c0_65 = arith.constant 0 : index
    %c0_66 = arith.constant 0 : index
    %65 = vector.load %arg3[%c1_64, %c0_65, %c0_66] : memref<3x384x128xbf16, #tpu.memory_space<vmem>>, vector<1x384x128xbf16>
    %66 = vector.shape_cast %65 : vector<1x384x128xbf16> to vector<384x128xbf16>
    %c1_67 = arith.constant 1 : index
    %c0_68 = arith.constant 0 : index
    %c0_69 = arith.constant 0 : index
    %67 = vector.load %arg15[%c1_67, %c0_68, %c0_69] : memref<6x10x128xf32, #tpu.memory_space<vmem>>, vector<4x8x128xf32>
    %68 = vector.shape_cast %67 : vector<4x8x128xf32> to vector<32x128xf32>
    %c1_70 = arith.constant 1 : index
    %c1_71 = arith.constant 1 : index
    %c0_72 = arith.constant 0 : index
    %69 = vector.load %arg15[%c1_70, %c1_71, %c0_72] : memref<6x10x128xf32, #tpu.memory_space<vmem>>, vector<4x8x128xf32>
    %70 = vector.shape_cast %69 : vector<4x8x128xf32> to vector<32x128xf32>
    %c1_73 = arith.constant 1 : index
    %c2_74 = arith.constant 2 : index
    %c0_75 = arith.constant 0 : index
    %71 = vector.load %arg15[%c1_73, %c2_74, %c0_75] : memref<6x10x128xf32, #tpu.memory_space<vmem>>, vector<4x8x128xf32>
    %72 = vector.shape_cast %71 : vector<4x8x128xf32> to vector<32x128xf32>
    %73 = tpu.concatenate %68, %70, %72 in 1 : vector<32x128xf32>, vector<32x128xf32>, vector<32x128xf32> -> vector<32x384xf32>
    %74 = arith.truncf %73 : vector<32x384xf32> to vector<32x384xbf16>
    %cst_76 = arith.constant dense<0.000000e+00> : vector<32x128xf32>
    %75 = tpu.matmul %74, %66, %cst_76 {dimension_numbers = #tpu.dot_dimension_numbers<[1], [0], [0], [1], [0, 0, 1, 1], [], []>} : vector<32x384xbf16>, vector<384x128xbf16>, vector<32x128xf32> -> vector<32x128xf32>
    %76 = arith.addf %64, %75 : vector<32x128xf32>
    %c2_77 = arith.constant 2 : index
    %c0_78 = arith.constant 0 : index
    %c0_79 = arith.constant 0 : index
    %77 = vector.load %arg3[%c2_77, %c0_78, %c0_79] : memref<3x384x128xbf16, #tpu.memory_space<vmem>>, vector<1x384x128xbf16>
    %78 = vector.shape_cast %77 : vector<1x384x128xbf16> to vector<384x128xbf16>
    %c2_80 = arith.constant 2 : index
    %c0_81 = arith.constant 0 : index
    %c0_82 = arith.constant 0 : index
    %79 = vector.load %arg15[%c2_80, %c0_81, %c0_82] : memref<6x10x128xf32, #tpu.memory_space<vmem>>, vector<4x8x128xf32>
    %80 = vector.shape_cast %79 : vector<4x8x128xf32> to vector<32x128xf32>
    %c2_83 = arith.constant 2 : index
    %c1_84 = arith.constant 1 : index
    %c0_85 = arith.constant 0 : index
    %81 = vector.load %arg15[%c2_83, %c1_84, %c0_85] : memref<6x10x128xf32, #tpu.memory_space<vmem>>, vector<4x8x128xf32>
    %82 = vector.shape_cast %81 : vector<4x8x128xf32> to vector<32x128xf32>
    %c2_86 = arith.constant 2 : index
    %c2_87 = arith.constant 2 : index
    %c0_88 = arith.constant 0 : index
    %83 = vector.load %arg15[%c2_86, %c2_87, %c0_88] : memref<6x10x128xf32, #tpu.memory_space<vmem>>, vector<4x8x128xf32>
    %84 = vector.shape_cast %83 : vector<4x8x128xf32> to vector<32x128xf32>
    %85 = tpu.concatenate %80, %82, %84 in 1 : vector<32x128xf32>, vector<32x128xf32>, vector<32x128xf32> -> vector<32x384xf32>
    %86 = arith.truncf %85 : vector<32x384xf32> to vector<32x384xbf16>
    %cst_89 = arith.constant dense<0.000000e+00> : vector<32x128xf32>
    %87 = tpu.matmul %86, %78, %cst_89 {dimension_numbers = #tpu.dot_dimension_numbers<[1], [0], [0], [1], [0, 0, 1, 1], [], []>} : vector<32x384xbf16>, vector<384x128xbf16>, vector<32x128xf32> -> vector<32x128xf32>
    %88 = arith.addf %76, %87 : vector<32x128xf32>
    %89 = vector.shape_cast %88 : vector<32x128xf32> to vector<4x8x128xf32>
    %cst_90 = arith.constant 0.000000e+00 : f32
    %90 = vector.broadcast %cst_90 : f32 to vector<4x1x128xf32>
    %91 = tpu.concatenate %90, %89, %90 in 1 : vector<4x1x128xf32>, vector<4x8x128xf32>, vector<4x1x128xf32> -> vector<4x10x128xf32>
    %c0_91 = arith.constant 0 : index
    %c0_92 = arith.constant 0 : index
    %c0_93 = arith.constant 0 : index
    %92 = vector.load %arg16[%c0_91, %c0_92, %c0_93] : memref<4x10x128xf32, #tpu.memory_space<vmem>>, vector<4x10x128xf32>
    tpu.vector_store %arg16[%c0_91, %c0_92, %c0_93], %91 {strides = array<i32>} : memref<4x10x128xf32, #tpu.memory_space<vmem>>, vector<4x10x128xf32>,
    %c0_94 = arith.constant 0 : index
    %c0_95 = arith.constant 0 : index
    %93 = vector.load %arg4[%c0_94, %c0_95] : memref<384x288xbf16, #tpu.memory_space<vmem>>, vector<384x288xbf16>
    %c0_96 = arith.constant 0 : index
    %c0_97 = arith.constant 0 : index
    %c0_98 = arith.constant 0 : index
    %94 = vector.load %arg16[%c0_96, %c0_97, %c0_98] : memref<4x10x128xf32, #tpu.memory_space<vmem>>, vector<4x8x128xf32>
    %95 = vector.shape_cast %94 : vector<4x8x128xf32> to vector<32x128xf32>
    %c0_99 = arith.constant 0 : index
    %c1_100 = arith.constant 1 : index
    %c0_101 = arith.constant 0 : index
    %96 = vector.load %arg16[%c0_99, %c1_100, %c0_101] : memref<4x10x128xf32, #tpu.memory_space<vmem>>, vector<4x8x128xf32>
    %97 = vector.shape_cast %96 : vector<4x8x128xf32> to vector<32x128xf32>
    %c0_102 = arith.constant 0 : index
    %c2_103 = arith.constant 2 : index
    %c0_104 = arith.constant 0 : index
    %98 = vector.load %arg16[%c0_102, %c2_103, %c0_104] : memref<4x10x128xf32, #tpu.memory_space<vmem>>, vector<4x8x128xf32>
    %99 = vector.shape_cast %98 : vector<4x8x128xf32> to vector<32x128xf32>
    %100 = tpu.concatenate %95, %97, %99 in 1 : vector<32x128xf32>, vector<32x128xf32>, vector<32x128xf32> -> vector<32x384xf32>
    %101 = arith.truncf %100 : vector<32x384xf32> to vector<32x384xbf16>
    %cst_105 = arith.constant dense<0.000000e+00> : vector<32x288xf32>
    %102 = tpu.matmul %101, %93, %cst_105 {dimension_numbers = #tpu.dot_dimension_numbers<[1], [0], [0], [1], [0, 0, 1, 1], [], []>} : vector<32x384xbf16>, vector<384x288xbf16>, vector<32x288xf32> -> vector<32x288xf32>
    %c0_106 = arith.constant 0 : index
    %c0_107 = arith.constant 0 : index
    %103 = vector.load %arg8[%c0_106, %c0_107] : memref<1x288xf32, #tpu.memory_space<vmem>>, vector<1x288xf32>
    %104 = vector.broadcast %103 : vector<1x288xf32> to vector<32x288xf32>
    %105 = arith.mulf %102, %104 : vector<32x288xf32>
    %c0_108 = arith.constant 0 : index
    %c0_109 = arith.constant 0 : index
    %106 = vector.load %arg9[%c0_108, %c0_109] : memref<1x288xf32, #tpu.memory_space<vmem>>, vector<1x288xf32>
    %107 = vector.broadcast %106 : vector<1x288xf32> to vector<32x288xf32>
    %108 = arith.addf %105, %107 : vector<32x288xf32>
    %cst_110 = arith.constant 0.000000e+00 : f32
    %109 = vector.broadcast %cst_110 : f32 to vector<32x288xf32>
    %110 = arith.maximumf %108, %109 : vector<32x288xf32>
    %111 = vector.shape_cast %110 : vector<32x288xf32> to vector<4x8x288xf32>
    %112 = arith.truncf %111 : vector<4x8x288xf32> to vector<4x8x288xbf16>
    %cst_111 = arith.constant 0.000000e+00 : bf16
    %113 = vector.broadcast %cst_111 : bf16 to vector<1x8x288xbf16>
    %114 = tpu.concatenate %113, %112, %113 in 0 : vector<1x8x288xbf16>, vector<4x8x288xbf16>, vector<1x8x288xbf16> -> vector<6x8x288xbf16>
    %c0_112 = arith.constant 0 : index
    %c0_113 = arith.constant 0 : index
    %c0_114 = arith.constant 0 : index
    %115 = vector.load %arg17[%c0_112, %c0_113, %c0_114] : memref<6x8x288xbf16, #tpu.memory_space<vmem>>, vector<6x8x288xbf16>
    tpu.vector_store %arg17[%c0_112, %c0_113, %c0_114], %114 {strides = array<i32>} : memref<6x8x288xbf16, #tpu.memory_space<vmem>>, vector<6x8x288xbf16>,
    %c0_115 = arith.constant 0 : index
    %c0_116 = arith.constant 0 : index
    %116 = vector.load %arg5[%c0_115, %c0_116] : memref<864x32xbf16, #tpu.memory_space<vmem>>, vector<864x32xbf16>
    %c0_117 = arith.constant 0 : index
    %c0_118 = arith.constant 0 : index
    %c0_119 = arith.constant 0 : index
    %117 = vector.load %arg17[%c0_117, %c0_118, %c0_119] : memref<6x8x288xbf16, #tpu.memory_space<vmem>>, vector<4x8x288xbf16>
    %118 = vector.shape_cast %117 : vector<4x8x288xbf16> to vector<32x288xbf16>
    %c1_120 = arith.constant 1 : index
    %c0_121 = arith.constant 0 : index
    %c0_122 = arith.constant 0 : index
    %119 = vector.load %arg17[%c1_120, %c0_121, %c0_122] : memref<6x8x288xbf16, #tpu.memory_space<vmem>>, vector<4x8x288xbf16>
    %120 = vector.shape_cast %119 : vector<4x8x288xbf16> to vector<32x288xbf16>
    %c2_123 = arith.constant 2 : index
    %c0_124 = arith.constant 0 : index
    %c0_125 = arith.constant 0 : index
    %121 = vector.load %arg17[%c2_123, %c0_124, %c0_125] : memref<6x8x288xbf16, #tpu.memory_space<vmem>>, vector<4x8x288xbf16>
    %122 = vector.shape_cast %121 : vector<4x8x288xbf16> to vector<32x288xbf16>
    %123 = tpu.concatenate %118, %120, %122 in 1 : vector<32x288xbf16>, vector<32x288xbf16>, vector<32x288xbf16> -> vector<32x864xbf16>
    %cst_126 = arith.constant dense<0.000000e+00> : vector<32x32xf32>
    %124 = tpu.matmul %123, %116, %cst_126 {dimension_numbers = #tpu.dot_dimension_numbers<[1], [0], [0], [1], [0, 0, 1, 1], [], []>} : vector<32x864xbf16>, vector<864x32xbf16>, vector<32x32xf32> -> vector<32x32xf32>
    %cst_127 = arith.constant 0.000000e+00 : f32
    %125 = vector.broadcast %cst_127 : f32 to vector<32x32xf32>
    %126 = arith.maximumf %124, %125 : vector<32x32xf32>
    %127 = vector.shape_cast %126 : vector<32x32xf32> to vector<4x8x32xf32>
    %cst_128 = arith.constant 0.000000e+00 : f32
    %128 = vector.broadcast %cst_128 : f32 to vector<4x1x32xf32>
    %129 = tpu.concatenate %128, %127, %128 in 1 : vector<4x1x32xf32>, vector<4x8x32xf32>, vector<4x1x32xf32> -> vector<4x10x32xf32>
    %c0_129 = arith.constant 0 : index
    %c0_130 = arith.constant 0 : index
    %c0_131 = arith.constant 0 : index
    %130 = vector.load %arg18[%c0_129, %c0_130, %c0_131] : memref<4x10x32xf32, #tpu.memory_space<vmem>>, vector<4x10x32xf32>
    tpu.vector_store %arg18[%c0_129, %c0_130, %c0_131], %129 {strides = array<i32>} : memref<4x10x32xf32, #tpu.memory_space<vmem>>, vector<4x10x32xf32>,
    %c0_132 = arith.constant 0 : index
    %c0_133 = arith.constant 0 : index
    %131 = vector.load %arg6[%c0_132, %c0_133] : memref<96x288xbf16, #tpu.memory_space<vmem>>, vector<96x288xbf16>
    %c0_134 = arith.constant 0 : index
    %c0_135 = arith.constant 0 : index
    %c0_136 = arith.constant 0 : index
    %132 = vector.load %arg18[%c0_134, %c0_135, %c0_136] : memref<4x10x32xf32, #tpu.memory_space<vmem>>, vector<4x8x32xf32>
    %133 = vector.shape_cast %132 : vector<4x8x32xf32> to vector<32x32xf32>
    %c0_137 = arith.constant 0 : index
    %c1_138 = arith.constant 1 : index
    %c0_139 = arith.constant 0 : index
    %134 = vector.load %arg18[%c0_137, %c1_138, %c0_139] : memref<4x10x32xf32, #tpu.memory_space<vmem>>, vector<4x8x32xf32>
    %135 = vector.shape_cast %134 : vector<4x8x32xf32> to vector<32x32xf32>
    %c0_140 = arith.constant 0 : index
    %c2_141 = arith.constant 2 : index
    %c0_142 = arith.constant 0 : index
    %136 = vector.load %arg18[%c0_140, %c2_141, %c0_142] : memref<4x10x32xf32, #tpu.memory_space<vmem>>, vector<4x8x32xf32>
    %137 = vector.shape_cast %136 : vector<4x8x32xf32> to vector<32x32xf32>
    %138 = tpu.concatenate %133, %135, %137 in 1 : vector<32x32xf32>, vector<32x32xf32>, vector<32x32xf32> -> vector<32x96xf32>
    %139 = arith.truncf %138 : vector<32x96xf32> to vector<32x96xbf16>
    %cst_143 = arith.constant dense<0.000000e+00> : vector<32x288xf32>
    %140 = tpu.matmul %139, %131, %cst_143 {dimension_numbers = #tpu.dot_dimension_numbers<[1], [0], [0], [1], [0, 0, 1, 1], [], []>} : vector<32x96xbf16>, vector<96x288xbf16>, vector<32x288xf32> -> vector<32x288xf32>
    %c0_144 = arith.constant 0 : index
    %c0_145 = arith.constant 0 : index
    %141 = vector.load %arg10[%c0_144, %c0_145] : memref<1x288xf32, #tpu.memory_space<vmem>>, vector<1x288xf32>
    %142 = vector.broadcast %141 : vector<1x288xf32> to vector<32x288xf32>
    %143 = arith.mulf %140, %142 : vector<32x288xf32>
    %c0_146 = arith.constant 0 : index
    %c0_147 = arith.constant 0 : index
    %144 = vector.load %arg11[%c0_146, %c0_147] : memref<1x288xf32, #tpu.memory_space<vmem>>, vector<1x288xf32>
    %145 = vector.broadcast %144 : vector<1x288xf32> to vector<32x288xf32>
    %146 = arith.addf %143, %145 : vector<32x288xf32>
    %cst_148 = arith.constant 0.000000e+00 : f32
    %147 = vector.broadcast %cst_148 : f32 to vector<32x288xf32>
    %148 = arith.maximumf %146, %147 : vector<32x288xf32>
    %149 = vector.shape_cast %148 : vector<32x288xf32> to vector<4x8x288xf32>
    %150 = arith.truncf %149 : vector<4x8x288xf32> to vector<4x8x288xbf16>
    %cst_149 = arith.constant 0.000000e+00 : bf16
    %151 = vector.broadcast %cst_149 : bf16 to vector<1x8x288xbf16>
    %152 = tpu.concatenate %151, %150, %151 in 0 : vector<1x8x288xbf16>, vector<4x8x288xbf16>, vector<1x8x288xbf16> -> vector<6x8x288xbf16>
    %c0_150 = arith.constant 0 : index
    %c0_151 = arith.constant 0 : index
    %c0_152 = arith.constant 0 : index
    %153 = vector.load %arg19[%c0_150, %c0_151, %c0_152] : memref<6x8x288xbf16, #tpu.memory_space<vmem>>, vector<6x8x288xbf16>
    tpu.vector_store %arg19[%c0_150, %c0_151, %c0_152], %152 {strides = array<i32>} : memref<6x8x288xbf16, #tpu.memory_space<vmem>>, vector<6x8x288xbf16>,
    %c0_153 = arith.constant 0 : index
    %c0_154 = arith.constant 0 : index
    %154 = vector.load %arg7[%c0_153, %c0_154] : memref<864x128xbf16, #tpu.memory_space<vmem>>, vector<864x128xbf16>
    %c0_155 = arith.constant 0 : index
    %c0_156 = arith.constant 0 : index
    %c0_157 = arith.constant 0 : index
    %155 = vector.load %arg19[%c0_155, %c0_156, %c0_157] : memref<6x8x288xbf16, #tpu.memory_space<vmem>>, vector<4x8x288xbf16>
    %156 = vector.shape_cast %155 : vector<4x8x288xbf16> to vector<32x288xbf16>
    %c1_158 = arith.constant 1 : index
    %c0_159 = arith.constant 0 : index
    %c0_160 = arith.constant 0 : index
    %157 = vector.load %arg19[%c1_158, %c0_159, %c0_160] : memref<6x8x288xbf16, #tpu.memory_space<vmem>>, vector<4x8x288xbf16>
    %158 = vector.shape_cast %157 : vector<4x8x288xbf16> to vector<32x288xbf16>
    %c2_161 = arith.constant 2 : index
    %c0_162 = arith.constant 0 : index
    %c0_163 = arith.constant 0 : index
    %159 = vector.load %arg19[%c2_161, %c0_162, %c0_163] : memref<6x8x288xbf16, #tpu.memory_space<vmem>>, vector<4x8x288xbf16>
    %160 = vector.shape_cast %159 : vector<4x8x288xbf16> to vector<32x288xbf16>
    %161 = tpu.concatenate %156, %158, %160 in 1 : vector<32x288xbf16>, vector<32x288xbf16>, vector<32x288xbf16> -> vector<32x864xbf16>
    %cst_164 = arith.constant dense<0.000000e+00> : vector<32x128xf32>
    %162 = tpu.matmul %161, %154, %cst_164 {dimension_numbers = #tpu.dot_dimension_numbers<[1], [0], [0], [1], [0, 0, 1, 1], [], []>} : vector<32x864xbf16>, vector<864x128xbf16>, vector<32x128xf32> -> vector<32x128xf32>
    %163 = arith.negf %162 : vector<32x128xf32>
    %164 = math.exp %163 : vector<32x128xf32>
    %cst_165 = arith.constant 1.000000e+00 : f32
    %165 = vector.broadcast %cst_165 : f32 to vector<32x128xf32>
    %166 = arith.addf %165, %164 : vector<32x128xf32>
    %167 = arith.divf %165, %166 : vector<32x128xf32>
    %cst_166 = arith.constant dense<0.000000e+00> : vector<128xf32>
    %168 = vector.multi_reduction <add>, %167, %cst_166 [0] : vector<32x128xf32> to vector<128xf32>
    %169 = vector.shape_cast %168 : vector<128xf32> to vector<1x128xf32>
    %cst_167 = arith.constant 3.200000e+01 : f32
    %170 = vector.broadcast %cst_167 : f32 to vector<1x128xf32>
    %171 = arith.divf %169, %170 : vector<1x128xf32>
    %c16_i32 = arith.constant 16 : i32
    %172 = tpu.dynamic_rotate %171 by %c16_i32 dim 1 : vector<1x128xf32>, i32 -> vector<1x128xf32>
    %173 = arith.addf %171, %172 : vector<1x128xf32>
    %c32_i32 = arith.constant 32 : i32
    %174 = tpu.dynamic_rotate %173 by %c32_i32 dim 1 : vector<1x128xf32>, i32 -> vector<1x128xf32>
    %175 = arith.addf %173, %174 : vector<1x128xf32>
    %c64_i32 = arith.constant 64 : i32
    %176 = tpu.dynamic_rotate %175 by %c64_i32 dim 1 : vector<1x128xf32>, i32 -> vector<1x128xf32>
    %177 = arith.addf %175, %176 : vector<1x128xf32>
    %cst_168 = arith.constant 1.250000e-01 : f32
    %178 = vector.broadcast %cst_168 : f32 to vector<1x128xf32>
    %179 = arith.mulf %177, %178 : vector<1x128xf32>
    %180 = vector.broadcast %179 : vector<1x128xf32> to vector<32x128xf32>
    %181 = arith.mulf %88, %180 : vector<32x128xf32>
    %182 = vector.shape_cast %1 : vector<4x8x128xf32> to vector<32x128xf32>
    %183 = arith.addf %181, %182 : vector<32x128xf32>
    %184 = vector.shape_cast %183 : vector<32x128xf32> to vector<1x32x128xf32>
    %c0_169 = arith.constant 0 : index
    %c0_170 = arith.constant 0 : index
    %c0_171 = arith.constant 0 : index
    %185 = vector.load %arg13[%c0_169, %c0_170, %c0_171] : memref<1x32x128xf32, #tpu.memory_space<vmem>>, vector<1x32x128xf32>
    tpu.vector_store %arg13[%c0_169, %c0_170, %c0_171], %184 {strides = array<i32>} : memref<1x32x128xf32, #tpu.memory_space<vmem>>, vector<1x32x128xf32>,
    return
  }
  func.func @transform_0(%arg0: i32) -> (i32, i32, i32, i32) {
    %c0_i32 = arith.constant 0 : i32
    %c0_i32_0 = arith.constant 0 : i32
    %c0_i32_1 = arith.constant 0 : i32
    %c0_i32_2 = arith.constant 0 : i32
    return %arg0, %c0_i32, %c0_i32_0, %c0_i32_1 : i32, i32, i32, i32
  }
  func.func @transform_1(%arg0: i32) -> (i32, i32, i32) {
    %c0_i32 = arith.constant 0 : i32
    %c0_i32_0 = arith.constant 0 : i32
    %c0_i32_1 = arith.constant 0 : i32
    %c0_i32_2 = arith.constant 0 : i32
    return %c0_i32, %c0_i32_0, %c0_i32_1 : i32, i32, i32
  }
  func.func @transform_2(%arg0: i32) -> (i32, i32, i32) {
    %c0_i32 = arith.constant 0 : i32
    %c0_i32_0 = arith.constant 0 : i32
    %c0_i32_1 = arith.constant 0 : i32
    %c0_i32_2 = arith.constant 0 : i32
    return %c0_i32, %c0_i32_0, %c0_i32_1 : i32, i32, i32
  }
  func.func @transform_3(%arg0: i32) -> (i32, i32) {
    %c0_i32 = arith.constant 0 : i32
    %c0_i32_0 = arith.constant 0 : i32
    %c0_i32_1 = arith.constant 0 : i32
    return %c0_i32, %c0_i32_0 : i32, i32
  }
  func.func @transform_4(%arg0: i32) -> (i32, i32) {
    %c0_i32 = arith.constant 0 : i32
    %c0_i32_0 = arith.constant 0 : i32
    %c0_i32_1 = arith.constant 0 : i32
    return %c0_i32, %c0_i32_0 : i32, i32
  }
  func.func @transform_5(%arg0: i32) -> (i32, i32) {
    %c0_i32 = arith.constant 0 : i32
    %c0_i32_0 = arith.constant 0 : i32
    %c0_i32_1 = arith.constant 0 : i32
    return %c0_i32, %c0_i32_0 : i32, i32
  }
  func.func @transform_6(%arg0: i32) -> (i32, i32) {
    %c0_i32 = arith.constant 0 : i32
    %c0_i32_0 = arith.constant 0 : i32
    %c0_i32_1 = arith.constant 0 : i32
    return %c0_i32, %c0_i32_0 : i32, i32
  }
  func.func @transform_7(%arg0: i32) -> (i32, i32) {
    %c0_i32 = arith.constant 0 : i32
    %c0_i32_0 = arith.constant 0 : i32
    %c0_i32_1 = arith.constant 0 : i32
    return %c0_i32, %c0_i32_0 : i32, i32
  }
  func.func @transform_8(%arg0: i32) -> (i32, i32) {
    %c0_i32 = arith.constant 0 : i32
    %c0_i32_0 = arith.constant 0 : i32
    %c0_i32_1 = arith.constant 0 : i32
    return %c0_i32, %c0_i32_0 : i32, i32
  }
  func.func @transform_9(%arg0: i32) -> (i32, i32) {
    %c0_i32 = arith.constant 0 : i32
    %c0_i32_0 = arith.constant 0 : i32
    %c0_i32_1 = arith.constant 0 : i32
    return %c0_i32, %c0_i32_0 : i32, i32
  }
  func.func @transform_10(%arg0: i32) -> (i32, i32) {
    %c0_i32 = arith.constant 0 : i32
    %c0_i32_0 = arith.constant 0 : i32
    %c0_i32_1 = arith.constant 0 : i32
    return %c0_i32, %c0_i32_0 : i32, i32
  }
  func.func @transform_11(%arg0: i32) -> i32 {
    %c0_i32 = arith.constant 0 : i32
    %c0_i32_0 = arith.constant 0 : i32
    return %c0_i32 : i32
  }
  func.func @transform_12(%arg0: i32) -> (i32, i32, i32) {
    %c0_i32 = arith.constant 0 : i32
    %c0_i32_0 = arith.constant 0 : i32
    %c0_i32_1 = arith.constant 0 : i32
    return %arg0, %c0_i32, %c0_i32_0 : i32, i32, i32
  }
}

</mosaic_0001>

<llo_original>
// kernel: cab3d_forward.1
$region0: #{cab3d_forward.1}
  #allocation0 [shape = 'u32[]', space=smem, size = 0x4, offset = 0x4, fixed_abs, tag = 'smem constant byte address 0x4 - core index']
  #allocation1 [shape = 'u32[144,128]{1,0:T(1,128)}', space=vmem, size = 0x12000, scoped, tag = 'internal scratch']
  #allocation2 [shape = 'f32[6,10,128]{2,1,0:T(8,128)}', space=vmem, size = 0xc000, scoped, tag = 'scratch operand']
  #allocation3 [shape = 'f32[6,10,128]{2,1,0:T(8,128)}', space=vmem, size = 0xc000, scoped, tag = 'scratch operand']
  #allocation4 [shape = 'f32[4,10,128]{2,1,0:T(8,128)}', space=vmem, size = 0x8000, scoped, tag = 'scratch operand']
  #allocation5 [shape = 'bf16[6,8,288]{2,1,0:T(8,128)(2,1)}', space=vmem, size = 0x9000, scoped, tag = 'scratch operand']
  #allocation6 [shape = 'f32[4,10,32]{2,1,0:T(8,128)}', space=vmem, size = 0x8000, scoped, tag = 'scratch operand']
  #allocation7 [shape = 'bf16[6,8,288]{2,1,0:T(8,128)(2,1)}', space=vmem, size = 0x9000, scoped, tag = 'scratch operand']
  #allocation8 [shape = 'f32[1]{0:T(128)S(6)}', space=smem, size = 0x200, scoped, tag = 'scoped memory for cab3d_forward.1']
  %s0 = inlined_call_operand.vmem [shape: f32[2,4,8,128], index: 0, kind: input, shape index: {}]
  %s1 = inlined_call_operand.vmem [shape: bf16[3,384,128], index: 1, kind: input, shape index: {}]
  %s2 = inlined_call_operand.vmem [shape: bf16[3,384,128], index: 2, kind: input, shape index: {}]
  %s3 = inlined_call_operand.vmem [shape: bf16[384,288], index: 3, kind: input, shape index: {}]
  %s4 = inlined_call_operand.vmem [shape: bf16[864,32], index: 4, kind: input, shape index: {}]
  %s5 = inlined_call_operand.hbm [shape: bf16[96,288], index: 5, kind: input, shape index: {}]
  %s6 = inlined_call_operand.vmem [shape: bf16[864,128], index: 6, kind: input, shape index: {}]
  %s7 = inlined_call_operand.vmem [shape: f32[1,288], index: 7, kind: input, shape index: {}]
  %s8 = inlined_call_operand.vmem [shape: f32[1,288], index: 8, kind: input, shape index: {}]
  %s9 = inlined_call_operand.hbm [shape: f32[1,288], index: 9, kind: input, shape index: {}]
  %s10 = inlined_call_operand.vmem [shape: f32[1,288], index: 10, kind: input, shape index: {}]
  %s11 = inlined_call_operand.<no memory space> [shape: f32[1], index: 11, kind: input, shape index: {}]
  %s12 = inlined_call_operand.vmem [shape: f32[2,32,128], index: 12, kind: output, shape index: {}]
  %s13 = sld [smem:[#allocation0]]
  $region89: #{cab3d_forward.1} parent=0
    _
  %s15 = ssub.s32 1, %s13
  %s16 = scalar_select 0, %s15, %s13
  %17 = sst [smem:[#allocation8]] %s11
  $region1: #{cab3d_forward.1} parent=0
    #allocation9 [shape = 'u8[73728]{0}', space=vmem, size = 0x12000, scoped, tag = 'input window, operand 5, single buffered']
    #allocation10 [shape = 's32[2]{0}', space=sflag, size = 0x8, scoped, tag = 'scoped memory for cab3d_forward.1']
    #allocation11 [shape = 'u8[1536]{0}', space=vmem, size = 0x800, scoped, tag = 'input window, operand 9, single buffered']
    #allocation12 [shape = 's32[1]{0}', space=sflag, size = 0x4, scoped, tag = 'scoped memory for cab3d_forward.1']
    %18 = vsyncpa [#allocation10], 0
    %19 = vsyncpa [#allocation12], 0
    loop: start=0, step=1, limit=4
    $region2: #{cab3d_forward.1} parent=1 // loop_pre_header
      _
    $region3: #{cab3d_forward.1} parent=1 // loop_header
      %s21 = sphi 0, %s25
      %p22 = scmp.ge.s32.totalorder %s21, 4
      %s31 = sphi 0, %s33
      %s34 = sphi 0, %s31
      %s35 = sphi 0, %s34
      %s51 = sphi 0, %s35
      %s55 = sphi 0, %s55
      %s57 = sphi 0, %s55
      %s58 = sphi 0, %s57
      %s72 = sphi 0, %s58
      %s76 = sphi 0, %s76
      %s78 = sphi 0, %s76
      %s79 = sphi 0, %s78
      %s93 = sphi 0, %s79
      %s97 = sphi 0, %s97
      %s99 = sphi 0, %s97
      %s100 = sphi 0, %s99
      %s114 = sphi 0, %s100
      %s118 = sphi 0, %s118
      %s120 = sphi 0, %s118
      %s121 = sphi 0, %s120
      %s135 = sphi 0, %s121
      %s139 = sphi 0, %s139
      %s141 = sphi 0, %s139
      %s142 = sphi 0, %s141
      %s156 = sphi 0, %s142
      %s160 = sphi 0, %s160
      %s162 = sphi 0, %s160
      %s163 = sphi 0, %s162
      %s177 = sphi 0, %s163
      %s181 = sphi 0, %s181
      %s183 = sphi 0, %s181
      %s184 = sphi 0, %s183
      %s198 = sphi 0, %s184
      %s202 = sphi 0, %s202
      %s204 = sphi 0, %s202
      %s205 = sphi 0, %s204
      %s219 = sphi 0, %s205
      %s223 = sphi 0, %s223
      %s225 = sphi 0, %s223
      %s226 = sphi 0, %s225
      %s240 = sphi 0, %s226
      %s244 = sphi 0, %s244
      %s246 = sphi 0, %s244
      %s247 = sphi 0, %s246
      %s261 = sphi 0, %s247
      %s265 = sphi 0, %s265
      %s267 = sphi 0, %s265
      %s268 = sphi 0, %s267
      %s282 = sphi 0, %s268
      %s288 = sphi 0, %s290
      %s291 = sphi 0, %s288
      %s292 = sphi 0, %s291
      %s308 = sphi 0, %s292
    $region4: #{cab3d_forward.1} parent=1 // loop_header_branch
      %24 = sbr.rel (%p22) target = $region8
    $region5: #{cab3d_forward.1} parent=1 // loop_body
      %s26 = ssub.s32 %s21, 1
      %s27 = ssub.s32 %s21, 2
      %s28 = sadd.s32 %s21, 1
      %s29 = ssub.s32 %s21, %s28
      %p30 = scmp.eq.s32.totalorder %s29, 0
      %s32 = sadd.s32 %s31, 1
      %s33 = scalar_select %p30, %s31, %s32
      %p36 = pneg %p30
      %p37 = scmp.eq.s32.totalorder %s21, 1
      %p38 = por %p36, %p37
      %p39 = scmp.ne.s32.totalorder %s31, %s34
      %p40 = scmp.eq.s32.totalorder %s21, 0
      %p41 = por %p39, %p40
      %p42 = scmp.ne.s32.totalorder %s31, %s34
      %p43 = scmp.eq.s32.totalorder %s26, 1
      %p44 = por %p42, %p43
      %p45 = scmp.ne.s32.totalorder %s34, %s35
      %p46 = scmp.eq.s32.totalorder %s26, 0
      %p47 = por %p45, %p46
      %p48 = scmp.ne.s32.totalorder %s34, %s35
      %p49 = scmp.eq.s32.totalorder %s27, 1
      %p50 = por %p48, %p49
      %p52 = scmp.ne.s32.totalorder %s35, %s51
      %p53 = scmp.eq.s32.totalorder %s27, 0
      %p54 = por %p52, %p53
      %s56 = sadd.s32 %s55, 1
      %p59 = scmp.eq.s32.totalorder %s21, 1
      %p60 = scmp.ne.s32.totalorder %s55, %s57
      %p61 = scmp.eq.s32.totalorder %s21, 0
      %p62 = por %p60, %p61
      %p63 = scmp.ne.s32.totalorder %s55, %s57
      %p64 = scmp.eq.s32.totalorder %s26, 1
      %p65 = por %p63, %p64
      %p66 = scmp.ne.s32.totalorder %s57, %s58
      %p67 = scmp.eq.s32.totalorder %s26, 0
      %p68 = por %p66, %p67
      %p69 = scmp.ne.s32.totalorder %s57, %s58
      %p70 = scmp.eq.s32.totalorder %s27, 1
      %p71 = por %p69, %p70
      %p73 = scmp.ne.s32.totalorder %s58, %s72
      %p74 = scmp.eq.s32.totalorder %s27, 0
      %p75 = por %p73, %p74
      %s77 = sadd.s32 %s76, 1
      %p80 = scmp.eq.s32.totalorder %s21, 1
      %p81 = scmp.ne.s32.totalorder %s76, %s78
      %p82 = scmp.eq.s32.totalorder %s21, 0
      %p83 = por %p81, %p82
      %p84 = scmp.ne.s32.totalorder %s76, %s78
      %p85 = scmp.eq.s32.totalorder %s26, 1
      %p86 = por %p84, %p85
      %p87 = scmp.ne.s32.totalorder %s78, %s79
      %p88 = scmp.eq.s32.totalorder %s26, 0
      %p89 = por %p87, %p88
      %p90 = scmp.ne.s32.totalorder %s78, %s79
      %p91 = scmp.eq.s32.totalorder %s27, 1
      %p92 = por %p90, %p91
      %p94 = scmp.ne.s32.totalorder %s79, %s93
      %p95 = scmp.eq.s32.totalorder %s27, 0
      %p96 = por %p94, %p95
      %s98 = sadd.s32 %s97, 1
      %p101 = scmp.eq.s32.totalorder %s21, 1
      %p102 = scmp.ne.s32.totalorder %s97, %s99
      %p103 = scmp.eq.s32.totalorder %s21, 0
      %p104 = por %p102, %p103
      %p105 = scmp.ne.s32.totalorder %s97, %s99
      %p106 = scmp.eq.s32.totalorder %s26, 1
      %p107 = por %p105, %p106
      %p108 = scmp.ne.s32.totalorder %s99, %s100
      %p109 = scmp.eq.s32.totalorder %s26, 0
      %p110 = por %p108, %p109
      %p111 = scmp.ne.s32.totalorder %s99, %s100
      %p112 = scmp.eq.s32.totalorder %s27, 1
      %p113 = por %p111, %p112
      %p115 = scmp.ne.s32.totalorder %s100, %s114
      %p116 = scmp.eq.s32.totalorder %s27, 0
      %p117 = por %p115, %p116
      %s119 = sadd.s32 %s118, 1
      %p122 = scmp.eq.s32.totalorder %s21, 1
      %p123 = scmp.ne.s32.totalorder %s118, %s120
      %p124 = scmp.eq.s32.totalorder %s21, 0
      %p125 = por %p123, %p124
      %p126 = scmp.ne.s32.totalorder %s118, %s120
      %p127 = scmp.eq.s32.totalorder %s26, 1
      %p128 = por %p126, %p127
      %p129 = scmp.ne.s32.totalorder %s120, %s121
      %p130 = scmp.eq.s32.totalorder %s26, 0
      %p131 = por %p129, %p130
      %p132 = scmp.ne.s32.totalorder %s120, %s121
      %p133 = scmp.eq.s32.totalorder %s27, 1
      %p134 = por %p132, %p133
      %p136 = scmp.ne.s32.totalorder %s121, %s135
      %p137 = scmp.eq.s32.totalorder %s27, 0
      %p138 = por %p136, %p137
      %s140 = sadd.s32 %s139, 1
      %p143 = scmp.eq.s32.totalorder %s21, 1
      %p144 = scmp.ne.s32.totalorder %s139, %s141
      %p145 = scmp.eq.s32.totalorder %s21, 0
      %p146 = por %p144, %p145
      %p147 = scmp.ne.s32.totalorder %s139, %s141
      %p148 = scmp.eq.s32.totalorder %s26, 1
      %p149 = por %p147, %p148
      %p150 = scmp.ne.s32.totalorder %s141, %s142
      %p151 = scmp.eq.s32.totalorder %s26, 0
      %p152 = por %p150, %p151
      %p153 = scmp.ne.s32.totalorder %s141, %s142
      %p154 = scmp.eq.s32.totalorder %s27, 1
      %p155 = por %p153, %p154
      %p157 = scmp.ne.s32.totalorder %s142, %s156
      %p158 = scmp.eq.s32.totalorder %s27, 0
      %p159 = por %p157, %p158
      %s161 = sadd.s32 %s160, 1
      %p164 = scmp.eq.s32.totalorder %s21, 1
      %p165 = scmp.ne.s32.totalorder %s160, %s162
      %p166 = scmp.eq.s32.totalorder %s21, 0
      %p167 = por %p165, %p166
      %p168 = scmp.ne.s32.totalorder %s160, %s162
      %p169 = scmp.eq.s32.totalorder %s26, 1
      %p170 = por %p168, %p169
      %p171 = scmp.ne.s32.totalorder %s162, %s163
      %p172 = scmp.eq.s32.totalorder %s26, 0
      %p173 = por %p171, %p172
      %p174 = scmp.ne.s32.totalorder %s162, %s163
      %p175 = scmp.eq.s32.totalorder %s27, 1
      %p176 = por %p174, %p175
      %p178 = scmp.ne.s32.totalorder %s163, %s177
      %p179 = scmp.eq.s32.totalorder %s27, 0
      %p180 = por %p178, %p179
      %s182 = sadd.s32 %s181, 1
      %p185 = scmp.eq.s32.totalorder %s21, 1
      %p186 = scmp.ne.s32.totalorder %s181, %s183
      %p187 = scmp.eq.s32.totalorder %s21, 0
      %p188 = por %p186, %p187
      %p189 = scmp.ne.s32.totalorder %s181, %s183
      %p190 = scmp.eq.s32.totalorder %s26, 1
      %p191 = por %p189, %p190
      %p192 = scmp.ne.s32.totalorder %s183, %s184
      %p193 = scmp.eq.s32.totalorder %s26, 0
      %p194 = por %p192, %p193
      %p195 = scmp.ne.s32.totalorder %s183, %s184
      %p196 = scmp.eq.s32.totalorder %s27, 1
      %p197 = por %p195, %p196
      %p199 = scmp.ne.s32.totalorder %s184, %s198
      %p200 = scmp.eq.s32.totalorder %s27, 0
      %p201 = por %p199, %p200
      %s203 = sadd.s32 %s202, 1
      %p206 = scmp.eq.s32.totalorder %s21, 1
      %p207 = scmp.ne.s32.totalorder %s202, %s204
      %p208 = scmp.eq.s32.totalorder %s21, 0
      %p209 = por %p207, %p208
      %p210 = scmp.ne.s32.totalorder %s202, %s204
      %p211 = scmp.eq.s32.totalorder %s26, 1
      %p212 = por %p210, %p211
      %p213 = scmp.ne.s32.totalorder %s204, %s205
      %p214 = scmp.eq.s32.totalorder %s26, 0
      %p215 = por %p213, %p214
      %p216 = scmp.ne.s32.totalorder %s204, %s205
      %p217 = scmp.eq.s32.totalorder %s27, 1
      %p218 = por %p216, %p217
      %p220 = scmp.ne.s32.totalorder %s205, %s219
      %p221 = scmp.eq.s32.totalorder %s27, 0
      %p222 = por %p220, %p221
      %s224 = sadd.s32 %s223, 1
      %p227 = scmp.eq.s32.totalorder %s21, 1
      %p228 = scmp.ne.s32.totalorder %s223, %s225
      %p229 = scmp.eq.s32.totalorder %s21, 0
      %p230 = por %p228, %p229
      %p231 = scmp.ne.s32.totalorder %s223, %s225
      %p232 = scmp.eq.s32.totalorder %s26, 1
      %p233 = por %p231, %p232
      %p234 = scmp.ne.s32.totalorder %s225, %s226
      %p235 = scmp.eq.s32.totalorder %s26, 0
      %p236 = por %p234, %p235
      %p237 = scmp.ne.s32.totalorder %s225, %s226
      %p238 = scmp.eq.s32.totalorder %s27, 1
      %p239 = por %p237, %p238
      %p241 = scmp.ne.s32.totalorder %s226, %s240
      %p242 = scmp.eq.s32.totalorder %s27, 0
      %p243 = por %p241, %p242
      %s245 = sadd.s32 %s244, 1
      %p248 = scmp.eq.s32.totalorder %s21, 1
      %p249 = scmp.ne.s32.totalorder %s244, %s246
      %p250 = scmp.eq.s32.totalorder %s21, 0
      %p251 = por %p249, %p250
      %p252 = scmp.ne.s32.totalorder %s244, %s246
      %p253 = scmp.eq.s32.totalorder %s26, 1
      %p254 = por %p252, %p253
      %p255 = scmp.ne.s32.totalorder %s246, %s247
      %p256 = scmp.eq.s32.totalorder %s26, 0
      %p257 = por %p255, %p256
      %p258 = scmp.ne.s32.totalorder %s246, %s247
      %p259 = scmp.eq.s32.totalorder %s27, 1
      %p260 = por %p258, %p259
      %p262 = scmp.ne.s32.totalorder %s247, %s261
      %p263 = scmp.eq.s32.totalorder %s27, 0
      %p264 = por %p262, %p263
      %s266 = sadd.s32 %s265, 1
      %p269 = scmp.eq.s32.totalorder %s21, 1
      %p270 = scmp.ne.s32.totalorder %s265, %s267
      %p271 = scmp.eq.s32.totalorder %s21, 0
      %p272 = por %p270, %p271
      %p273 = scmp.ne.s32.totalorder %s265, %s267
      %p274 = scmp.eq.s32.totalorder %s26, 1
      %p275 = por %p273, %p274
      %p276 = scmp.ne.s32.totalorder %s267, %s268
      %p277 = scmp.eq.s32.totalorder %s26, 0
      %p278 = por %p276, %p277
      %p279 = scmp.ne.s32.totalorder %s267, %s268
      %p280 = scmp.eq.s32.totalorder %s27, 1
      %p281 = por %p279, %p280
      %p283 = scmp.ne.s32.totalorder %s268, %s282
      %p284 = scmp.eq.s32.totalorder %s27, 0
      %p285 = por %p283, %p284
      %s286 = ssub.s32 %s21, %s28
      %p287 = scmp.eq.s32.totalorder %s286, 0
      %s289 = sadd.s32 %s288, 1
      %s290 = scalar_select %p287, %s288, %s289
      %p293 = pneg %p287
      %p294 = scmp.eq.s32.totalorder %s21, 1
      %p295 = por %p293, %p294
      %p296 = scmp.ne.s32.totalorder %s288, %s291
      %p297 = scmp.eq.s32.totalorder %s21, 0
      %p298 = por %p296, %p297
      %p299 = scmp.ne.s32.totalorder %s288, %s291
      %p300 = scmp.eq.s32.totalorder %s26, 1
      %p301 = por %p299, %p300
      %p302 = scmp.ne.s32.totalorder %s291, %s292
      %p303 = scmp.eq.s32.totalorder %s26, 0
      %p304 = por %p302, %p303
      %p305 = scmp.ne.s32.totalorder %s291, %s292
      %p306 = scmp.eq.s32.totalorder %s27, 1
      %p307 = por %p305, %p306
      %p309 = scmp.ne.s32.totalorder %s292, %s308
      %p310 = scmp.eq.s32.totalorder %s27, 0
      %p311 = por %p309, %p310
      %p312 = scmp.le.s32.totalorder 1, %s21
      %p313 = scmp.lt.s32.totalorder %s21, 3
      %p314 = pnand %p312, %p313
      %p315 = pneg %p314
      // Predicated region
      $region9: #{cab3d_forward.1} parent=5 // pred_check
        _
      $region10: #{cab3d_forward.1} parent=5 // pred_check_branch
        %317 = sbr.rel (%p314) target = $region12
      $region11: #{cab3d_forward.1} parent=5 // pred_region
        %s318 = ssub.s32 %s21, 1
        // Predicated region
        $region13: #{cab3d_forward.1} parent=11 // pred_check
          %p319 = pneg %p68
        $region14: #{cab3d_forward.1} parent=11 // pred_check_branch
          %321 = sbr.rel (%p319) target = $region16
        $region15: #{cab3d_forward.1} parent=11 // pred_region
          _
        $region16: #{cab3d_forward.1} parent=11 // pred_fallthru
          _
        // Predicated region
        $region17: #{cab3d_forward.1} parent=11 // pred_check
          %p322 = pneg %p89
        $region18: #{cab3d_forward.1} parent=11 // pred_check_branch
          %324 = sbr.rel (%p322) target = $region20
        $region19: #{cab3d_forward.1} parent=11 // pred_region
          _
        $region20: #{cab3d_forward.1} parent=11 // pred_fallthru
          _
        // Predicated region
        $region21: #{cab3d_forward.1} parent=11 // pred_check
          %p325 = pneg %p110
        $region22: #{cab3d_forward.1} parent=11 // pred_check_branch
          %327 = sbr.rel (%p325) target = $region24
        $region23: #{cab3d_forward.1} parent=11 // pred_region
          _
        $region24: #{cab3d_forward.1} parent=11 // pred_fallthru
          _
        // Predicated region
        $region25: #{cab3d_forward.1} parent=11 // pred_check
          %p328 = pneg %p131
        $region26: #{cab3d_forward.1} parent=11 // pred_check_branch
          %330 = sbr.rel (%p328) target = $region28
        $region27: #{cab3d_forward.1} parent=11 // pred_region
          _
        $region28: #{cab3d_forward.1} parent=11 // pred_fallthru
          _
        // Predicated region
        $region29: #{cab3d_forward.1} parent=11 // pred_check
          %p331 = pneg %p152
        $region30: #{cab3d_forward.1} parent=11 // pred_check_branch
          %333 = sbr.rel (%p331) target = $region32
        $region31: #{cab3d_forward.1} parent=11 // pred_region
          %s335 = ssub.s32 2304, 2304
          %336 = vsyncadd [#allocation10], %s335
          %s337 = sshll.u32 [#allocation9], 4
          %s338 = int_to_ptr.vmem [resolvable:$true] %s337
          %343 = dma.hbm_to_vmem [thread:$0]  %s5, 2304, %s338, [#allocation10], 192, 192, 12
        $region32: #{cab3d_forward.1} parent=11 // pred_fallthru
          _
        // Predicated region
        $region33: #{cab3d_forward.1} parent=11 // pred_check
          %p344 = pneg %p173
        $region34: #{cab3d_forward.1} parent=11 // pred_check_branch
          %346 = sbr.rel (%p344) target = $region36
        $region35: #{cab3d_forward.1} parent=11 // pred_region
          _
        $region36: #{cab3d_forward.1} parent=11 // pred_fallthru
          _
        // Predicated region
        $region37: #{cab3d_forward.1} parent=11 // pred_check
          %p347 = pneg %p194
        $region38: #{cab3d_forward.1} parent=11 // pred_check_branch
          %349 = sbr.rel (%p347) target = $region40
        $region39: #{cab3d_forward.1} parent=11 // pred_region
          _
        $region40: #{cab3d_forward.1} parent=11 // pred_fallthru
          _
        // Predicated region
        $region41: #{cab3d_forward.1} parent=11 // pred_check
          %p350 = pneg %p215
        $region42: #{cab3d_forward.1} parent=11 // pred_check_branch
          %352 = sbr.rel (%p350) target = $region44
        $region43: #{cab3d_forward.1} parent=11 // pred_region
          _
        $region44: #{cab3d_forward.1} parent=11 // pred_fallthru
          _
        // Predicated region
        $region45: #{cab3d_forward.1} parent=11 // pred_check
          %p353 = pneg %p236
        $region46: #{cab3d_forward.1} parent=11 // pred_check_branch
          %355 = sbr.rel (%p353) target = $region48
        $region47: #{cab3d_forward.1} parent=11 // pred_region
          %s357 = ssub.s32 48, 48
          %358 = vsyncadd [#allocation12], %s357
          %s360 = sshll.u32 [#allocation11], 4
          %s361 = int_to_ptr.vmem [resolvable:$true] %s360
          %363 = dma.hbm_to_vmem [thread:$0]  %s9, 48, %s361, [#allocation12]
        $region48: #{cab3d_forward.1} parent=11 // pred_fallthru
          _
        // Predicated region
        $region49: #{cab3d_forward.1} parent=11 // pred_check
          %p364 = pneg %p257
        $region50: #{cab3d_forward.1} parent=11 // pred_check_branch
          %366 = sbr.rel (%p364) target = $region52
        $region51: #{cab3d_forward.1} parent=11 // pred_region
          _
        $region52: #{cab3d_forward.1} parent=11 // pred_fallthru
          _
        // Predicated region
        $region53: #{cab3d_forward.1} parent=11 // pred_check
          %p367 = pneg %p278
        $region54: #{cab3d_forward.1} parent=11 // pred_check_branch
          %369 = sbr.rel (%p367) target = $region56
        $region55: #{cab3d_forward.1} parent=11 // pred_region
          _
        $region56: #{cab3d_forward.1} parent=11 // pred_fallthru
          _
      $region12: #{cab3d_forward.1} parent=5 // pred_fallthru
        _
      %p370 = scmp.lt.s32.totalorder %s21, 2
      // Predicated region
      $region57: #{cab3d_forward.1} parent=5 // pred_check
        %p371 = pneg %p370
      $region58: #{cab3d_forward.1} parent=5 // pred_check_branch
        %373 = sbr.rel (%p371) target = $region60
      $region59: #{cab3d_forward.1} parent=5 // pred_region
        // Predicated region
        $region61: #{cab3d_forward.1} parent=59 // pred_check
          %p374 = pneg %p41
        $region62: #{cab3d_forward.1} parent=59 // pred_check_branch
          %376 = sbr.rel (%p374) target = $region64
        $region63: #{cab3d_forward.1} parent=59 // pred_region
          %p377 = scmp.lt.s32.totalorder %s21, 1
          %s378 = scalar_select %p377, %s21, 1
          %s379 = smul.addr %s378, 4
          %s380 = smul.addr %s379, 8
          %s381 = scalar_lea.vmem %s0, %s380
        $region64: #{cab3d_forward.1} parent=59 // pred_fallthru
          _
      $region60: #{cab3d_forward.1} parent=5 // pred_fallthru
        _
      %p382 = scmp.le.s32.totalorder 1, %s21
      %p383 = scmp.lt.s32.totalorder %s21, 3
      %p384 = pnand %p382, %p383
      %p385 = pneg %p384
      // Predicated region
      $region65: #{cab3d_forward.1} parent=5 // pred_check
        _
      $region66: #{cab3d_forward.1} parent=5 // pred_check_branch
        %387 = sbr.rel (%p384) target = $region68
      $region67: #{cab3d_forward.1} parent=5 // pred_region
        %s388 = ssub.s32 %s21, 1
        // Predicated region
        $region69: #{cab3d_forward.1} parent=67 // pred_check
          %p389 = pneg %p152
        $region70: #{cab3d_forward.1} parent=67 // pred_check_branch
          %391 = sbr.rel (%p389) target = $region72
        $region71: #{cab3d_forward.1} parent=67 // pred_region
          %392 = dma.done [#allocation10], 2304
        $region72: #{cab3d_forward.1} parent=67 // pred_fallthru
          _
        // Predicated region
        $region73: #{cab3d_forward.1} parent=67 // pred_check
          %p393 = pneg %p236
        $region74: #{cab3d_forward.1} parent=67 // pred_check_branch
          %395 = sbr.rel (%p393) target = $region76
        $region75: #{cab3d_forward.1} parent=67 // pred_region
          %396 = dma.done [#allocation12], 48
        $region76: #{cab3d_forward.1} parent=67 // pred_fallthru
          _
        %p397 = scmp.lt.s32.totalorder %s26, 1
        %s398 = scalar_select %p397, %s26, 1
        %s399 = smul.addr %s398, 4
        %s400 = smul.addr %s399, 8
        %s401 = scalar_lea.vmem %s0, %s400
        %p402 = pneg %p47
        %p403 = pneg %p44
        %p404 = pneg %p68
        %p405 = pneg %p65
        %p406 = pneg %p89
        %p407 = pneg %p86
        %p408 = pneg %p110
        %p409 = pneg %p107
        %p410 = pneg %p131
        %p411 = pneg %p128
        %p412 = pneg %p152
        %p413 = pneg %p149
        %p414 = pneg %p173
        %p415 = pneg %p170
        %p416 = pneg %p194
        %p417 = pneg %p191
        %p418 = pneg %p215
        %p419 = pneg %p212
        %p420 = pneg %p236
        %p421 = pneg %p233
        %p422 = pneg %p257
        %p423 = pneg %p254
        %p424 = pneg %p278
        %p425 = pneg %p275
        %p426 = pneg %p304
        %p427 = pneg %p301
        %p428 = scmp.lt.s32.totalorder %s26, 1
        %s429 = scalar_select %p428, %s26, 1
        %s430 = smul.addr %s429, 4
        %s431 = smul.addr %s430, 8
        %s432 = scalar_lea.vmem %s12, %s431
        %p433 = scmp.lt.s32.totalorder %s26, 1
        %s434 = scalar_select %p433, %s26, 1
        %s435 = smul.addr %s434, 4
        %s436 = smul.addr %s435, 8
        %s437 = scalar_lea.vmem %s0, %s436
        %p438 = scmp.lt.s32.totalorder %s26, 1
        %s439 = scalar_select %p438, %s26, 1
        %s440 = smul.addr %s439, 4
        %s441 = smul.addr %s440, 8
        %s442 = scalar_lea.vmem %s12, %s441
        %v444 = vld [vmem:[%s437] sm:$0xff]
        %v445 = vld [vmem:[%s437 + $0x8] sm:$0xff]
        %v446 = vld [vmem:[%s437 + $0x10] sm:$0xff]
        %v447 = vld [vmem:[%s437 + $0x18] sm:$0xff]
        %v452 = vrot.slane %v444, 7
        %v453 = vrot.slane %v445, 7
        %v454 = vrot.slane %v446, 7
        %v455 = vrot.slane %v447, 7
        %vm460 = vcmask 1040384
        %v461 = vsel %vm460, 0.0, %v452
        %v462 = vsel %vm460, 0.0, %v453
        %v463 = vsel %vm460, 0.0, %v454
        %v464 = vsel %vm460, 0.0, %v455
        %v465 = vsel %vm460, %v452, 0.0
        %v466 = vsel %vm460, %v453, 0.0
        %v467 = vsel %vm460, %v454, 0.0
        %v468 = vsel %vm460, %v455, 0.0
        %469 = vst [vmem:[#allocation2] sm:$0xff] 0.0
        %470 = vst [vmem:[#allocation2 + $0x8] sm:$0x3] 0.0
        %471 = vst [vmem:[#allocation2 + $0x10] sm:$0xff] %v461
        %472 = vst [vmem:[#allocation2 + $0x18] sm:$0x3] %v465
        %473 = vst [vmem:[#allocation2 + $0x20] sm:$0xff] %v462
        %474 = vst [vmem:[#allocation2 + $0x28] sm:$0x3] %v466
        %475 = vst [vmem:[#allocation2 + $0x30] sm:$0xff] %v463
        %476 = vst [vmem:[#allocation2 + $0x38] sm:$0x3] %v467
        %477 = vst [vmem:[#allocation2 + $0x40] sm:$0xff] %v464
        %478 = vst [vmem:[#allocation2 + $0x48] sm:$0x3] %v468
        %479 = vst [vmem:[#allocation2 + $0x50] sm:$0xff] 0.0
        %480 = vst [vmem:[#allocation2 + $0x58] sm:$0x3] 0.0
        %v481 = vld [vmem:[%s1] sm:$0xf]
        %v482 = vld [vmem:[%s1 + $0x4] sm:$0xf]
        %v483 = vld [vmem:[%s1 + $0x8] sm:$0xf]
        %v484 = vld [vmem:[%s1 + $0xc] sm:$0xf]
        %v485 = vld [vmem:[%s1 + $0x10] sm:$0xf]
        %v486 = vld [vmem:[%s1 + $0x14] sm:$0xf]
        %v487 = vld [vmem:[%s1 + $0x18] sm:$0xf]
        %v488 = vld [vmem:[%s1 + $0x1c] sm:$0xf]
        %v489 = vld [vmem:[%s1 + $0x20] sm:$0xf]
        %v490 = vld [vmem:[%s1 + $0x24] sm:$0xf]
        %v491 = vld [vmem:[%s1 + $0x28] sm:$0xf]
        %v492 = vld [vmem:[%s1 + $0x2c] sm:$0xf]
        %v493 = vld [vmem:[%s1 + $0x30] sm:$0xf]
        %v494 = vld [vmem:[%s1 + $0x34] sm:$0xf]
        %v495 = vld [vmem:[%s1 + $0x38] sm:$0xf]
        %v496 = vld [vmem:[%s1 + $0x3c] sm:$0xf]
        %v497 = vld [vmem:[%s1 + $0x40] sm:$0xf]
        %v498 = vld [vmem:[%s1 + $0x44] sm:$0xf]
        %v499 = vld [vmem:[%s1 + $0x48] sm:$0xf]
        %v500 = vld [vmem:[%s1 + $0x4c] sm:$0xf]
        %v501 = vld [vmem:[%s1 + $0x50] sm:$0xf]
        %v502 = vld [vmem:[%s1 + $0x54] sm:$0xf]
        %v503 = vld [vmem:[%s1 + $0x58] sm:$0xf]
        %v504 = vld [vmem:[%s1 + $0x5c] sm:$0xf]
        %v505 = vld [vmem:[%s1 + $0x60] sm:$0xf]
        %v506 = vld [vmem:[%s1 + $0x64] sm:$0xf]
        %v507 = vld [vmem:[%s1 + $0x68] sm:$0xf]
        %v508 = vld [vmem:[%s1 + $0x6c] sm:$0xf]
        %v509 = vld [vmem:[%s1 + $0x70] sm:$0xf]
        %v510 = vld [vmem:[%s1 + $0x74] sm:$0xf]
        %v511 = vld [vmem:[%s1 + $0x78] sm:$0xf]
        %v512 = vld [vmem:[%s1 + $0x7c] sm:$0xf]
        %v513 = vld [vmem:[%s1 + $0x80] sm:$0xf]
        %v514 = vld [vmem:[%s1 + $0x84] sm:$0xf]
        %v515 = vld [vmem:[%s1 + $0x88] sm:$0xf]
        %v516 = vld [vmem:[%s1 + $0x8c] sm:$0xf]
        %v517 = vld [vmem:[%s1 + $0x90] sm:$0xf]
        %v518 = vld [vmem:[%s1 + $0x94] sm:$0xf]
        %v519 = vld [vmem:[%s1 + $0x98] sm:$0xf]
        %v520 = vld [vmem:[%s1 + $0x9c] sm:$0xf]
        %v521 = vld [vmem:[%s1 + $0xa0] sm:$0xf]
        %v522 = vld [vmem:[%s1 + $0xa4] sm:$0xf]
        %v523 = vld [vmem:[%s1 + $0xa8] sm:$0xf]
        %v524 = vld [vmem:[%s1 + $0xac] sm:$0xf]
        %v525 = vld [vmem:[%s1 + $0xb0] sm:$0xf]
        %v526 = vld [vmem:[%s1 + $0xb4] sm:$0xf]
        %v527 = vld [vmem:[%s1 + $0xb8] sm:$0xf]
        %v528 = vld [vmem:[%s1 + $0xbc] sm:$0xf]
        %v529 = vld [vmem:[#allocation2] sm:$0xff]
        %v530 = vld [vmem:[#allocation2 + $0x10] sm:$0xff]
        %v531 = vld [vmem:[#allocation2 + $0x20] sm:$0xff]
        %v532 = vld [vmem:[#allocation2 + $0x30] sm:$0xff]
        %v533 = vld [vmem:[#allocation2 + $0x1] sm:$0xff]
        %v534 = vld [vmem:[#allocation2 + $0x11] sm:$0xff]
        %v535 = vld [vmem:[#allocation2 + $0x21] sm:$0xff]
        %v536 = vld [vmem:[#allocation2 + $0x31] sm:$0xff]
        %v537 = vld [vmem:[#allocation2 + $0x2] sm:$0xff]
        %v538 = vld [vmem:[#allocation2 + $0x12] sm:$0xff]
        %v539 = vld [vmem:[#allocation2 + $0x22] sm:$0xff]
        %v540 = vld [vmem:[#allocation2 + $0x32] sm:$0xff]
        %v541 = vpack.c.bf16 %v530, %v529
        %v542 = vpack.c.bf16 %v534, %v533
        %v543 = vpack.c.bf16 %v538, %v537
        %v544 = vpack.c.bf16 %v532, %v531
        %v545 = vpack.c.bf16 %v536, %v535
        %v546 = vpack.c.bf16 %v540, %v539
        %s547 = scalar_lea.vmem %s1, 192
        %v548 = vld [vmem:[%s547] sm:$0xf]
        %v549 = vld [vmem:[%s547 + $0x4] sm:$0xf]
        %v550 = vld [vmem:[%s547 + $0x8] sm:$0xf]
        %v551 = vld [vmem:[%s547 + $0xc] sm:$0xf]
        %v552 = vld [vmem:[%s547 + $0x10] sm:$0xf]
        %v553 = vld [vmem:[%s547 + $0x14] sm:$0xf]
        %v554 = vld [vmem:[%s547 + $0x18] sm:$0xf]
        %v555 = vld [vmem:[%s547 + $0x1c] sm:$0xf]
        %v556 = vld [vmem:[%s547 + $0x20] sm:$0xf]
        %v557 = vld [vmem:[%s547 + $0x24] sm:$0xf]
        %v558 = vld [vmem:[%s547 + $0x28] sm:$0xf]
        %v559 = vld [vmem:[%s547 + $0x2c] sm:$0xf]
        %v560 = vld [vmem:[%s547 + $0x30] sm:$0xf]
        %v561 = vld [vmem:[%s547 + $0x34] sm:$0xf]
        %v562 = vld [vmem:[%s547 + $0x38] sm:$0xf]
        %v563 = vld [vmem:[%s547 + $0x3c] sm:$0xf]
        %v564 = vld [vmem:[%s547 + $0x40] sm:$0xf]
        %v565 = vld [vmem:[%s547 + $0x44] sm:$0xf]
        %v566 = vld [vmem:[%s547 + $0x48] sm:$0xf]
        %v567 = vld [vmem:[%s547 + $0x4c] sm:$0xf]
        %v568 = vld [vmem:[%s547 + $0x50] sm:$0xf]
        %v569 = vld [vmem:[%s547 + $0x54] sm:$0xf]
        %v570 = vld [vmem:[%s547 + $0x58] sm:$0xf]
        %v571 = vld [vmem:[%s547 + $0x5c] sm:$0xf]
        %v572 = vld [vmem:[%s547 + $0x60] sm:$0xf]
        %v573 = vld [vmem:[%s547 + $0x64] sm:$0xf]
        %v574 = vld [vmem:[%s547 + $0x68] sm:$0xf]
        %v575 = vld [vmem:[%s547 + $0x6c] sm:$0xf]
        %v576 = vld [vmem:[%s547 + $0x70] sm:$0xf]
        %v577 = vld [vmem:[%s547 + $0x74] sm:$0xf]
        %v578 = vld [vmem:[%s547 + $0x78] sm:$0xf]
        %v579 = vld [vmem:[%s547 + $0x7c] sm:$0xf]
        %v580 = vld [vmem:[%s547 + $0x80] sm:$0xf]
        %v581 = vld [vmem:[%s547 + $0x84] sm:$0xf]
        %v582 = vld [vmem:[%s547 + $0x88] sm:$0xf]
        %v583 = vld [vmem:[%s547 + $0x8c] sm:$0xf]
        %v584 = vld [vmem:[%s547 + $0x90] sm:$0xf]
        %v585 = vld [vmem:[%s547 + $0x94] sm:$0xf]
        %v586 = vld [vmem:[%s547 + $0x98] sm:$0xf]
        %v587 = vld [vmem:[%s547 + $0x9c] sm:$0xf]
        %v588 = vld [vmem:[%s547 + $0xa0] sm:$0xf]
        %v589 = vld [vmem:[%s547 + $0xa4] sm:$0xf]
        %v590 = vld [vmem:[%s547 + $0xa8] sm:$0xf]
        %v591 = vld [vmem:[%s547 + $0xac] sm:$0xf]
        %v592 = vld [vmem:[%s547 + $0xb0] sm:$0xf]
        %v593 = vld [vmem:[%s547 + $0xb4] sm:$0xf]
        %v594 = vld [vmem:[%s547 + $0xb8] sm:$0xf]
        %v595 = vld [vmem:[%s547 + $0xbc] sm:$0xf]
        %s596 = scalar_lea.vmem [#allocation2], 16
        %v597 = vld [vmem:[%s596] sm:$0xff]
        %v598 = vld [vmem:[%s596 + $0x10] sm:$0xff]
        %v599 = vld [vmem:[%s596 + $0x20] sm:$0xff]
        %v600 = vld [vmem:[%s596 + $0x30] sm:$0xff]
        %v601 = vld [vmem:[%s596 + $0x1] sm:$0xff]
        %v602 = vld [vmem:[%s596 + $0x11] sm:$0xff]
        %v603 = vld [vmem:[%s596 + $0x21] sm:$0xff]
        %v604 = vld [vmem:[%s596 + $0x31] sm:$0xff]
        %v605 = vld [vmem:[%s596 + $0x2] sm:$0xff]
        %v606 = vld [vmem:[%s596 + $0x12] sm:$0xff]
        %v607 = vld [vmem:[%s596 + $0x22] sm:$0xff]
        %v608 = vld [vmem:[%s596 + $0x32] sm:$0xff]
        %v609 = vpack.c.bf16 %v598, %v597
        %v610 = vpack.c.bf16 %v602, %v601
        %v611 = vpack.c.bf16 %v606, %v605
        %v612 = vpack.c.bf16 %v600, %v599
        %v613 = vpack.c.bf16 %v604, %v603
        %v614 = vpack.c.bf16 %v608, %v607
        %v663 = vunpack.c.l.b16 %v548
        %v664 = vunpack.c.l.b16 %v549
        %v665 = vunpack.c.l.b16 %v550
        %v666 = vunpack.c.l.b16 %v551
        %v667 = vunpack.c.l.b16 %v552
        %v668 = vunpack.c.l.b16 %v553
        %v669 = vunpack.c.l.b16 %v554
        %v670 = vunpack.c.l.b16 %v555
        %v671 = vunpack.c.l.b16 %v556
        %v672 = vunpack.c.l.b16 %v557
        %v673 = vunpack.c.l.b16 %v558
        %v674 = vunpack.c.l.b16 %v559
        %v675 = vunpack.c.l.b16 %v560
        %v676 = vunpack.c.l.b16 %v561
        %v677 = vunpack.c.l.b16 %v562
        %v678 = vunpack.c.l.b16 %v563
        %v679 = vunpack.c.l.b16 %v564
        %v680 = vunpack.c.l.b16 %v565
        %v681 = vunpack.c.l.b16 %v566
        %v682 = vunpack.c.l.b16 %v567
        %v683 = vunpack.c.l.b16 %v568
        %v684 = vunpack.c.l.b16 %v569
        %v685 = vunpack.c.l.b16 %v570
        %v686 = vunpack.c.l.b16 %v571
        %v687 = vunpack.c.l.b16 %v572
        %v688 = vunpack.c.l.b16 %v573
        %v689 = vunpack.c.l.b16 %v574
        %v690 = vunpack.c.l.b16 %v575
        %v691 = vunpack.c.l.b16 %v576
        %v692 = vunpack.c.l.b16 %v577
        %v693 = vunpack.c.l.b16 %v578
        %v694 = vunpack.c.l.b16 %v579
        %v695 = vunpack.c.l.b16 %v580
        %v696 = vunpack.c.l.b16 %v581
        %v697 = vunpack.c.l.b16 %v582
        %v698 = vunpack.c.l.b16 %v583
        %v699 = vunpack.c.l.b16 %v584
        %v700 = vunpack.c.l.b16 %v585
        %v701 = vunpack.c.l.b16 %v586
        %v702 = vunpack.c.l.b16 %v587
        %v703 = vunpack.c.l.b16 %v588
        %v704 = vunpack.c.l.b16 %v589
        %v705 = vunpack.c.l.b16 %v590
        %v706 = vunpack.c.l.b16 %v591
        %v707 = vunpack.c.l.b16 %v592
        %v708 = vunpack.c.l.b16 %v593
        %v709 = vunpack.c.l.b16 %v594
        %v710 = vunpack.c.l.b16 %v595
        %v711 = vpack.c.b16 %v664, %v663
        %v712 = vpack.c.b16 %v666, %v665
        %v713 = vpack.c.b16 %v668, %v667
        %v714 = vpack.c.b16 %v670, %v669
        %v715 = vpack.c.b16 %v672, %v671
        %v716 = vpack.c.b16 %v674, %v673
        %v717 = vpack.c.b16 %v676, %v675
        %v718 = vpack.c.b16 %v678, %v677
        %v719 = vpack.c.b16 %v680, %v679
        %v720 = vpack.c.b16 %v682, %v681
        %v721 = vpack.c.b16 %v684, %v683
        %v722 = vpack.c.b16 %v686, %v685
        %v723 = vpack.c.b16 %v688, %v687
        %v724 = vpack.c.b16 %v690, %v689
        %v725 = vpack.c.b16 %v692, %v691
        %v726 = vpack.c.b16 %v694, %v693
        %v727 = vpack.c.b16 %v696, %v695
        %v728 = vpack.c.b16 %v698, %v697
        %v729 = vpack.c.b16 %v700, %v699
        %v730 = vpack.c.b16 %v702, %v701
        %v731 = vpack.c.b16 %v704, %v703
        %v732 = vpack.c.b16 %v706, %v705
        %v733 = vpack.c.b16 %v708, %v707
        %v734 = vpack.c.b16 %v710, %v709
        %759 = vmatprep.subr.bf16.mxu0 0
        %760 = vmatpush1.bf16.msra.mxu0 %v711
        %761 = vmatprep.subr.bf16.mxu0 0
        %762 = vmatpush1.bf16.msra.mxu0 %v712
        %763 = vmatprep.subr.bf16.mxu0 0
        %764 = vmatpush1.bf16.msra.mxu0 %v713
        %765 = vmatprep.subr.bf16.mxu0 0
        %766 = vmatpush1.bf16.msra.mxu0 %v714
        %767 = vmatprep.subr.bf16.mxu0 0
        %768 = vmatpush1.bf16.msra.mxu0 %v715
        %769 = vmatprep.subr.bf16.mxu0 0
        %770 = vmatpush1.bf16.msra.mxu0 %v716
        %771 = vmatprep.subr.bf16.mxu0 0
        %772 = vmatpush1.bf16.msra.mxu0 %v717
        %773 = vmatprep.subr.bf16.mxu0 0
        %774 = vmatpush1.bf16.msra.mxu0 %v718
        %775 = vmatprep.subr.bf16.mxu0 0
        %776 = vmatpush1.bf16.msra.mxu0 %v719
        %777 = vmatprep.subr.bf16.mxu0 0
        %778 = vmatpush1.bf16.msra.mxu0 %v720
        %779 = vmatprep.subr.bf16.mxu0 0
        %780 = vmatpush1.bf16.msra.mxu0 %v721
        %781 = vmatprep.subr.bf16.mxu0 0
        %782 = vmatpush1.bf16.msra.mxu0 %v722
        %783 = vmatprep.subr.bf16.mxu0 0
        %784 = vmatpush1.bf16.msra.mxu0 %v723
        %785 = vmatprep.subr.bf16.mxu0 0
        %786 = vmatpush1.bf16.msra.mxu0 %v724
        %787 = vmatprep.subr.bf16.mxu0 0
        %788 = vmatpush1.bf16.msra.mxu0 %v725
        %789 = vmatprep.subr.bf16.mxu0 0
        %790 = vmatpush1.bf16.msra.mxu0 %v726
        %791 = vmatprep.mubr.bf16.mxu0 %v610
        %792 = vmatmul.mubr.bf16.gmra.mrb[0].mxu0 %v609
        %v793 = vpop.f32.mrb[0].mxu0
        %v794 = vadd.f32 0.0, %v793
        %v795 = vpop.f32.mrb[0].mxu0
        %v796 = vpop.f32.mrb[0].mxu0
        %v797 = vadd.f32 0.0, %v796
        %v798 = vpop.f32.mrb[0].mxu0
        %799 = vmatprep.mubr.bf16.mxu0 %v613
        %800 = vmatmul.mubr.bf16.gmra.mrb[0].mxu0 %v612
        %v801 = vpop.f32.mrb[0].mxu0
        %v802 = vadd.f32 0.0, %v801
        %v803 = vpop.f32.mrb[0].mxu0
        %v804 = vpop.f32.mrb[0].mxu0
        %v805 = vadd.f32 0.0, %v804
        %v806 = vpop.f32.mrb[0].mxu0
        %807 = vdwg.mxu0
        %808 = vmatprep.subr.bf16.mxu0 0
        %809 = vmatpush1.bf16.msra.mxu0 %v727
        %810 = vmatprep.subr.bf16.mxu0 0
        %811 = vmatpush1.bf16.msra.mxu0 %v728
        %812 = vmatprep.subr.bf16.mxu0 0
        %813 = vmatpush1.bf16.msra.mxu0 %v729
        %814 = vmatprep.subr.bf16.mxu0 0
        %815 = vmatpush1.bf16.msra.mxu0 %v730
        %816 = vmatprep.subr.bf16.mxu0 0
        %817 = vmatpush1.bf16.msra.mxu0 %v731
        %818 = vmatprep.subr.bf16.mxu0 0
        %819 = vmatpush1.bf16.msra.mxu0 %v732
        %820 = vmatprep.subr.bf16.mxu0 0
        %821 = vmatpush1.bf16.msra.mxu0 %v733
        %822 = vmatprep.subr.bf16.mxu0 0
        %823 = vmatpush1.bf16.msra.mxu0 %v734
        %824 = vmatprep.subr.bf16.mxu0 0
        %825 = vmatpush1.bf16.msra.mxu0 0
        %826 = vmatprep.subr.bf16.mxu0 0
        %827 = vmatpush1.bf16.msra.mxu0 0
        %828 = vmatprep.subr.bf16.mxu0 0
        %829 = vmatpush1.bf16.msra.mxu0 0
        %830 = vmatprep.subr.bf16.mxu0 0
        %831 = vmatpush1.bf16.msra.mxu0 0
        %832 = vmatprep.subr.bf16.mxu0 0
        %833 = vmatpush1.bf16.msra.mxu0 0
        %834 = vmatprep.subr.bf16.mxu0 0
        %835 = vmatpush1.bf16.msra.mxu0 0
        %836 = vmatprep.subr.bf16.mxu0 0
        %837 = vmatpush1.bf16.msra.mxu0 0
        %838 = vmatprep.subr.bf16.mxu0 0
        %839 = vmatpush1.bf16.msra.mxu0 0
        %840 = vmatprep.mubr.bf16.mxu0 0
        %841 = vmatmul.mubr.bf16.gmra.mrb[0].mxu0 %v611
        %v842 = vpop.f32.mrb[0].mxu0
        %v843 = vadd.f32 %v794, %v842
        %v844 = vpop.f32.mrb[0].mxu0
        %v845 = vpop.f32.mrb[0].mxu0
        %v846 = vadd.f32 %v797, %v845
        %v847 = vpop.f32.mrb[0].mxu0
        %848 = vmatprep.mubr.bf16.mxu0 0
        %849 = vmatmul.mubr.bf16.gmra.mrb[0].mxu0 %v614
        %v850 = vpop.f32.mrb[0].mxu0
        %v851 = vadd.f32 %v802, %v850
        %v852 = vpop.f32.mrb[0].mxu0
        %v853 = vpop.f32.mrb[0].mxu0
        %v854 = vadd.f32 %v805, %v853
        %v855 = vpop.f32.mrb[0].mxu0
        %856 = vdwg.mxu0
        %v905 = vunpack.c.l.b16 %v481
        %v906 = vunpack.c.l.b16 %v482
        %v907 = vunpack.c.l.b16 %v483
        %v908 = vunpack.c.l.b16 %v484
        %v909 = vunpack.c.l.b16 %v485
        %v910 = vunpack.c.l.b16 %v486
        %v911 = vunpack.c.l.b16 %v487
        %v912 = vunpack.c.l.b16 %v488
        %v913 = vunpack.c.l.b16 %v489
        %v914 = vunpack.c.l.b16 %v490
        %v915 = vunpack.c.l.b16 %v491
        %v916 = vunpack.c.l.b16 %v492
        %v917 = vunpack.c.l.b16 %v493
        %v918 = vunpack.c.l.b16 %v494
        %v919 = vunpack.c.l.b16 %v495
        %v920 = vunpack.c.l.b16 %v496
        %v921 = vunpack.c.l.b16 %v497
        %v922 = vunpack.c.l.b16 %v498
        %v923 = vunpack.c.l.b16 %v499
        %v924 = vunpack.c.l.b16 %v500
        %v925 = vunpack.c.l.b16 %v501
        %v926 = vunpack.c.l.b16 %v502
        %v927 = vunpack.c.l.b16 %v503
        %v928 = vunpack.c.l.b16 %v504
        %v929 = vunpack.c.l.b16 %v505
        %v930 = vunpack.c.l.b16 %v506
        %v931 = vunpack.c.l.b16 %v507
        %v932 = vunpack.c.l.b16 %v508
        %v933 = vunpack.c.l.b16 %v509
        %v934 = vunpack.c.l.b16 %v510
        %v935 = vunpack.c.l.b16 %v511
        %v936 = vunpack.c.l.b16 %v512
        %v937 = vunpack.c.l.b16 %v513
        %v938 = vunpack.c.l.b16 %v514
        %v939 = vunpack.c.l.b16 %v515
        %v940 = vunpack.c.l.b16 %v516
        %v941 = vunpack.c.l.b16 %v517
        %v942 = vunpack.c.l.b16 %v518
        %v943 = vunpack.c.l.b16 %v519
        %v944 = vunpack.c.l.b16 %v520
        %v945 = vunpack.c.l.b16 %v521
        %v946 = vunpack.c.l.b16 %v522
        %v947 = vunpack.c.l.b16 %v523
        %v948 = vunpack.c.l.b16 %v524
        %v949 = vunpack.c.l.b16 %v525
        %v950 = vunpack.c.l.b16 %v526
        %v951 = vunpack.c.l.b16 %v527
        %v952 = vunpack.c.l.b16 %v528
        %v953 = vpack.c.b16 %v906, %v905
        %v954 = vpack.c.b16 %v908, %v907
        %v955 = vpack.c.b16 %v910, %v909
        %v956 = vpack.c.b16 %v912, %v911
        %v957 = vpack.c.b16 %v914, %v913
        %v958 = vpack.c.b16 %v916, %v915
        %v959 = vpack.c.b16 %v918, %v917
        %v960 = vpack.c.b16 %v920, %v919
        %v961 = vpack.c.b16 %v922, %v921
        %v962 = vpack.c.b16 %v924, %v923
        %v963 = vpack.c.b16 %v926, %v925
        %v964 = vpack.c.b16 %v928, %v927
        %v965 = vpack.c.b16 %v930, %v929
        %v966 = vpack.c.b16 %v932, %v931
        %v967 = vpack.c.b16 %v934, %v933
        %v968 = vpack.c.b16 %v936, %v935
        %v969 = vpack.c.b16 %v938, %v937
        %v970 = vpack.c.b16 %v940, %v939
        %v971 = vpack.c.b16 %v942, %v941
        %v972 = vpack.c.b16 %v944, %v943
        %v973 = vpack.c.b16 %v946, %v945
        %v974 = vpack.c.b16 %v948, %v947
        %v975 = vpack.c.b16 %v950, %v949
        %v976 = vpack.c.b16 %v952, %v951
        %1001 = vmatprep.subr.bf16.mxu0 0
        %1002 = vmatpush1.bf16.msra.mxu0 %v953
        %1003 = vmatprep.subr.bf16.mxu0 0
        %1004 = vmatpush1.bf16.msra.mxu0 %v954
        %1005 = vmatprep.subr.bf16.mxu0 0
        %1006 = vmatpush1.bf16.msra.mxu0 %v955
        %1007 = vmatprep.subr.bf16.mxu0 0
        %1008 = vmatpush1.bf16.msra.mxu0 %v956
        %1009 = vmatprep.subr.bf16.mxu0 0
        %1010 = vmatpush1.bf16.msra.mxu0 %v957
        %1011 = vmatprep.subr.bf16.mxu0 0
        %1012 = vmatpush1.bf16.msra.mxu0 %v958
        %1013 = vmatprep.subr.bf16.mxu0 0
        %1014 = vmatpush1.bf16.msra.mxu0 %v959
        %1015 = vmatprep.subr.bf16.mxu0 0
        %1016 = vmatpush1.bf16.msra.mxu0 %v960
        %1017 = vmatprep.subr.bf16.mxu0 0
        %1018 = vmatpush1.bf16.msra.mxu0 %v961
        %1019 = vmatprep.subr.bf16.mxu0 0
        %1020 = vmatpush1.bf16.msra.mxu0 %v962
        %1021 = vmatprep.subr.bf16.mxu0 0
        %1022 = vmatpush1.bf16.msra.mxu0 %v963
        %1023 = vmatprep.subr.bf16.mxu0 0
        %1024 = vmatpush1.bf16.msra.mxu0 %v964
        %1025 = vmatprep.subr.bf16.mxu0 0
        %1026 = vmatpush1.bf16.msra.mxu0 %v965
        %1027 = vmatprep.subr.bf16.mxu0 0
        %1028 = vmatpush1.bf16.msra.mxu0 %v966
        %1029 = vmatprep.subr.bf16.mxu0 0
        %1030 = vmatpush1.bf16.msra.mxu0 %v967
        %1031 = vmatprep.subr.bf16.mxu0 0
        %1032 = vmatpush1.bf16.msra.mxu0 %v968
        %1033 = vmatprep.mubr.bf16.mxu0 %v542
        %1034 = vmatmul.mubr.bf16.gmra.mrb[0].mxu0 %v541
        %v1035 = vpop.f32.mrb[0].mxu0
        %v1036 = vadd.f32 %v843, %v1035
        %v1037 = vpop.f32.mrb[0].mxu0
        %v1038 = vpop.f32.mrb[0].mxu0
        %v1039 = vadd.f32 %v846, %v1038
        %v1040 = vpop.f32.mrb[0].mxu0
        %1041 = vmatprep.mubr.bf16.mxu0 %v545
        %1042 = vmatmul.mubr.bf16.gmra.mrb[0].mxu0 %v544
        %v1043 = vpop.f32.mrb[0].mxu0
        %v1044 = vadd.f32 %v851, %v1043
        %v1045 = vpop.f32.mrb[0].mxu0
        %v1046 = vpop.f32.mrb[0].mxu0
        %v1047 = vadd.f32 %v854, %v1046
        %v1048 = vpop.f32.mrb[0].mxu0
        %1049 = vdwg.mxu0
        %1050 = vmatprep.subr.bf16.mxu0 0
        %1051 = vmatpush1.bf16.msra.mxu0 %v969
        %1052 = vmatprep.subr.bf16.mxu0 0
        %1053 = vmatpush1.bf16.msra.mxu0 %v970
        %1054 = vmatprep.subr.bf16.mxu0 0
        %1055 = vmatpush1.bf16.msra.mxu0 %v971
        %1056 = vmatprep.subr.bf16.mxu0 0
        %1057 = vmatpush1.bf16.msra.mxu0 %v972
        %1058 = vmatprep.subr.bf16.mxu0 0
        %1059 = vmatpush1.bf16.msra.mxu0 %v973
        %1060 = vmatprep.subr.bf16.mxu0 0
        %1061 = vmatpush1.bf16.msra.mxu0 %v974
        %1062 = vmatprep.subr.bf16.mxu0 0
        %1063 = vmatpush1.bf16.msra.mxu0 %v975
        %1064 = vmatprep.subr.bf16.mxu0 0
        %1065 = vmatpush1.bf16.msra.mxu0 %v976
        %1066 = vmatprep.subr.bf16.mxu0 0
        %1067 = vmatpush1.bf16.msra.mxu0 0
        %1068 = vmatprep.subr.bf16.mxu0 0
        %1069 = vmatpush1.bf16.msra.mxu0 0
        %1070 = vmatprep.subr.bf16.mxu0 0
        %1071 = vmatpush1.bf16.msra.mxu0 0
        %1072 = vmatprep.subr.bf16.mxu0 0
        %1073 = vmatpush1.bf16.msra.mxu0 0
        %1074 = vmatprep.subr.bf16.mxu0 0
        %1075 = vmatpush1.bf16.msra.mxu0 0
        %1076 = vmatprep.subr.bf16.mxu0 0
        %1077 = vmatpush1.bf16.msra.mxu0 0
        %1078 = vmatprep.subr.bf16.mxu0 0
        %1079 = vmatpush1.bf16.msra.mxu0 0
        %1080 = vmatprep.subr.bf16.mxu0 0
        %1081 = vmatpush1.bf16.msra.mxu0 0
        %1082 = vmatprep.mubr.bf16.mxu0 0
        %1083 = vmatmul.mubr.bf16.gmra.mrb[0].mxu0 %v543
        %v1084 = vpop.f32.mrb[0].mxu0
        %v1085 = vadd.f32 %v1036, %v1084
        %v1086 = vpop.f32.mrb[0].mxu0
        %v1087 = vpop.f32.mrb[0].mxu0
        %v1088 = vadd.f32 %v1039, %v1087
        %v1089 = vpop.f32.mrb[0].mxu0
        %1090 = vmatprep.mubr.bf16.mxu0 0
        %1091 = vmatmul.mubr.bf16.gmra.mrb[0].mxu0 %v546
        %v1092 = vpop.f32.mrb[0].mxu0
        %v1093 = vadd.f32 %v1044, %v1092
        %v1094 = vpop.f32.mrb[0].mxu0
        %v1095 = vpop.f32.mrb[0].mxu0
        %v1096 = vadd.f32 %v1047, %v1095
        %v1097 = vpop.f32.mrb[0].mxu0
        %1098 = vdwg.mxu0
        %s1099 = scalar_lea.vmem %s1, 384
        %v1100 = vld [vmem:[%s1099] sm:$0xf]
        %v1101 = vld [vmem:[%s1099 + $0x4] sm:$0xf]
        %v1102 = vld [vmem:[%s1099 + $0x8] sm:$0xf]
        %v1103 = vld [vmem:[%s1099 + $0xc] sm:$0xf]
        %v1104 = vld [vmem:[%s1099 + $0x10] sm:$0xf]
        %v1105 = vld [vmem:[%s1099 + $0x14] sm:$0xf]
        %v1106 = vld [vmem:[%s1099 + $0x18] sm:$0xf]
        %v1107 = vld [vmem:[%s1099 + $0x1c] sm:$0xf]
        %v1108 = vld [vmem:[%s1099 + $0x20] sm:$0xf]
        %v1109 = vld [vmem:[%s1099 + $0x24] sm:$0xf]
        %v1110 = vld [vmem:[%s1099 + $0x28] sm:$0xf]
        %v1111 = vld [vmem:[%s1099 + $0x2c] sm:$0xf]
        %v1112 = vld [vmem:[%s1099 + $0x30] sm:$0xf]
        %v1113 = vld [vmem:[%s1099 + $0x34] sm:$0xf]
        %v1114 = vld [vmem:[%s1099 + $0x38] sm:$0xf]
        %v1115 = vld [vmem:[%s1099 + $0x3c] sm:$0xf]
        %v1116 = vld [vmem:[%s1099 + $0x40] sm:$0xf]
        %v1117 = vld [vmem:[%s1099 + $0x44] sm:$0xf]
        %v1118 = vld [vmem:[%s1099 + $0x48] sm:$0xf]
        %v1119 = vld [vmem:[%s1099 + $0x4c] sm:$0xf]
        %v1120 = vld [vmem:[%s1099 + $0x50] sm:$0xf]
        %v1121 = vld [vmem:[%s1099 + $0x54] sm:$0xf]
        %v1122 = vld [vmem:[%s1099 + $0x58] sm:$0xf]
        %v1123 = vld [vmem:[%s1099 + $0x5c] sm:$0xf]
        %v1124 = vld [vmem:[%s1099 + $0x60] sm:$0xf]
        %v1125 = vld [vmem:[%s1099 + $0x64] sm:$0xf]
        %v1126 = vld [vmem:[%s1099 + $0x68] sm:$0xf]
        %v1127 = vld [vmem:[%s1099 + $0x6c] sm:$0xf]
        %v1128 = vld [vmem:[%s1099 + $0x70] sm:$0xf]
        %v1129 = vld [vmem:[%s1099 + $0x74] sm:$0xf]
        %v1130 = vld [vmem:[%s1099 + $0x78] sm:$0xf]
        %v1131 = vld [vmem:[%s1099 + $0x7c] sm:$0xf]
        %v1132 = vld [vmem:[%s1099 + $0x80] sm:$0xf]
        %v1133 = vld [vmem:[%s1099 + $0x84] sm:$0xf]
        %v1134 = vld [vmem:[%s1099 + $0x88] sm:$0xf]
        %v1135 = vld [vmem:[%s1099 + $0x8c] sm:$0xf]
        %v1136 = vld [vmem:[%s1099 + $0x90] sm:$0xf]
        %v1137 = vld [vmem:[%s1099 + $0x94] sm:$0xf]
        %v1138 = vld [vmem:[%s1099 + $0x98] sm:$0xf]
        %v1139 = vld [vmem:[%s1099 + $0x9c] sm:$0xf]
        %v1140 = vld [vmem:[%s1099 + $0xa0] sm:$0xf]
        %v1141 = vld [vmem:[%s1099 + $0xa4] sm:$0xf]
        %v1142 = vld [vmem:[%s1099 + $0xa8] sm:$0xf]
        %v1143 = vld [vmem:[%s1099 + $0xac] sm:$0xf]
        %v1144 = vld [vmem:[%s1099 + $0xb0] sm:$0xf]
        %v1145 = vld [vmem:[%s1099 + $0xb4] sm:$0xf]
        %v1146 = vld [vmem:[%s1099 + $0xb8] sm:$0xf]
        %v1147 = vld [vmem:[%s1099 + $0xbc] sm:$0xf]
        %s1148 = scalar_lea.vmem [#allocation2], 32
        %v1149 = vld [vmem:[%s1148] sm:$0xff]
        %v1150 = vld [vmem:[%s1148 + $0x10] sm:$0xff]
        %v1151 = vld [vmem:[%s1148 + $0x20] sm:$0xff]
        %v1152 = vld [vmem:[%s1148 + $0x30] sm:$0xff]
        %v1153 = vld [vmem:[%s1148 + $0x1] sm:$0xff]
        %v1154 = vld [vmem:[%s1148 + $0x11] sm:$0xff]
        %v1155 = vld [vmem:[%s1148 + $0x21] sm:$0xff]
        %v1156 = vld [vmem:[%s1148 + $0x31] sm:$0xff]
        %v1157 = vld [vmem:[%s1148 + $0x2] sm:$0xff]
        %v1158 = vld [vmem:[%s1148 + $0x12] sm:$0xff]
        %v1159 = vld [vmem:[%s1148 + $0x22] sm:$0xff]
        %v1160 = vld [vmem:[%s1148 + $0x32] sm:$0xff]
        %v1161 = vpack.c.bf16 %v1150, %v1149
        %v1162 = vpack.c.bf16 %v1154, %v1153
        %v1163 = vpack.c.bf16 %v1158, %v1157
        %v1164 = vpack.c.bf16 %v1152, %v1151
        %v1165 = vpack.c.bf16 %v1156, %v1155
        %v1166 = vpack.c.bf16 %v1160, %v1159
        %v1215 = vunpack.c.l.b16 %v1100
        %v1216 = vunpack.c.l.b16 %v1101
        %v1217 = vunpack.c.l.b16 %v1102
        %v1218 = vunpack.c.l.b16 %v1103
        %v1219 = vunpack.c.l.b16 %v1104
        %v1220 = vunpack.c.l.b16 %v1105
        %v1221 = vunpack.c.l.b16 %v1106
        %v1222 = vunpack.c.l.b16 %v1107
        %v1223 = vunpack.c.l.b16 %v1108
        %v1224 = vunpack.c.l.b16 %v1109
        %v1225 = vunpack.c.l.b16 %v1110
        %v1226 = vunpack.c.l.b16 %v1111
        %v1227 = vunpack.c.l.b16 %v1112
        %v1228 = vunpack.c.l.b16 %v1113
        %v1229 = vunpack.c.l.b16 %v1114
        %v1230 = vunpack.c.l.b16 %v1115
        %v1231 = vunpack.c.l.b16 %v1116
        %v1232 = vunpack.c.l.b16 %v1117
        %v1233 = vunpack.c.l.b16 %v1118
        %v1234 = vunpack.c.l.b16 %v1119
        %v1235 = vunpack.c.l.b16 %v1120
        %v1236 = vunpack.c.l.b16 %v1121
        %v1237 = vunpack.c.l.b16 %v1122
        %v1238 = vunpack.c.l.b16 %v1123
        %v1239 = vunpack.c.l.b16 %v1124
        %v1240 = vunpack.c.l.b16 %v1125
        %v1241 = vunpack.c.l.b16 %v1126
        %v1242 = vunpack.c.l.b16 %v1127
        %v1243 = vunpack.c.l.b16 %v1128
        %v1244 = vunpack.c.l.b16 %v1129
        %v1245 = vunpack.c.l.b16 %v1130
        %v1246 = vunpack.c.l.b16 %v1131
        %v1247 = vunpack.c.l.b16 %v1132
        %v1248 = vunpack.c.l.b16 %v1133
        %v1249 = vunpack.c.l.b16 %v1134
        %v1250 = vunpack.c.l.b16 %v1135
        %v1251 = vunpack.c.l.b16 %v1136
        %v1252 = vunpack.c.l.b16 %v1137
        %v1253 = vunpack.c.l.b16 %v1138
        %v1254 = vunpack.c.l.b16 %v1139
        %v1255 = vunpack.c.l.b16 %v1140
        %v1256 = vunpack.c.l.b16 %v1141
        %v1257 = vunpack.c.l.b16 %v1142
        %v1258 = vunpack.c.l.b16 %v1143
        %v1259 = vunpack.c.l.b16 %v1144
        %v1260 = vunpack.c.l.b16 %v1145
        %v1261 = vunpack.c.l.b16 %v1146
        %v1262 = vunpack.c.l.b16 %v1147
        %v1263 = vpack.c.b16 %v1216, %v1215
        %v1264 = vpack.c.b16 %v1218, %v1217
        %v1265 = vpack.c.b16 %v1220, %v1219
        %v1266 = vpack.c.b16 %v1222, %v1221
        %v1267 = vpack.c.b16 %v1224, %v1223
        %v1268 = vpack.c.b16 %v1226, %v1225
        %v1269 = vpack.c.b16 %v1228, %v1227
        %v1270 = vpack.c.b16 %v1230, %v1229
        %v1271 = vpack.c.b16 %v1232, %v1231
        %v1272 = vpack.c.b16 %v1234, %v1233
        %v1273 = vpack.c.b16 %v1236, %v1235
        %v1274 = vpack.c.b16 %v1238, %v1237
        %v1275 = vpack.c.b16 %v1240, %v1239
        %v1276 = vpack.c.b16 %v1242, %v1241
        %v1277 = vpack.c.b16 %v1244, %v1243
        %v1278 = vpack.c.b16 %v1246, %v1245
        %v1279 = vpack.c.b16 %v1248, %v1247
        %v1280 = vpack.c.b16 %v1250, %v1249
        %v1281 = vpack.c.b16 %v1252, %v1251
        %v1282 = vpack.c.b16 %v1254, %v1253
        %v1283 = vpack.c.b16 %v1256, %v1255
        %v1284 = vpack.c.b16 %v1258, %v1257
        %v1285 = vpack.c.b16 %v1260, %v1259
        %v1286 = vpack.c.b16 %v1262, %v1261
        %1311 = vmatprep.subr.bf16.mxu0 0
        %1312 = vmatpush1.bf16.msra.mxu0 %v1263
        %1313 = vmatprep.subr.bf16.mxu0 0
        %1314 = vmatpush1.bf16.msra.mxu0 %v1264
        %1315 = vmatprep.subr.bf16.mxu0 0
        %1316 = vmatpush1.bf16.msra.mxu0 %v1265
        %1317 = vmatprep.subr.bf16.mxu0 0
        %1318 = vmatpush1.bf16.msra.mxu0 %v1266
        %1319 = vmatprep.subr.bf16.mxu0 0
        %1320 = vmatpush1.bf16.msra.mxu0 %v1267
        %1321 = vmatprep.subr.bf16.mxu0 0
        %1322 = vmatpush1.bf16.msra.mxu0 %v1268
        %1323 = vmatprep.subr.bf16.mxu0 0
        %1324 = vmatpush1.bf16.msra.mxu0 %v1269
        %1325 = vmatprep.subr.bf16.mxu0 0
        %1326 = vmatpush1.bf16.msra.mxu0 %v1270
        %1327 = vmatprep.subr.bf16.mxu0 0
        %1328 = vmatpush1.bf16.msra.mxu0 %v1271
        %1329 = vmatprep.subr.bf16.mxu0 0
        %1330 = vmatpush1.bf16.msra.mxu0 %v1272
        %1331 = vmatprep.subr.bf16.mxu0 0
        %1332 = vmatpush1.bf16.msra.mxu0 %v1273
        %1333 = vmatprep.subr.bf16.mxu0 0
        %1334 = vmatpush1.bf16.msra.mxu0 %v1274
        %1335 = vmatprep.subr.bf16.mxu0 0
        %1336 = vmatpush1.bf16.msra.mxu0 %v1275
        %1337 = vmatprep.subr.bf16.mxu0 0
        %1338 = vmatpush1.bf16.msra.mxu0 %v1276
        %1339 = vmatprep.subr.bf16.mxu0 0
        %1340 = vmatpush1.bf16.msra.mxu0 %v1277
        %1341 = vmatprep.subr.bf16.mxu0 0
        %1342 = vmatpush1.bf16.msra.mxu0 %v1278
        %1343 = vmatprep.mubr.bf16.mxu0 %v1162
        %1344 = vmatmul.mubr.bf16.gmra.mrb[0].mxu0 %v1161
        %v1345 = vpop.f32.mrb[0].mxu0
        %v1346 = vadd.f32 0.0, %v1345
        %v1347 = vpop.f32.mrb[0].mxu0
        %v1348 = vpop.f32.mrb[0].mxu0
        %v1349 = vadd.f32 0.0, %v1348
        %v1350 = vpop.f32.mrb[0].mxu0
        %1351 = vmatprep.mubr.bf16.mxu0 %v1165
        %1352 = vmatmul.mubr.bf16.gmra.mrb[0].mxu0 %v1164
        %v1353 = vpop.f32.mrb[0].mxu0
        %v1354 = vadd.f32 0.0, %v1353
        %v1355 = vpop.f32.mrb[0].mxu0
        %v1356 = vpop.f32.mrb[0].mxu0
        %v1357 = vadd.f32 0.0, %v1356
        %v1358 = vpop.f32.mrb[0].mxu0
        %1359 = vdwg.mxu0
        %1360 = vmatprep.subr.bf16.mxu0 0
        %1361 = vmatpush1.bf16.msra.mxu0 %v1279
        %1362 = vmatprep.subr.bf16.mxu0 0
        %1363 = vmatpush1.bf16.msra.mxu0 %v1280
        %1364 = vmatprep.subr.bf16.mxu0 0
        %1365 = vmatpush1.bf16.msra.mxu0 %v1281
        %1366 = vmatprep.subr.bf16.mxu0 0
        %1367 = vmatpush1.bf16.msra.mxu0 %v1282
        %1368 = vmatprep.subr.bf16.mxu0 0
        %1369 = vmatpush1.bf16.msra.mxu0 %v1283
        %1370 = vmatprep.subr.bf16.mxu0 0
        %1371 = vmatpush1.bf16.msra.mxu0 %v1284
        %1372 = vmatprep.subr.bf16.mxu0 0
        %1373 = vmatpush1.bf16.msra.mxu0 %v1285
        %1374 = vmatprep.subr.bf16.mxu0 0
        %1375 = vmatpush1.bf16.msra.mxu0 %v1286
        %1376 = vmatprep.subr.bf16.mxu0 0
        %1377 = vmatpush1.bf16.msra.mxu0 0
        %1378 = vmatprep.subr.bf16.mxu0 0
        %1379 = vmatpush1.bf16.msra.mxu0 0
        %1380 = vmatprep.subr.bf16.mxu0 0
        %1381 = vmatpush1.bf16.msra.mxu0 0
        %1382 = vmatprep.subr.bf16.mxu0 0
        %1383 = vmatpush1.bf16.msra.mxu0 0
        %1384 = vmatprep.subr.bf16.mxu0 0
        %1385 = vmatpush1.bf16.msra.mxu0 0
        %1386 = vmatprep.subr.bf16.mxu0 0
        %1387 = vmatpush1.bf16.msra.mxu0 0
        %1388 = vmatprep.subr.bf16.mxu0 0
        %1389 = vmatpush1.bf16.msra.mxu0 0
        %1390 = vmatprep.subr.bf16.mxu0 0
        %1391 = vmatpush1.bf16.msra.mxu0 0
        %1392 = vmatprep.mubr.bf16.mxu0 0
        %1393 = vmatmul.mubr.bf16.gmra.mrb[0].mxu0 %v1163
        %v1394 = vpop.f32.mrb[0].mxu0
        %v1395 = vadd.f32 %v1346, %v1394
        %v1396 = vpop.f32.mrb[0].mxu0
        %v1397 = vpop.f32.mrb[0].mxu0
        %v1398 = vadd.f32 %v1349, %v1397
        %v1399 = vpop.f32.mrb[0].mxu0
        %1400 = vmatprep.mubr.bf16.mxu0 0
        %1401 = vmatmul.mubr.bf16.gmra.mrb[0].mxu0 %v1166
        %v1402 = vpop.f32.mrb[0].mxu0
        %v1403 = vadd.f32 %v1354, %v1402
        %v1404 = vpop.f32.mrb[0].mxu0
        %v1405 = vpop.f32.mrb[0].mxu0
        %v1406 = vadd.f32 %v1357, %v1405
        %v1407 = vpop.f32.mrb[0].mxu0
        %1408 = vdwg.mxu0
        %v1409 = vadd.f32 %v1085, %v1395
        %v1410 = vadd.f32 %v1088, %v1398
        %v1411 = vadd.f32 %v1093, %v1403
        %v1412 = vadd.f32 %v1096, %v1406
        %s1413 = sld [smem:[#allocation8]]
        %vm1414 = vcmp.ge.f32.partialorder %v1409, 0.0
        %vm1415 = vcmp.ge.f32.partialorder %v1410, 0.0
        %vm1416 = vcmp.ge.f32.partialorder %v1411, 0.0
        %vm1417 = vcmp.ge.f32.partialorder %v1412, 0.0
        %v1418 = vstv %s1413
        %v1419 = vmul.f32 %v1418, %v1409
        %v1420 = vmul.f32 %v1418, %v1410
        %v1421 = vmul.f32 %v1418, %v1411
        %v1422 = vmul.f32 %v1418, %v1412
        %v1423 = vsel %vm1414, %v1409, %v1419
        %v1424 = vsel %vm1415, %v1410, %v1420
        %v1425 = vsel %vm1416, %v1411, %v1421
        %v1426 = vsel %vm1417, %v1412, %v1422
        %v1431 = vrot.slane %v1423, 7
        %v1432 = vrot.slane %v1424, 7
        %v1433 = vrot.slane %v1425, 7
        %v1434 = vrot.slane %v1426, 7
        %v1439 = vsel %vm460, 0.0, %v1431
        %v1440 = vsel %vm460, 0.0, %v1432
        %v1441 = vsel %vm460, 0.0, %v1433
        %v1442 = vsel %vm460, 0.0, %v1434
        %v1443 = vsel %vm460, %v1431, 0.0
        %v1444 = vsel %vm460, %v1432, 0.0
        %v1445 = vsel %vm460, %v1433, 0.0
        %v1446 = vsel %vm460, %v1434, 0.0
        %1447 = vst [vmem:[#allocation3] sm:$0xff] 0.0
        %1448 = vst [vmem:[#allocation3 + $0x8] sm:$0x3] 0.0
        %1449 = vst [vmem:[#allocation3 + $0x10] sm:$0xff] %v1439
        %1450 = vst [vmem:[#allocation3 + $0x18] sm:$0x3] %v1443
        %1451 = vst [vmem:[#allocation3 + $0x20] sm:$0xff] %v1440
        %1452 = vst [vmem:[#allocation3 + $0x28] sm:$0x3] %v1444
        %1453 = vst [vmem:[#allocation3 + $0x30] sm:$0xff] %v1441
        %1454 = vst [vmem:[#allocation3 + $0x38] sm:$0x3] %v1445
        %1455 = vst [vmem:[#allocation3 + $0x40] sm:$0xff] %v1442
        %1456 = vst [vmem:[#allocation3 + $0x48] sm:$0x3] %v1446
        %1457 = vst [vmem:[#allocation3 + $0x50] sm:$0xff] 0.0
        %1458 = vst [vmem:[#allocation3 + $0x58] sm:$0x3] 0.0
        %v1459 = vld [vmem:[%s2] sm:$0xf]
        %v1460 = vld [vmem:[%s2 + $0x4] sm:$0xf]
        %v1461 = vld [vmem:[%s2 + $0x8] sm:$0xf]
        %v1462 = vld [vmem:[%s2 + $0xc] sm:$0xf]
        %v1463 = vld [vmem:[%s2 + $0x10] sm:$0xf]
        %v1464 = vld [vmem:[%s2 + $0x14] sm:$0xf]
        %v1465 = vld [vmem:[%s2 + $0x18] sm:$0xf]
        %v1466 = vld [vmem:[%s2 + $0x1c] sm:$0xf]
        %v1467 = vld [vmem:[%s2 + $0x20] sm:$0xf]
        %v1468 = vld [vmem:[%s2 + $0x24] sm:$0xf]
        %v1469 = vld [vmem:[%s2 + $0x28] sm:$0xf]
        %v1470 = vld [vmem:[%s2 + $0x2c] sm:$0xf]
        %v1471 = vld [vmem:[%s2 + $0x30] sm:$0xf]
        %v1472 = vld [vmem:[%s2 + $0x34] sm:$0xf]
        %v1473 = vld [vmem:[%s2 + $0x38] sm:$0xf]
        %v1474 = vld [vmem:[%s2 + $0x3c] sm:$0xf]
        %v1475 = vld [vmem:[%s2 + $0x40] sm:$0xf]
        %v1476 = vld [vmem:[%s2 + $0x44] sm:$0xf]
        %v1477 = vld [vmem:[%s2 + $0x48] sm:$0xf]
        %v1478 = vld [vmem:[%s2 + $0x4c] sm:$0xf]
        %v1479 = vld [vmem:[%s2 + $0x50] sm:$0xf]
        %v1480 = vld [vmem:[%s2 + $0x54] sm:$0xf]
        %v1481 = vld [vmem:[%s2 + $0x58] sm:$0xf]
        %v1482 = vld [vmem:[%s2 + $0x5c] sm:$0xf]
        %v1483 = vld [vmem:[%s2 + $0x60] sm:$0xf]
        %v1484 = vld [vmem:[%s2 + $0x64] sm:$0xf]
        %v1485 = vld [vmem:[%s2 + $0x68] sm:$0xf]
        %v1486 = vld [vmem:[%s2 + $0x6c] sm:$0xf]
        %v1487 = vld [vmem:[%s2 + $0x70] sm:$0xf]
        %v1488 = vld [vmem:[%s2 + $0x74] sm:$0xf]
        %v1489 = vld [vmem:[%s2 + $0x78] sm:$0xf]
        %v1490 = vld [vmem:[%s2 + $0x7c] sm:$0xf]
        %v1491 = vld [vmem:[%s2 + $0x80] sm:$0xf]
        %v1492 = vld [vmem:[%s2 + $0x84] sm:$0xf]
        %v1493 = vld [vmem:[%s2 + $0x88] sm:$0xf]
        %v1494 = vld [vmem:[%s2 + $0x8c] sm:$0xf]
        %v1495 = vld [vmem:[%s2 + $0x90] sm:$0xf]
        %v1496 = vld [vmem:[%s2 + $0x94] sm:$0xf]
        %v1497 = vld [vmem:[%s2 + $0x98] sm:$0xf]
        %v1498 = vld [vmem:[%s2 + $0x9c] sm:$0xf]
        %v1499 = vld [vmem:[%s2 + $0xa0] sm:$0xf]
        %v1500 = vld [vmem:[%s2 + $0xa4] sm:$0xf]
        %v1501 = vld [vmem:[%s2 + $0xa8] sm:$0xf]
        %v1502 = vld [vmem:[%s2 + $0xac] sm:$0xf]
        %v1503 = vld [vmem:[%s2 + $0xb0] sm:$0xf]
        %v1504 = vld [vmem:[%s2 + $0xb4] sm:$0xf]
        %v1505 = vld [vmem:[%s2 + $0xb8] sm:$0xf]
        %v1506 = vld [vmem:[%s2 + $0xbc] sm:$0xf]
        %v1507 = vld [vmem:[#allocation3] sm:$0xff]
        %v1508 = vld [vmem:[#allocation3 + $0x10] sm:$0xff]
        %v1509 = vld [vmem:[#allocation3 + $0x20] sm:$0xff]
        %v1510 = vld [vmem:[#allocation3 + $0x30] sm:$0xff]
        %v1511 = vld [vmem:[#allocation3 + $0x1] sm:$0xff]
        %v1512 = vld [vmem:[#allocation3 + $0x11] sm:$0xff]
        %v1513 = vld [vmem:[#allocation3 + $0x21] sm:$0xff]
        %v1514 = vld [vmem:[#allocation3 + $0x31] sm:$0xff]
        %v1515 = vld [vmem:[#allocation3 + $0x2] sm:$0xff]
        %v1516 = vld [vmem:[#allocation3 + $0x12] sm:$0xff]
        %v1517 = vld [vmem:[#allocation3 + $0x22] sm:$0xff]
        %v1518 = vld [vmem:[#allocation3 + $0x32] sm:$0xff]
        %v1519 = vpack.c.bf16 %v1508, %v1507
        %v1520 = vpack.c.bf16 %v1512, %v1511
        %v1521 = vpack.c.bf16 %v1516, %v1515
        %v1522 = vpack.c.bf16 %v1510, %v1509
        %v1523 = vpack.c.bf16 %v1514, %v1513
        %v1524 = vpack.c.bf16 %v1518, %v1517
        %s1525 = scalar_lea.vmem %s2, 192
        %v1526 = vld [vmem:[%s1525] sm:$0xf]
        %v1527 = vld [vmem:[%s1525 + $0x4] sm:$0xf]
        %v1528 = vld [vmem:[%s1525 + $0x8] sm:$0xf]
        %v1529 = vld [vmem:[%s1525 + $0xc] sm:$0xf]
        %v1530 = vld [vmem:[%s1525 + $0x10] sm:$0xf]
        %v1531 = vld [vmem:[%s1525 + $0x14] sm:$0xf]
        %v1532 = vld [vmem:[%s1525 + $0x18] sm:$0xf]
        %v1533 = vld [vmem:[%s1525 + $0x1c] sm:$0xf]
        %v1534 = vld [vmem:[%s1525 + $0x20] sm:$0xf]
        %v1535 = vld [vmem:[%s1525 + $0x24] sm:$0xf]
        %v1536 = vld [vmem:[%s1525 + $0x28] sm:$0xf]
        %v1537 = vld [vmem:[%s1525 + $0x2c] sm:$0xf]
        %v1538 = vld [vmem:[%s1525 + $0x30] sm:$0xf]
        %v1539 = vld [vmem:[%s1525 + $0x34] sm:$0xf]
        %v1540 = vld [vmem:[%s1525 + $0x38] sm:$0xf]
        %v1541 = vld [vmem:[%s1525 + $0x3c] sm:$0xf]
        %v1542 = vld [vmem:[%s1525 + $0x40] sm:$0xf]
        %v1543 = vld [vmem:[%s1525 + $0x44] sm:$0xf]
        %v1544 = vld [vmem:[%s1525 + $0x48] sm:$0xf]
        %v1545 = vld [vmem:[%s1525 + $0x4c] sm:$0xf]
        %v1546 = vld [vmem:[%s1525 + $0x50] sm:$0xf]
        %v1547 = vld [vmem:[%s1525 + $0x54] sm:$0xf]
        %v1548 = vld [vmem:[%s1525 + $0x58] sm:$0xf]
        %v1549 = vld [vmem:[%s1525 + $0x5c] sm:$0xf]
        %v1550 = vld [vmem:[%s1525 + $0x60] sm:$0xf]
        %v1551 = vld [vmem:[%s1525 + $0x64] sm:$0xf]
        %v1552 = vld [vmem:[%s1525 + $0x68] sm:$0xf]
        %v1553 = vld [vmem:[%s1525 + $0x6c] sm:$0xf]
        %v1554 = vld [vmem:[%s1525 + $0x70] sm:$0xf]
        %v1555 = vld [vmem:[%s1525 + $0x74] sm:$0xf]
        %v1556 = vld [vmem:[%s1525 + $0x78] sm:$0xf]
        %v1557 = vld [vmem:[%s1525 + $0x7c] sm:$0xf]
        %v1558 = vld [vmem:[%s1525 + $0x80] sm:$0xf]
        %v1559 = vld [vmem:[%s1525 + $0x84] sm:$0xf]
        %v1560 = vld [vmem:[%s1525 + $0x88] sm:$0xf]
        %v1561 = vld [vmem:[%s1525 + $0x8c] sm:$0xf]
        %v1562 = vld [vmem:[%s1525 + $0x90] sm:$0xf]
        %v1563 = vld [vmem:[%s1525 + $0x94] sm:$0xf]
        %v1564 = vld [vmem:[%s1525 + $0x98] sm:$0xf]
        %v1565 = vld [vmem:[%s1525 + $0x9c] sm:$0xf]
        %v1566 = vld [vmem:[%s1525 + $0xa0] sm:$0xf]
        %v1567 = vld [vmem:[%s1525 + $0xa4] sm:$0xf]
        %v1568 = vld [vmem:[%s1525 + $0xa8] sm:$0xf]
        %v1569 = vld [vmem:[%s1525 + $0xac] sm:$0xf]
        %v1570 = vld [vmem:[%s1525 + $0xb0] sm:$0xf]
        %v1571 = vld [vmem:[%s1525 + $0xb4] sm:$0xf]
        %v1572 = vld [vmem:[%s1525 + $0xb8] sm:$0xf]
        %v1573 = vld [vmem:[%s1525 + $0xbc] sm:$0xf]
        %s1574 = scalar_lea.vmem [#allocation3], 16
        %v1575 = vld [vmem:[%s1574] sm:$0xff]
        %v1576 = vld [vmem:[%s1574 + $0x10] sm:$0xff]
        %v1577 = vld [vmem:[%s1574 + $0x20] sm:$0xff]
        %v1578 = vld [vmem:[%s1574 + $0x30] sm:$0xff]
        %v1579 = vld [vmem:[%s1574 + $0x1] sm:$0xff]
        %v1580 = vld [vmem:[%s1574 + $0x11] sm:$0xff]
        %v1581 = vld [vmem:[%s1574 + $0x21] sm:$0xff]
        %v1582 = vld [vmem:[%s1574 + $0x31] sm:$0xff]
        %v1583 = vld [vmem:[%s1574 + $0x2] sm:$0xff]
        %v1584 = vld [vmem:[%s1574 + $0x12] sm:$0xff]
        %v1585 = vld [vmem:[%s1574 + $0x22] sm:$0xff]
        %v1586 = vld [vmem:[%s1574 + $0x32] sm:$0xff]
        %v1587 = vpack.c.bf16 %v1576, %v1575
        %v1588 = vpack.c.bf16 %v1580, %v1579
        %v1589 = vpack.c.bf16 %v1584, %v1583
        %v1590 = vpack.c.bf16 %v1578, %v1577
        %v1591 = vpack.c.bf16 %v1582, %v1581
        %v1592 = vpack.c.bf16 %v1586, %v1585
        %v1641 = vunpack.c.l.b16 %v1526
        %v1642 = vunpack.c.l.b16 %v1527
        %v1643 = vunpack.c.l.b16 %v1528
        %v1644 = vunpack.c.l.b16 %v1529
        %v1645 = vunpack.c.l.b16 %v1530
        %v1646 = vunpack.c.l.b16 %v1531
        %v1647 = vunpack.c.l.b16 %v1532
        %v1648 = vunpack.c.l.b16 %v1533
        %v1649 = vunpack.c.l.b16 %v1534
        %v1650 = vunpack.c.l.b16 %v1535
        %v1651 = vunpack.c.l.b16 %v1536
        %v1652 = vunpack.c.l.b16 %v1537
        %v1653 = vunpack.c.l.b16 %v1538
        %v1654 = vunpack.c.l.b16 %v1539
        %v1655 = vunpack.c.l.b16 %v1540
        %v1656 = vunpack.c.l.b16 %v1541
        %v1657 = vunpack.c.l.b16 %v1542
        %v1658 = vunpack.c.l.b16 %v1543
        %v1659 = vunpack.c.l.b16 %v1544
        %v1660 = vunpack.c.l.b16 %v1545
        %v1661 = vunpack.c.l.b16 %v1546
        %v1662 = vunpack.c.l.b16 %v1547
        %v1663 = vunpack.c.l.b16 %v1548
        %v1664 = vunpack.c.l.b16 %v1549
        %v1665 = vunpack.c.l.b16 %v1550
        %v1666 = vunpack.c.l.b16 %v1551
        %v1667 = vunpack.c.l.b16 %v1552
        %v1668 = vunpack.c.l.b16 %v1553
        %v1669 = vunpack.c.l.b16 %v1554
        %v1670 = vunpack.c.l.b16 %v1555
        %v1671 = vunpack.c.l.b16 %v1556
        %v1672 = vunpack.c.l.b16 %v1557
        %v1673 = vunpack.c.l.b16 %v1558
        %v1674 = vunpack.c.l.b16 %v1559
        %v1675 = vunpack.c.l.b16 %v1560
        %v1676 = vunpack.c.l.b16 %v1561
        %v1677 = vunpack.c.l.b16 %v1562
        %v1678 = vunpack.c.l.b16 %v1563
        %v1679 = vunpack.c.l.b16 %v1564
        %v1680 = vunpack.c.l.b16 %v1565
        %v1681 = vunpack.c.l.b16 %v1566
        %v1682 = vunpack.c.l.b16 %v1567
        %v1683 = vunpack.c.l.b16 %v1568
        %v1684 = vunpack.c.l.b16 %v1569
        %v1685 = vunpack.c.l.b16 %v1570
        %v1686 = vunpack.c.l.b16 %v1571
        %v1687 = vunpack.c.l.b16 %v1572
        %v1688 = vunpack.c.l.b16 %v1573
        %v1689 = vpack.c.b16 %v1642, %v1641
        %v1690 = vpack.c.b16 %v1644, %v1643
        %v1691 = vpack.c.b16 %v1646, %v1645
        %v1692 = vpack.c.b16 %v1648, %v1647
        %v1693 = vpack.c.b16 %v1650, %v1649
        %v1694 = vpack.c.b16 %v1652, %v1651
        %v1695 = vpack.c.b16 %v1654, %v1653
        %v1696 = vpack.c.b16 %v1656, %v1655
        %v1697 = vpack.c.b16 %v1658, %v1657
        %v1698 = vpack.c.b16 %v1660, %v1659
        %v1699 = vpack.c.b16 %v1662, %v1661
        %v1700 = vpack.c.b16 %v1664, %v1663
        %v1701 = vpack.c.b16 %v1666, %v1665
        %v1702 = vpack.c.b16 %v1668, %v1667
        %v1703 = vpack.c.b16 %v1670, %v1669
        %v1704 = vpack.c.b16 %v1672, %v1671
        %v1705 = vpack.c.b16 %v1674, %v1673
        %v1706 = vpack.c.b16 %v1676, %v1675
        %v1707 = vpack.c.b16 %v1678, %v1677
        %v1708 = vpack.c.b16 %v1680, %v1679
        %v1709 = vpack.c.b16 %v1682, %v1681
        %v1710 = vpack.c.b16 %v1684, %v1683
        %v1711 = vpack.c.b16 %v1686, %v1685
        %v1712 = vpack.c.b16 %v1688, %v1687
        %1737 = vmatprep.subr.bf16.mxu0 0
        %1738 = vmatpush1.bf16.msra.mxu0 %v1689
        %1739 = vmatprep.subr.bf16.mxu0 0
        %1740 = vmatpush1.bf16.msra.mxu0 %v1690
        %1741 = vmatprep.subr.bf16.mxu0 0
        %1742 = vmatpush1.bf16.msra.mxu0 %v1691
        %1743 = vmatprep.subr.bf16.mxu0 0
        %1744 = vmatpush1.bf16.msra.mxu0 %v1692
        %1745 = vmatprep.subr.bf16.mxu0 0
        %1746 = vmatpush1.bf16.msra.mxu0 %v1693
        %1747 = vmatprep.subr.bf16.mxu0 0
        %1748 = vmatpush1.bf16.msra.mxu0 %v1694
        %1749 = vmatprep.subr.bf16.mxu0 0
        %1750 = vmatpush1.bf16.msra.mxu0 %v1695
        %1751 = vmatprep.subr.bf16.mxu0 0
        %1752 = vmatpush1.bf16.msra.mxu0 %v1696
        %1753 = vmatprep.subr.bf16.mxu0 0
        %1754 = vmatpush1.bf16.msra.mxu0 %v1697
        %1755 = vmatprep.subr.bf16.mxu0 0
        %1756 = vmatpush1.bf16.msra.mxu0 %v1698
        %1757 = vmatprep.subr.bf16.mxu0 0
        %1758 = vmatpush1.bf16.msra.mxu0 %v1699
        %1759 = vmatprep.subr.bf16.mxu0 0
        %1760 = vmatpush1.bf16.msra.mxu0 %v1700
        %1761 = vmatprep.subr.bf16.mxu0 0
        %1762 = vmatpush1.bf16.msra.mxu0 %v1701
        %1763 = vmatprep.subr.bf16.mxu0 0
        %1764 = vmatpush1.bf16.msra.mxu0 %v1702
        %1765 = vmatprep.subr.bf16.mxu0 0
        %1766 = vmatpush1.bf16.msra.mxu0 %v1703
        %1767 = vmatprep.subr.bf16.mxu0 0
        %1768 = vmatpush1.bf16.msra.mxu0 %v1704
        %1769 = vmatprep.mubr.bf16.mxu0 %v1588
        %1770 = vmatmul.mubr.bf16.gmra.mrb[0].mxu0 %v1587
        %v1771 = vpop.f32.mrb[0].mxu0
        %v1772 = vadd.f32 0.0, %v1771
        %v1773 = vpop.f32.mrb[0].mxu0
        %v1774 = vpop.f32.mrb[0].mxu0
        %v1775 = vadd.f32 0.0, %v1774
        %v1776 = vpop.f32.mrb[0].mxu0
        %1777 = vmatprep.mubr.bf16.mxu0 %v1591
        %1778 = vmatmul.mubr.bf16.gmra.mrb[0].mxu0 %v1590
        %v1779 = vpop.f32.mrb[0].mxu0
        %v1780 = vadd.f32 0.0, %v1779
        %v1781 = vpop.f32.mrb[0].mxu0
        %v1782 = vpop.f32.mrb[0].mxu0
        %v1783 = vadd.f32 0.0, %v1782
        %v1784 = vpop.f32.mrb[0].mxu0
        %1785 = vdwg.mxu0
        %1786 = vmatprep.subr.bf16.mxu0 0
        %1787 = vmatpush1.bf16.msra.mxu0 %v1705
        %1788 = vmatprep.subr.bf16.mxu0 0
        %1789 = vmatpush1.bf16.msra.mxu0 %v1706
        %1790 = vmatprep.subr.bf16.mxu0 0
        %1791 = vmatpush1.bf16.msra.mxu0 %v1707
        %1792 = vmatprep.subr.bf16.mxu0 0
        %1793 = vmatpush1.bf16.msra.mxu0 %v1708
        %1794 = vmatprep.subr.bf16.mxu0 0
        %1795 = vmatpush1.bf16.msra.mxu0 %v1709
        %1796 = vmatprep.subr.bf16.mxu0 0
        %1797 = vmatpush1.bf16.msra.mxu0 %v1710
        %1798 = vmatprep.subr.bf16.mxu0 0
        %1799 = vmatpush1.bf16.msra.mxu0 %v1711
        %1800 = vmatprep.subr.bf16.mxu0 0
        %1801 = vmatpush1.bf16.msra.mxu0 %v1712
        %1802 = vmatprep.subr.bf16.mxu0 0
        %1803 = vmatpush1.bf16.msra.mxu0 0
        %1804 = vmatprep.subr.bf16.mxu0 0
        %1805 = vmatpush1.bf16.msra.mxu0 0
        %1806 = vmatprep.subr.bf16.mxu0 0
        %1807 = vmatpush1.bf16.msra.mxu0 0
        %1808 = vmatprep.subr.bf16.mxu0 0
        %1809 = vmatpush1.bf16.msra.mxu0 0
        %1810 = vmatprep.subr.bf16.mxu0 0
        %1811 = vmatpush1.bf16.msra.mxu0 0
        %1812 = vmatprep.subr.bf16.mxu0 0
        %1813 = vmatpush1.bf16.msra.mxu0 0
        %1814 = vmatprep.subr.bf16.mxu0 0
        %1815 = vmatpush1.bf16.msra.mxu0 0
        %1816 = vmatprep.subr.bf16.mxu0 0
        %1817 = vmatpush1.bf16.msra.mxu0 0
        %1818 = vmatprep.mubr.bf16.mxu0 0
        %1819 = vmatmul.mubr.bf16.gmra.mrb[0].mxu0 %v1589
        %v1820 = vpop.f32.mrb[0].mxu0
        %v1821 = vadd.f32 %v1772, %v1820
        %v1822 = vpop.f32.mrb[0].mxu0
        %v1823 = vpop.f32.mrb[0].mxu0
        %v1824 = vadd.f32 %v1775, %v1823
        %v1825 = vpop.f32.mrb[0].mxu0
        %1826 = vmatprep.mubr.bf16.mxu0 0
        %1827 = vmatmul.mubr.bf16.gmra.mrb[0].mxu0 %v1592
        %v1828 = vpop.f32.mrb[0].mxu0
        %v1829 = vadd.f32 %v1780, %v1828
        %v1830 = vpop.f32.mrb[0].mxu0
        %v1831 = vpop.f32.mrb[0].mxu0
        %v1832 = vadd.f32 %v1783, %v1831
        %v1833 = vpop.f32.mrb[0].mxu0
        %1834 = vdwg.mxu0
        %v1883 = vunpack.c.l.b16 %v1459
        %v1884 = vunpack.c.l.b16 %v1460
        %v1885 = vunpack.c.l.b16 %v1461
        %v1886 = vunpack.c.l.b16 %v1462
        %v1887 = vunpack.c.l.b16 %v1463
        %v1888 = vunpack.c.l.b16 %v1464
        %v1889 = vunpack.c.l.b16 %v1465
        %v1890 = vunpack.c.l.b16 %v1466
        %v1891 = vunpack.c.l.b16 %v1467
        %v1892 = vunpack.c.l.b16 %v1468
        %v1893 = vunpack.c.l.b16 %v1469
        %v1894 = vunpack.c.l.b16 %v1470
        %v1895 = vunpack.c.l.b16 %v1471
        %v1896 = vunpack.c.l.b16 %v1472
        %v1897 = vunpack.c.l.b16 %v1473
        %v1898 = vunpack.c.l.b16 %v1474
        %v1899 = vunpack.c.l.b16 %v1475
        %v1900 = vunpack.c.l.b16 %v1476
        %v1901 = vunpack.c.l.b16 %v1477
        %v1902 = vunpack.c.l.b16 %v1478
        %v1903 = vunpack.c.l.b16 %v1479
        %v1904 = vunpack.c.l.b16 %v1480
        %v1905 = vunpack.c.l.b16 %v1481
        %v1906 = vunpack.c.l.b16 %v1482
        %v1907 = vunpack.c.l.b16 %v1483
        %v1908 = vunpack.c.l.b16 %v1484
        %v1909 = vunpack.c.l.b16 %v1485
        %v1910 = vunpack.c.l.b16 %v1486
        %v1911 = vunpack.c.l.b16 %v1487
        %v1912 = vunpack.c.l.b16 %v1488
        %v1913 = vunpack.c.l.b16 %v1489
        %v1914 = vunpack.c.l.b16 %v1490
        %v1915 = vunpack.c.l.b16 %v1491
        %v1916 = vunpack.c.l.b16 %v1492
        %v1917 = vunpack.c.l.b16 %v1493
        %v1918 = vunpack.c.l.b16 %v1494
        %v1919 = vunpack.c.l.b16 %v1495
        %v1920 = vunpack.c.l.b16 %v1496
        %v1921 = vunpack.c.l.b16 %v1497
        %v1922 = vunpack.c.l.b16 %v1498
        %v1923 = vunpack.c.l.b16 %v1499
        %v1924 = vunpack.c.l.b16 %v1500
        %v1925 = vunpack.c.l.b16 %v1501
        %v1926 = vunpack.c.l.b16 %v1502
        %v1927 = vunpack.c.l.b16 %v1503
        %v1928 = vunpack.c.l.b16 %v1504
        %v1929 = vunpack.c.l.b16 %v1505
        %v1930 = vunpack.c.l.b16 %v1506
        %v1931 = vpack.c.b16 %v1884, %v1883
        %v1932 = vpack.c.b16 %v1886, %v1885
        %v1933 = vpack.c.b16 %v1888, %v1887
        %v1934 = vpack.c.b16 %v1890, %v1889
        %v1935 = vpack.c.b16 %v1892, %v1891
        %v1936 = vpack.c.b16 %v1894, %v1893
        %v1937 = vpack.c.b16 %v1896, %v1895
        %v1938 = vpack.c.b16 %v1898, %v1897
        %v1939 = vpack.c.b16 %v1900, %v1899
        %v1940 = vpack.c.b16 %v1902, %v1901
        %v1941 = vpack.c.b16 %v1904, %v1903
        %v1942 = vpack.c.b16 %v1906, %v1905
        %v1943 = vpack.c.b16 %v1908, %v1907
        %v1944 = vpack.c.b16 %v1910, %v1909
        %v1945 = vpack.c.b16 %v1912, %v1911
        %v1946 = vpack.c.b16 %v1914, %v1913
        %v1947 = vpack.c.b16 %v1916, %v1915
        %v1948 = vpack.c.b16 %v1918, %v1917
        %v1949 = vpack.c.b16 %v1920, %v1919
        %v1950 = vpack.c.b16 %v1922, %v1921
        %v1951 = vpack.c.b16 %v1924, %v1923
        %v1952 = vpack.c.b16 %v1926, %v1925
        %v1953 = vpack.c.b16 %v1928, %v1927
        %v1954 = vpack.c.b16 %v1930, %v1929
        %1979 = vmatprep.subr.bf16.mxu0 0
        %1980 = vmatpush1.bf16.msra.mxu0 %v1931
        %1981 = vmatprep.subr.bf16.mxu0 0
        %1982 = vmatpush1.bf16.msra.mxu0 %v1932
        %1983 = vmatprep.subr.bf16.mxu0 0
        %1984 = vmatpush1.bf16.msra.mxu0 %v1933
        %1985 = vmatprep.subr.bf16.mxu0 0
        %1986 = vmatpush1.bf16.msra.mxu0 %v1934
        %1987 = vmatprep.subr.bf16.mxu0 0
        %1988 = vmatpush1.bf16.msra.mxu0 %v1935
        %1989 = vmatprep.subr.bf16.mxu0 0
        %1990 = vmatpush1.bf16.msra.mxu0 %v1936
        %1991 = vmatprep.subr.bf16.mxu0 0
        %1992 = vmatpush1.bf16.msra.mxu0 %v1937
        %1993 = vmatprep.subr.bf16.mxu0 0
        %1994 = vmatpush1.bf16.msra.mxu0 %v1938
        %1995 = vmatprep.subr.bf16.mxu0 0
        %1996 = vmatpush1.bf16.msra.mxu0 %v1939
        %1997 = vmatprep.subr.bf16.mxu0 0
        %1998 = vmatpush1.bf16.msra.mxu0 %v1940
        %1999 = vmatprep.subr.bf16.mxu0 0
        %2000 = vmatpush1.bf16.msra.mxu0 %v1941
        %2001 = vmatprep.subr.bf16.mxu0 0
        %2002 = vmatpush1.bf16.msra.mxu0 %v1942
        %2003 = vmatprep.subr.bf16.mxu0 0
        %2004 = vmatpush1.bf16.msra.mxu0 %v1943
        %2005 = vmatprep.subr.bf16.mxu0 0
        %2006 = vmatpush1.bf16.msra.mxu0 %v1944
        %2007 = vmatprep.subr.bf16.mxu0 0
        %2008 = vmatpush1.bf16.msra.mxu0 %v1945
        %2009 = vmatprep.subr.bf16.mxu0 0
        %2010 = vmatpush1.bf16.msra.mxu0 %v1946
        %2011 = vmatprep.mubr.bf16.mxu0 %v1520
        %2012 = vmatmul.mubr.bf16.gmra.mrb[0].mxu0 %v1519
        %v2013 = vpop.f32.mrb[0].mxu0
        %v2014 = vadd.f32 %v1821, %v2013
        %v2015 = vpop.f32.mrb[0].mxu0
        %v2016 = vpop.f32.mrb[0].mxu0
        %v2017 = vadd.f32 %v1824, %v2016
        %v2018 = vpop.f32.mrb[0].mxu0
        %2019 = vmatprep.mubr.bf16.mxu0 %v1523
        %2020 = vmatmul.mubr.bf16.gmra.mrb[0].mxu0 %v1522
        %v2021 = vpop.f32.mrb[0].mxu0
        %v2022 = vadd.f32 %v1829, %v2021
        %v2023 = vpop.f32.mrb[0].mxu0
        %v2024 = vpop.f32.mrb[0].mxu0
        %v2025 = vadd.f32 %v1832, %v2024
        %v2026 = vpop.f32.mrb[0].mxu0
        %2027 = vdwg.mxu0
        %2028 = vmatprep.subr.bf16.mxu0 0
        %2029 = vmatpush1.bf16.msra.mxu0 %v1947
        %2030 = vmatprep.subr.bf16.mxu0 0
        %2031 = vmatpush1.bf16.msra.mxu0 %v1948
        %2032 = vmatprep.subr.bf16.mxu0 0
        %2033 = vmatpush1.bf16.msra.mxu0 %v1949
        %2034 = vmatprep.subr.bf16.mxu0 0
        %2035 = vmatpush1.bf16.msra.mxu0 %v1950
        %2036 = vmatprep.subr.bf16.mxu0 0
        %2037 = vmatpush1.bf16.msra.mxu0 %v1951
        %2038 = vmatprep.subr.bf16.mxu0 0
        %2039 = vmatpush1.bf16.msra.mxu0 %v1952
        %2040 = vmatprep.subr.bf16.mxu0 0
        %2041 = vmatpush1.bf16.msra.mxu0 %v1953
        %2042 = vmatprep.subr.bf16.mxu0 0
        %2043 = vmatpush1.bf16.msra.mxu0 %v1954
        %2044 = vmatprep.subr.bf16.mxu0 0
        %2045 = vmatpush1.bf16.msra.mxu0 0
        %2046 = vmatprep.subr.bf16.mxu0 0
        %2047 = vmatpush1.bf16.msra.mxu0 0
        %2048 = vmatprep.subr.bf16.mxu0 0
        %2049 = vmatpush1.bf16.msra.mxu0 0
        %2050 = vmatprep.subr.bf16.mxu0 0
        %2051 = vmatpush1.bf16.msra.mxu0 0
        %2052 = vmatprep.subr.bf16.mxu0 0
        %2053 = vmatpush1.bf16.msra.mxu0 0
        %2054 = vmatprep.subr.bf16.mxu0 0
        %2055 = vmatpush1.bf16.msra.mxu0 0
        %2056 = vmatprep.subr.bf16.mxu0 0
        %2057 = vmatpush1.bf16.msra.mxu0 0
        %2058 = vmatprep.subr.bf16.mxu0 0
        %2059 = vmatpush1.bf16.msra.mxu0 0
        %2060 = vmatprep.mubr.bf16.mxu0 0
        %2061 = vmatmul.mubr.bf16.gmra.mrb[0].mxu0 %v1521
        %v2062 = vpop.f32.mrb[0].mxu0
        %v2063 = vadd.f32 %v2014, %v2062
        %v2064 = vpop.f32.mrb[0].mxu0
        %v2065 = vpop.f32.mrb[0].mxu0
        %v2066 = vadd.f32 %v2017, %v2065
        %v2067 = vpop.f32.mrb[0].mxu0
        %2068 = vmatprep.mubr.bf16.mxu0 0
        %2069 = vmatmul.mubr.bf16.gmra.mrb[0].mxu0 %v1524
        %v2070 = vpop.f32.mrb[0].mxu0
        %v2071 = vadd.f32 %v2022, %v2070
        %v2072 = vpop.f32.mrb[0].mxu0
        %v2073 = vpop.f32.mrb[0].mxu0
        %v2074 = vadd.f32 %v2025, %v2073
        %v2075 = vpop.f32.mrb[0].mxu0
        %2076 = vdwg.mxu0
        %s2077 = scalar_lea.vmem %s2, 384
        %v2078 = vld [vmem:[%s2077] sm:$0xf]
        %v2079 = vld [vmem:[%s2077 + $0x4] sm:$0xf]
        %v2080 = vld [vmem:[%s2077 + $0x8] sm:$0xf]
        %v2081 = vld [vmem:[%s2077 + $0xc] sm:$0xf]
        %v2082 = vld [vmem:[%s2077 + $0x10] sm:$0xf]
        %v2083 = vld [vmem:[%s2077 + $0x14] sm:$0xf]
        %v2084 = vld [vmem:[%s2077 + $0x18] sm:$0xf]
        %v2085 = vld [vmem:[%s2077 + $0x1c] sm:$0xf]
        %v2086 = vld [vmem:[%s2077 + $0x20] sm:$0xf]
        %v2087 = vld [vmem:[%s2077 + $0x24] sm:$0xf]
        %v2088 = vld [vmem:[%s2077 + $0x28] sm:$0xf]
        %v2089 = vld [vmem:[%s2077 + $0x2c] sm:$0xf]
        %v2090 = vld [vmem:[%s2077 + $0x30] sm:$0xf]
        %v2091 = vld [vmem:[%s2077 + $0x34] sm:$0xf]
        %v2092 = vld [vmem:[%s2077 + $0x38] sm:$0xf]
        %v2093 = vld [vmem:[%s2077 + $0x3c] sm:$0xf]
        %v2094 = vld [vmem:[%s2077 + $0x40] sm:$0xf]
        %v2095 = vld [vmem:[%s2077 + $0x44] sm:$0xf]
        %v2096 = vld [vmem:[%s2077 + $0x48] sm:$0xf]
        %v2097 = vld [vmem:[%s2077 + $0x4c] sm:$0xf]
        %v2098 = vld [vmem:[%s2077 + $0x50] sm:$0xf]
        %v2099 = vld [vmem:[%s2077 + $0x54] sm:$0xf]
        %v2100 = vld [vmem:[%s2077 + $0x58] sm:$0xf]
        %v2101 = vld [vmem:[%s2077 + $0x5c] sm:$0xf]
        %v2102 = vld [vmem:[%s2077 + $0x60] sm:$0xf]
        %v2103 = vld [vmem:[%s2077 + $0x64] sm:$0xf]
        %v2104 = vld [vmem:[%s2077 + $0x68] sm:$0xf]
        %v2105 = vld [vmem:[%s2077 + $0x6c] sm:$0xf]
        %v2106 = vld [vmem:[%s2077 + $0x70] sm:$0xf]
        %v2107 = vld [vmem:[%s2077 + $0x74] sm:$0xf]
        %v2108 = vld [vmem:[%s2077 + $0x78] sm:$0xf]
        %v2109 = vld [vmem:[%s2077 + $0x7c] sm:$0xf]
        %v2110 = vld [vmem:[%s2077 + $0x80] sm:$0xf]
        %v2111 = vld [vmem:[%s2077 + $0x84] sm:$0xf]
        %v2112 = vld [vmem:[%s2077 + $0x88] sm:$0xf]
        %v2113 = vld [vmem:[%s2077 + $0x8c] sm:$0xf]
        %v2114 = vld [vmem:[%s2077 + $0x90] sm:$0xf]
        %v2115 = vld [vmem:[%s2077 + $0x94] sm:$0xf]
        %v2116 = vld [vmem:[%s2077 + $0x98] sm:$0xf]
        %v2117 = vld [vmem:[%s2077 + $0x9c] sm:$0xf]
        %v2118 = vld [vmem:[%s2077 + $0xa0] sm:$0xf]
        %v2119 = vld [vmem:[%s2077 + $0xa4] sm:$0xf]
        %v2120 = vld [vmem:[%s2077 + $0xa8] sm:$0xf]
        %v2121 = vld [vmem:[%s2077 + $0xac] sm:$0xf]
        %v2122 = vld [vmem:[%s2077 + $0xb0] sm:$0xf]
        %v2123 = vld [vmem:[%s2077 + $0xb4] sm:$0xf]
        %v2124 = vld [vmem:[%s2077 + $0xb8] sm:$0xf]
        %v2125 = vld [vmem:[%s2077 + $0xbc] sm:$0xf]
        %s2126 = scalar_lea.vmem [#allocation3], 32
        %v2127 = vld [vmem:[%s2126] sm:$0xff]
        %v2128 = vld [vmem:[%s2126 + $0x10] sm:$0xff]
        %v2129 = vld [vmem:[%s2126 + $0x20] sm:$0xff]
        %v2130 = vld [vmem:[%s2126 + $0x30] sm:$0xff]
        %v2131 = vld [vmem:[%s2126 + $0x1] sm:$0xff]
        %v2132 = vld [vmem:[%s2126 + $0x11] sm:$0xff]
        %v2133 = vld [vmem:[%s2126 + $0x21] sm:$0xff]
        %v2134 = vld [vmem:[%s2126 + $0x31] sm:$0xff]
        %v2135 = vld [vmem:[%s2126 + $0x2] sm:$0xff]
        %v2136 = vld [vmem:[%s2126 + $0x12] sm:$0xff]
        %v2137 = vld [vmem:[%s2126 + $0x22] sm:$0xff]
        %v2138 = vld [vmem:[%s2126 + $0x32] sm:$0xff]
        %v2139 = vpack.c.bf16 %v2128, %v2127
        %v2140 = vpack.c.bf16 %v2132, %v2131
        %v2141 = vpack.c.bf16 %v2136, %v2135
        %v2142 = vpack.c.bf16 %v2130, %v2129
        %v2143 = vpack.c.bf16 %v2134, %v2133
        %v2144 = vpack.c.bf16 %v2138, %v2137
        %v2193 = vunpack.c.l.b16 %v2078
        %v2194 = vunpack.c.l.b16 %v2079
        %v2195 = vunpack.c.l.b16 %v2080
        %v2196 = vunpack.c.l.b16 %v2081
        %v2197 = vunpack.c.l.b16 %v2082
        %v2198 = vunpack.c.l.b16 %v2083
        %v2199 = vunpack.c.l.b16 %v2084
        %v2200 = vunpack.c.l.b16 %v2085
        %v2201 = vunpack.c.l.b16 %v2086
        %v2202 = vunpack.c.l.b16 %v2087
        %v2203 = vunpack.c.l.b16 %v2088
        %v2204 = vunpack.c.l.b16 %v2089
        %v2205 = vunpack.c.l.b16 %v2090
        %v2206 = vunpack.c.l.b16 %v2091
        %v2207 = vunpack.c.l.b16 %v2092
        %v2208 = vunpack.c.l.b16 %v2093
        %v2209 = vunpack.c.l.b16 %v2094
        %v2210 = vunpack.c.l.b16 %v2095
        %v2211 = vunpack.c.l.b16 %v2096
        %v2212 = vunpack.c.l.b16 %v2097
        %v2213 = vunpack.c.l.b16 %v2098
        %v2214 = vunpack.c.l.b16 %v2099
        %v2215 = vunpack.c.l.b16 %v2100
        %v2216 = vunpack.c.l.b16 %v2101
        %v2217 = vunpack.c.l.b16 %v2102
        %v2218 = vunpack.c.l.b16 %v2103
        %v2219 = vunpack.c.l.b16 %v2104
        %v2220 = vunpack.c.l.b16 %v2105
        %v2221 = vunpack.c.l.b16 %v2106
        %v2222 = vunpack.c.l.b16 %v2107
        %v2223 = vunpack.c.l.b16 %v2108
        %v2224 = vunpack.c.l.b16 %v2109
        %v2225 = vunpack.c.l.b16 %v2110
        %v2226 = vunpack.c.l.b16 %v2111
        %v2227 = vunpack.c.l.b16 %v2112
        %v2228 = vunpack.c.l.b16 %v2113
        %v2229 = vunpack.c.l.b16 %v2114
        %v2230 = vunpack.c.l.b16 %v2115
        %v2231 = vunpack.c.l.b16 %v2116
        %v2232 = vunpack.c.l.b16 %v2117
        %v2233 = vunpack.c.l.b16 %v2118
        %v2234 = vunpack.c.l.b16 %v2119
        %v2235 = vunpack.c.l.b16 %v2120
        %v2236 = vunpack.c.l.b16 %v2121
        %v2237 = vunpack.c.l.b16 %v2122
        %v2238 = vunpack.c.l.b16 %v2123
        %v2239 = vunpack.c.l.b16 %v2124
        %v2240 = vunpack.c.l.b16 %v2125
        %v2241 = vpack.c.b16 %v2194, %v2193
        %v2242 = vpack.c.b16 %v2196, %v2195
        %v2243 = vpack.c.b16 %v2198, %v2197
        %v2244 = vpack.c.b16 %v2200, %v2199
        %v2245 = vpack.c.b16 %v2202, %v2201
        %v2246 = vpack.c.b16 %v2204, %v2203
        %v2247 = vpack.c.b16 %v2206, %v2205
        %v2248 = vpack.c.b16 %v2208, %v2207
        %v2249 = vpack.c.b16 %v2210, %v2209
        %v2250 = vpack.c.b16 %v2212, %v2211
        %v2251 = vpack.c.b16 %v2214, %v2213
        %v2252 = vpack.c.b16 %v2216, %v2215
        %v2253 = vpack.c.b16 %v2218, %v2217
        %v2254 = vpack.c.b16 %v2220, %v2219
        %v2255 = vpack.c.b16 %v2222, %v2221
        %v2256 = vpack.c.b16 %v2224, %v2223
        %v2257 = vpack.c.b16 %v2226, %v2225
        %v2258 = vpack.c.b16 %v2228, %v2227
        %v2259 = vpack.c.b16 %v2230, %v2229
        %v2260 = vpack.c.b16 %v2232, %v2231
        %v2261 = vpack.c.b16 %v2234, %v2233
        %v2262 = vpack.c.b16 %v2236, %v2235
        %v2263 = vpack.c.b16 %v2238, %v2237
        %v2264 = vpack.c.b16 %v2240, %v2239
        %2289 = vmatprep.subr.bf16.mxu0 0
        %2290 = vmatpush1.bf16.msra.mxu0 %v2241
        %2291 = vmatprep.subr.bf16.mxu0 0
        %2292 = vmatpush1.bf16.msra.mxu0 %v2242
        %2293 = vmatprep.subr.bf16.mxu0 0
        %2294 = vmatpush1.bf16.msra.mxu0 %v2243
        %2295 = vmatprep.subr.bf16.mxu0 0
        %2296 = vmatpush1.bf16.msra.mxu0 %v2244
        %2297 = vmatprep.subr.bf16.mxu0 0
        %2298 = vmatpush1.bf16.msra.mxu0 %v2245
        %2299 = vmatprep.subr.bf16.mxu0 0
        %2300 = vmatpush1.bf16.msra.mxu0 %v2246
        %2301 = vmatprep.subr.bf16.mxu0 0
        %2302 = vmatpush1.bf16.msra.mxu0 %v2247
        %2303 = vmatprep.subr.bf16.mxu0 0
        %2304 = vmatpush1.bf16.msra.mxu0 %v2248
        %2305 = vmatprep.subr.bf16.mxu0 0
        %2306 = vmatpush1.bf16.msra.mxu0 %v2249
        %2307 = vmatprep.subr.bf16.mxu0 0
        %2308 = vmatpush1.bf16.msra.mxu0 %v2250
        %2309 = vmatprep.subr.bf16.mxu0 0
        %2310 = vmatpush1.bf16.msra.mxu0 %v2251
        %2311 = vmatprep.subr.bf16.mxu0 0
        %2312 = vmatpush1.bf16.msra.mxu0 %v2252
        %2313 = vmatprep.subr.bf16.mxu0 0
        %2314 = vmatpush1.bf16.msra.mxu0 %v2253
        %2315 = vmatprep.subr.bf16.mxu0 0
        %2316 = vmatpush1.bf16.msra.mxu0 %v2254
        %2317 = vmatprep.subr.bf16.mxu0 0
        %2318 = vmatpush1.bf16.msra.mxu0 %v2255
        %2319 = vmatprep.subr.bf16.mxu0 0
        %2320 = vmatpush1.bf16.msra.mxu0 %v2256
        %2321 = vmatprep.mubr.bf16.mxu0 %v2140
        %2322 = vmatmul.mubr.bf16.gmra.mrb[0].mxu0 %v2139
        %v2323 = vpop.f32.mrb[0].mxu0
        %v2324 = vadd.f32 0.0, %v2323
        %v2325 = vpop.f32.mrb[0].mxu0
        %v2326 = vpop.f32.mrb[0].mxu0
        %v2327 = vadd.f32 0.0, %v2326
        %v2328 = vpop.f32.mrb[0].mxu0
        %2329 = vmatprep.mubr.bf16.mxu0 %v2143
        %2330 = vmatmul.mubr.bf16.gmra.mrb[0].mxu0 %v2142
        %v2331 = vpop.f32.mrb[0].mxu0
        %v2332 = vadd.f32 0.0, %v2331
        %v2333 = vpop.f32.mrb[0].mxu0
        %v2334 = vpop.f32.mrb[0].mxu0
        %v2335 = vadd.f32 0.0, %v2334
        %v2336 = vpop.f32.mrb[0].mxu0
        %2337 = vdwg.mxu0
        %2338 = vmatprep.subr.bf16.mxu0 0
        %2339 = vmatpush1.bf16.msra.mxu0 %v2257
        %2340 = vmatprep.subr.bf16.mxu0 0
        %2341 = vmatpush1.bf16.msra.mxu0 %v2258
        %2342 = vmatprep.subr.bf16.mxu0 0
        %2343 = vmatpush1.bf16.msra.mxu0 %v2259
        %2344 = vmatprep.subr.bf16.mxu0 0
        %2345 = vmatpush1.bf16.msra.mxu0 %v2260
        %2346 = vmatprep.subr.bf16.mxu0 0
        %2347 = vmatpush1.bf16.msra.mxu0 %v2261
        %2348 = vmatprep.subr.bf16.mxu0 0
        %2349 = vmatpush1.bf16.msra.mxu0 %v2262
        %2350 = vmatprep.subr.bf16.mxu0 0
        %2351 = vmatpush1.bf16.msra.mxu0 %v2263
        %2352 = vmatprep.subr.bf16.mxu0 0
        %2353 = vmatpush1.bf16.msra.mxu0 %v2264
        %2354 = vmatprep.subr.bf16.mxu0 0
        %2355 = vmatpush1.bf16.msra.mxu0 0
        %2356 = vmatprep.subr.bf16.mxu0 0
        %2357 = vmatpush1.bf16.msra.mxu0 0
        %2358 = vmatprep.subr.bf16.mxu0 0
        %2359 = vmatpush1.bf16.msra.mxu0 0
        %2360 = vmatprep.subr.bf16.mxu0 0
        %2361 = vmatpush1.bf16.msra.mxu0 0
        %2362 = vmatprep.subr.bf16.mxu0 0
        %2363 = vmatpush1.bf16.msra.mxu0 0
        %2364 = vmatprep.subr.bf16.mxu0 0
        %2365 = vmatpush1.bf16.msra.mxu0 0
        %2366 = vmatprep.subr.bf16.mxu0 0
        %2367 = vmatpush1.bf16.msra.mxu0 0
        %2368 = vmatprep.subr.bf16.mxu0 0
        %2369 = vmatpush1.bf16.msra.mxu0 0
        %2370 = vmatprep.mubr.bf16.mxu0 0
        %2371 = vmatmul.mubr.bf16.gmra.mrb[0].mxu0 %v2141
        %v2372 = vpop.f32.mrb[0].mxu0
        %v2373 = vadd.f32 %v2324, %v2372
        %v2374 = vpop.f32.mrb[0].mxu0
        %v2375 = vpop.f32.mrb[0].mxu0
        %v2376 = vadd.f32 %v2327, %v2375
        %v2377 = vpop.f32.mrb[0].mxu0
        %2378 = vmatprep.mubr.bf16.mxu0 0
        %2379 = vmatmul.mubr.bf16.gmra.mrb[0].mxu0 %v2144
        %v2380 = vpop.f32.mrb[0].mxu0
        %v2381 = vadd.f32 %v2332, %v2380
        %v2382 = vpop.f32.mrb[0].mxu0
        %v2383 = vpop.f32.mrb[0].mxu0
        %v2384 = vadd.f32 %v2335, %v2383
        %v2385 = vpop.f32.mrb[0].mxu0
        %2386 = vdwg.mxu0
        %v2387 = vadd.f32 %v2063, %v2373
        %v2388 = vadd.f32 %v2066, %v2376
        %v2389 = vadd.f32 %v2071, %v2381
        %v2390 = vadd.f32 %v2074, %v2384
        %v2395 = vrot.slane %v2387, 7
        %v2396 = vrot.slane %v2388, 7
        %v2397 = vrot.slane %v2389, 7
        %v2398 = vrot.slane %v2390, 7
        %v2403 = vsel %vm460, 0.0, %v2395
        %v2404 = vsel %vm460, 0.0, %v2396
        %v2405 = vsel %vm460, 0.0, %v2397
        %v2406 = vsel %vm460, 0.0, %v2398
        %v2407 = vsel %vm460, %v2395, 0.0
        %v2408 = vsel %vm460, %v2396, 0.0
        %v2409 = vsel %vm460, %v2397, 0.0
        %v2410 = vsel %vm460, %v2398, 0.0
        %2411 = vst [vmem:[#allocation4] sm:$0xff] %v2403
        %2412 = vst [vmem:[#allocation4 + $0x8] sm:$0x3] %v2407
        %2413 = vst [vmem:[#allocation4 + $0x10] sm:$0xff] %v2404
        %2414 = vst [vmem:[#allocation4 + $0x18] sm:$0x3] %v2408
        %2415 = vst [vmem:[#allocation4 + $0x20] sm:$0xff] %v2405
        %2416 = vst [vmem:[#allocation4 + $0x28] sm:$0x3] %v2409
        %2417 = vst [vmem:[#allocation4 + $0x30] sm:$0xff] %v2406
        %2418 = vst [vmem:[#allocation4 + $0x38] sm:$0x3] %v2410
        %v2419 = vld [vmem:[%s3] sm:$0xff]
        %v2420 = vld [vmem:[%s3 + $0x8] sm:$0xf]
        %v2421 = vld [vmem:[%s3 + $0xc] sm:$0xff]
        %v2422 = vld [vmem:[%s3 + $0x14] sm:$0xf]
        %v2423 = vld [vmem:[%s3 + $0x18] sm:$0xff]
        %v2424 = vld [vmem:[%s3 + $0x20] sm:$0xf]
        %v2425 = vld [vmem:[%s3 + $0x24] sm:$0xff]
        %v2426 = vld [vmem:[%s3 + $0x2c] sm:$0xf]
        %v2427 = vld [vmem:[%s3 + $0x30] sm:$0xff]
        %v2428 = vld [vmem:[%s3 + $0x38] sm:$0xf]
        %v2429 = vld [vmem:[%s3 + $0x3c] sm:$0xff]
        %v2430 = vld [vmem:[%s3 + $0x44] sm:$0xf]
        %v2431 = vld [vmem:[%s3 + $0x48] sm:$0xff]
        %v2432 = vld [vmem:[%s3 + $0x50] sm:$0xf]
        %v2433 = vld [vmem:[%s3 + $0x54] sm:$0xff]
        %v2434 = vld [vmem:[%s3 + $0x5c] sm:$0xf]
        %v2435 = vld [vmem:[%s3 + $0x60] sm:$0xff]
        %v2436 = vld [vmem:[%s3 + $0x68] sm:$0xf]
        %v2437 = vld [vmem:[%s3 + $0x6c] sm:$0xff]
        %v2438 = vld [vmem:[%s3 + $0x74] sm:$0xf]
        %v2439 = vld [vmem:[%s3 + $0x78] sm:$0xff]
        %v2440 = vld [vmem:[%s3 + $0x80] sm:$0xf]
        %v2441 = vld [vmem:[%s3 + $0x84] sm:$0xff]
        %v2442 = vld [vmem:[%s3 + $0x8c] sm:$0xf]
        %v2443 = vld [vmem:[%s3 + $0x90] sm:$0xff]
        %v2444 = vld [vmem:[%s3 + $0x98] sm:$0xf]
        %v2445 = vld [vmem:[%s3 + $0x9c] sm:$0xff]
        %v2446 = vld [vmem:[%s3 + $0xa4] sm:$0xf]
        %v2447 = vld [vmem:[%s3 + $0xa8] sm:$0xff]
        %v2448 = vld [vmem:[%s3 + $0xb0] sm:$0xf]
        %v2449 = vld [vmem:[%s3 + $0xb4] sm:$0xff]
        %v2450 = vld [vmem:[%s3 + $0xbc] sm:$0xf]
        %v2451 = vld [vmem:[%s3 + $0xc0] sm:$0xff]
        %v2452 = vld [vmem:[%s3 + $0xc8] sm:$0xf]
        %v2453 = vld [vmem:[%s3 + $0xcc] sm:$0xff]
        %v2454 = vld [vmem:[%s3 + $0xd4] sm:$0xf]
        %v2455 = vld [vmem:[%s3 + $0xd8] sm:$0xff]
        %v2456 = vld [vmem:[%s3 + $0xe0] sm:$0xf]
        %v2457 = vld [vmem:[%s3 + $0xe4] sm:$0xff]
        %v2458 = vld [vmem:[%s3 + $0xec] sm:$0xf]
        %v2459 = vld [vmem:[%s3 + $0xf0] sm:$0xff]
        %v2460 = vld [vmem:[%s3 + $0xf8] sm:$0xf]
        %v2461 = vld [vmem:[%s3 + $0xfc] sm:$0xff]
        %v2462 = vld [vmem:[%s3 + $0x104] sm:$0xf]
        %v2463 = vld [vmem:[%s3 + $0x108] sm:$0xff]
        %v2464 = vld [vmem:[%s3 + $0x110] sm:$0xf]
        %v2465 = vld [vmem:[%s3 + $0x114] sm:$0xff]
        %v2466 = vld [vmem:[%s3 + $0x11c] sm:$0xf]
        %v2467 = vld [vmem:[%s3 + $0x120] sm:$0xff]
        %v2468 = vld [vmem:[%s3 + $0x128] sm:$0xf]
        %v2469 = vld [vmem:[%s3 + $0x12c] sm:$0xff]
        %v2470 = vld [vmem:[%s3 + $0x134] sm:$0xf]
        %v2471 = vld [vmem:[%s3 + $0x138] sm:$0xff]
        %v2472 = vld [vmem:[%s3 + $0x140] sm:$0xf]
        %v2473 = vld [vmem:[%s3 + $0x144] sm:$0xff]
        %v2474 = vld [vmem:[%s3 + $0x14c] sm:$0xf]
        %v2475 = vld [vmem:[%s3 + $0x150] sm:$0xff]
        %v2476 = vld [vmem:[%s3 + $0x158] sm:$0xf]
        %v2477 = vld [vmem:[%s3 + $0x15c] sm:$0xff]
        %v2478 = vld [vmem:[%s3 + $0x164] sm:$0xf]
        %v2479 = vld [vmem:[%s3 + $0x168] sm:$0xff]
        %v2480 = vld [vmem:[%s3 + $0x170] sm:$0xf]
        %v2481 = vld [vmem:[%s3 + $0x174] sm:$0xff]
        %v2482 = vld [vmem:[%s3 + $0x17c] sm:$0xf]
        %v2483 = vld [vmem:[%s3 + $0x180] sm:$0xff]
        %v2484 = vld [vmem:[%s3 + $0x188] sm:$0xf]
        %v2485 = vld [vmem:[%s3 + $0x18c] sm:$0xff]
        %v2486 = vld [vmem:[%s3 + $0x194] sm:$0xf]
        %v2487 = vld [vmem:[%s3 + $0x198] sm:$0xff]
        %v2488 = vld [vmem:[%s3 + $0x1a0] sm:$0xf]
        %v2489 = vld [vmem:[%s3 + $0x1a4] sm:$0xff]
        %v2490 = vld [vmem:[%s3 + $0x1ac] sm:$0xf]
        %v2491 = vld [vmem:[%s3 + $0x1b0] sm:$0xff]
        %v2492 = vld [vmem:[%s3 + $0x1b8] sm:$0xf]
        %v2493 = vld [vmem:[%s3 + $0x1bc] sm:$0xff]
        %v2494 = vld [vmem:[%s3 + $0x1c4] sm:$0xf]
        %v2495 = vld [vmem:[%s3 + $0x1c8] sm:$0xff]
        %v2496 = vld [vmem:[%s3 + $0x1d0] sm:$0xf]
        %v2497 = vld [vmem:[%s3 + $0x1d4] sm:$0xff]
        %v2498 = vld [vmem:[%s3 + $0x1dc] sm:$0xf]
        %v2499 = vld [vmem:[%s3 + $0x1e0] sm:$0xff]
        %v2500 = vld [vmem:[%s3 + $0x1e8] sm:$0xf]
        %v2501 = vld [vmem:[%s3 + $0x1ec] sm:$0xff]
        %v2502 = vld [vmem:[%s3 + $0x1f4] sm:$0xf]
        %v2503 = vld [vmem:[%s3 + $0x1f8] sm:$0xff]
        %v2504 = vld [vmem:[%s3 + $0x200] sm:$0xf]
        %v2505 = vld [vmem:[%s3 + $0x204] sm:$0xff]
        %v2506 = vld [vmem:[%s3 + $0x20c] sm:$0xf]
        %v2507 = vld [vmem:[%s3 + $0x210] sm:$0xff]
        %v2508 = vld [vmem:[%s3 + $0x218] sm:$0xf]
        %v2509 = vld [vmem:[%s3 + $0x21c] sm:$0xff]
        %v2510 = vld [vmem:[%s3 + $0x224] sm:$0xf]
        %v2511 = vld [vmem:[%s3 + $0x228] sm:$0xff]
        %v2512 = vld [vmem:[%s3 + $0x230] sm:$0xf]
        %v2513 = vld [vmem:[%s3 + $0x234] sm:$0xff]
        %v2514 = vld [vmem:[%s3 + $0x23c] sm:$0xf]
        %v2515 = vld [vmem:[#allocation4] sm:$0xff]
        %v2516 = vld [vmem:[#allocation4 + $0x10] sm:$0xff]
        %v2517 = vld [vmem:[#allocation4 + $0x20] sm:$0xff]
        %v2518 = vld [vmem:[#allocation4 + $0x30] sm:$0xff]
        %v2519 = vld [vmem:[#allocation4 + $0x1] sm:$0xff]
        %v2520 = vld [vmem:[#allocation4 + $0x11] sm:$0xff]
        %v2521 = vld [vmem:[#allocation4 + $0x21] sm:$0xff]
        %v2522 = vld [vmem:[#allocation4 + $0x31] sm:$0xff]
        %v2523 = vld [vmem:[#allocation4 + $0x2] sm:$0xff]
        %v2524 = vld [vmem:[#allocation4 + $0x12] sm:$0xff]
        %v2525 = vld [vmem:[#allocation4 + $0x22] sm:$0xff]
        %v2526 = vld [vmem:[#allocation4 + $0x32] sm:$0xff]
        %v2527 = vpack.c.bf16 %v2516, %v2515
        %v2528 = vpack.c.bf16 %v2520, %v2519
        %v2529 = vpack.c.bf16 %v2524, %v2523
        %v2530 = vpack.c.bf16 %v2518, %v2517
        %v2531 = vpack.c.bf16 %v2522, %v2521
        %v2532 = vpack.c.bf16 %v2526, %v2525
        %v2629 = vunpack.c.l.b16 %v2419
        %v2630 = vunpack.c.h.b16 %v2419
        %v2631 = vunpack.c.l.b16 %v2420
        %v2632 = vunpack.c.l.b16 %v2421
        %v2633 = vunpack.c.h.b16 %v2421
        %v2634 = vunpack.c.l.b16 %v2422
        %v2635 = vunpack.c.l.b16 %v2423
        %v2636 = vunpack.c.h.b16 %v2423
        %v2637 = vunpack.c.l.b16 %v2424
        %v2638 = vunpack.c.l.b16 %v2425
        %v2639 = vunpack.c.h.b16 %v2425
        %v2640 = vunpack.c.l.b16 %v2426
        %v2641 = vunpack.c.l.b16 %v2427
        %v2642 = vunpack.c.h.b16 %v2427
        %v2643 = vunpack.c.l.b16 %v2428
        %v2644 = vunpack.c.l.b16 %v2429
        %v2645 = vunpack.c.h.b16 %v2429
        %v2646 = vunpack.c.l.b16 %v2430
        %v2647 = vunpack.c.l.b16 %v2431
        %v2648 = vunpack.c.h.b16 %v2431
        %v2649 = vunpack.c.l.b16 %v2432
        %v2650 = vunpack.c.l.b16 %v2433
        %v2651 = vunpack.c.h.b16 %v2433
        %v2652 = vunpack.c.l.b16 %v2434
        %v2653 = vunpack.c.l.b16 %v2435
        %v2654 = vunpack.c.h.b16 %v2435
        %v2655 = vunpack.c.l.b16 %v2436
        %v2656 = vunpack.c.l.b16 %v2437
        %v2657 = vunpack.c.h.b16 %v2437
        %v2658 = vunpack.c.l.b16 %v2438
        %v2659 = vunpack.c.l.b16 %v2439
        %v2660 = vunpack.c.h.b16 %v2439
        %v2661 = vunpack.c.l.b16 %v2440
        %v2662 = vunpack.c.l.b16 %v2441
        %v2663 = vunpack.c.h.b16 %v2441
        %v2664 = vunpack.c.l.b16 %v2442
        %v2665 = vunpack.c.l.b16 %v2443
        %v2666 = vunpack.c.h.b16 %v2443
        %v2667 = vunpack.c.l.b16 %v2444
        %v2668 = vunpack.c.l.b16 %v2445
        %v2669 = vunpack.c.h.b16 %v2445
        %v2670 = vunpack.c.l.b16 %v2446
        %v2671 = vunpack.c.l.b16 %v2447
        %v2672 = vunpack.c.h.b16 %v2447
        %v2673 = vunpack.c.l.b16 %v2448
        %v2674 = vunpack.c.l.b16 %v2449
        %v2675 = vunpack.c.h.b16 %v2449
        %v2676 = vunpack.c.l.b16 %v2450
        %v2677 = vunpack.c.l.b16 %v2451
        %v2678 = vunpack.c.h.b16 %v2451
        %v2679 = vunpack.c.l.b16 %v2452
        %v2680 = vunpack.c.l.b16 %v2453
        %v2681 = vunpack.c.h.b16 %v2453
        %v2682 = vunpack.c.l.b16 %v2454
        %v2683 = vunpack.c.l.b16 %v2455
        %v2684 = vunpack.c.h.b16 %v2455
        %v2685 = vunpack.c.l.b16 %v2456
        %v2686 = vunpack.c.l.b16 %v2457
        %v2687 = vunpack.c.h.b16 %v2457
        %v2688 = vunpack.c.l.b16 %v2458
        %v2689 = vunpack.c.l.b16 %v2459
        %v2690 = vunpack.c.h.b16 %v2459
        %v2691 = vunpack.c.l.b16 %v2460
        %v2692 = vunpack.c.l.b16 %v2461
        %v2693 = vunpack.c.h.b16 %v2461
        %v2694 = vunpack.c.l.b16 %v2462
        %v2695 = vunpack.c.l.b16 %v2463
        %v2696 = vunpack.c.h.b16 %v2463
        %v2697 = vunpack.c.l.b16 %v2464
        %v2698 = vunpack.c.l.b16 %v2465
        %v2699 = vunpack.c.h.b16 %v2465
        %v2700 = vunpack.c.l.b16 %v2466
        %v2701 = vunpack.c.l.b16 %v2467
        %v2702 = vunpack.c.h.b16 %v2467
        %v2703 = vunpack.c.l.b16 %v2468
        %v2704 = vunpack.c.l.b16 %v2469
        %v2705 = vunpack.c.h.b16 %v2469
        %v2706 = vunpack.c.l.b16 %v2470
        %v2707 = vunpack.c.l.b16 %v2471
        %v2708 = vunpack.c.h.b16 %v2471
        %v2709 = vunpack.c.l.b16 %v2472
        %v2710 = vunpack.c.l.b16 %v2473
        %v2711 = vunpack.c.h.b16 %v2473
        %v2712 = vunpack.c.l.b16 %v2474
        %v2713 = vunpack.c.l.b16 %v2475
        %v2714 = vunpack.c.h.b16 %v2475
        %v2715 = vunpack.c.l.b16 %v2476
        %v2716 = vunpack.c.l.b16 %v2477
        %v2717 = vunpack.c.h.b16 %v2477
        %v2718 = vunpack.c.l.b16 %v2478
        %v2719 = vunpack.c.l.b16 %v2479
        %v2720 = vunpack.c.h.b16 %v2479
        %v2721 = vunpack.c.l.b16 %v2480
        %v2722 = vunpack.c.l.b16 %v2481
        %v2723 = vunpack.c.h.b16 %v2481
        %v2724 = vunpack.c.l.b16 %v2482
        %v2725 = vunpack.c.l.b16 %v2483
        %v2726 = vunpack.c.h.b16 %v2483
        %v2727 = vunpack.c.l.b16 %v2484
        %v2728 = vunpack.c.l.b16 %v2485
        %v2729 = vunpack.c.h.b16 %v2485
        %v2730 = vunpack.c.l.b16 %v2486
        %v2731 = vunpack.c.l.b16 %v2487
        %v2732 = vunpack.c.h.b16 %v2487
        %v2733 = vunpack.c.l.b16 %v2488
        %v2734 = vunpack.c.l.b16 %v2489
        %v2735 = vunpack.c.h.b16 %v2489
        %v2736 = vunpack.c.l.b16 %v2490
        %v2737 = vunpack.c.l.b16 %v2491
        %v2738 = vunpack.c.h.b16 %v2491
        %v2739 = vunpack.c.l.b16 %v2492
        %v2740 = vunpack.c.l.b16 %v2493
        %v2741 = vunpack.c.h.b16 %v2493
        %v2742 = vunpack.c.l.b16 %v2494
        %v2743 = vunpack.c.l.b16 %v2495
        %v2744 = vunpack.c.h.b16 %v2495
        %v2745 = vunpack.c.l.b16 %v2496
        %v2746 = vunpack.c.l.b16 %v2497
        %v2747 = vunpack.c.h.b16 %v2497
        %v2748 = vunpack.c.l.b16 %v2498
        %v2749 = vunpack.c.l.b16 %v2499
        %v2750 = vunpack.c.h.b16 %v2499
        %v2751 = vunpack.c.l.b16 %v2500
        %v2752 = vunpack.c.l.b16 %v2501
        %v2753 = vunpack.c.h.b16 %v2501
        %v2754 = vunpack.c.l.b16 %v2502
        %v2755 = vunpack.c.l.b16 %v2503
        %v2756 = vunpack.c.h.b16 %v2503
        %v2757 = vunpack.c.l.b16 %v2504
        %v2758 = vunpack.c.l.b16 %v2505
        %v2759 = vunpack.c.h.b16 %v2505
        %v2760 = vunpack.c.l.b16 %v2506
        %v2761 = vunpack.c.l.b16 %v2507
        %v2762 = vunpack.c.h.b16 %v2507
        %v2763 = vunpack.c.l.b16 %v2508
        %v2764 = vunpack.c.l.b16 %v2509
        %v2765 = vunpack.c.h.b16 %v2509
        %v2766 = vunpack.c.l.b16 %v2510
        %v2767 = vunpack.c.l.b16 %v2511
        %v2768 = vunpack.c.h.b16 %v2511
        %v2769 = vunpack.c.l.b16 %v2512
        %v2770 = vunpack.c.l.b16 %v2513
        %v2771 = vunpack.c.h.b16 %v2513
        %v2772 = vunpack.c.l.b16 %v2514
        %v2773 = vpack.c.b16 %v2632, %v2629
        %v2774 = vpack.c.b16 %v2633, %v2630
        %v2775 = vpack.c.b16 %v2634, %v2631
        %v2776 = vpack.c.b16 %v2638, %v2635
        %v2777 = vpack.c.b16 %v2639, %v2636
        %v2778 = vpack.c.b16 %v2640, %v2637
        %v2779 = vpack.c.b16 %v2644, %v2641
        %v2780 = vpack.c.b16 %v2645, %v2642
        %v2781 = vpack.c.b16 %v2646, %v2643
        %v2782 = vpack.c.b16 %v2650, %v2647
        %v2783 = vpack.c.b16 %v2651, %v2648
        %v2784 = vpack.c.b16 %v2652, %v2649
        %v2785 = vpack.c.b16 %v2656, %v2653
        %v2786 = vpack.c.b16 %v2657, %v2654
        %v2787 = vpack.c.b16 %v2658, %v2655
        %v2788 = vpack.c.b16 %v2662, %v2659
        %v2789 = vpack.c.b16 %v2663, %v2660
        %v2790 = vpack.c.b16 %v2664, %v2661
        %v2791 = vpack.c.b16 %v2668, %v2665
        %v2792 = vpack.c.b16 %v2669, %v2666
        %v2793 = vpack.c.b16 %v2670, %v2667
        %v2794 = vpack.c.b16 %v2674, %v2671
        %v2795 = vpack.c.b16 %v2675, %v2672
        %v2796 = vpack.c.b16 %v2676, %v2673
        %v2797 = vpack.c.b16 %v2680, %v2677
        %v2798 = vpack.c.b16 %v2681, %v2678
        %v2799 = vpack.c.b16 %v2682, %v2679
        %v2800 = vpack.c.b16 %v2686, %v2683
        %v2801 = vpack.c.b16 %v2687, %v2684
        %v2802 = vpack.c.b16 %v2688, %v2685
        %v2803 = vpack.c.b16 %v2692, %v2689
        %v2804 = vpack.c.b16 %v2693, %v2690
        %v2805 = vpack.c.b16 %v2694, %v2691
        %v2806 = vpack.c.b16 %v2698, %v2695
        %v2807 = vpack.c.b16 %v2699, %v2696
        %v2808 = vpack.c.b16 %v2700, %v2697
        %v2809 = vpack.c.b16 %v2704, %v2701
        %v2810 = vpack.c.b16 %v2705, %v2702
        %v2811 = vpack.c.b16 %v2706, %v2703
        %v2812 = vpack.c.b16 %v2710, %v2707
        %v2813 = vpack.c.b16 %v2711, %v2708
        %v2814 = vpack.c.b16 %v2712, %v2709
        %v2815 = vpack.c.b16 %v2716, %v2713
        %v2816 = vpack.c.b16 %v2717, %v2714
        %v2817 = vpack.c.b16 %v2718, %v2715
        %v2818 = vpack.c.b16 %v2722, %v2719
        %v2819 = vpack.c.b16 %v2723, %v2720
        %v2820 = vpack.c.b16 %v2724, %v2721
        %v2821 = vpack.c.b16 %v2728, %v2725
        %v2822 = vpack.c.b16 %v2729, %v2726
        %v2823 = vpack.c.b16 %v2730, %v2727
        %v2824 = vpack.c.b16 %v2734, %v2731
        %v2825 = vpack.c.b16 %v2735, %v2732
        %v2826 = vpack.c.b16 %v2736, %v2733
        %v2827 = vpack.c.b16 %v2740, %v2737
        %v2828 = vpack.c.b16 %v2741, %v2738
        %v2829 = vpack.c.b16 %v2742, %v2739
        %v2830 = vpack.c.b16 %v2746, %v2743
        %v2831 = vpack.c.b16 %v2747, %v2744
        %v2832 = vpack.c.b16 %v2748, %v2745
        %v2833 = vpack.c.b16 %v2752, %v2749
        %v2834 = vpack.c.b16 %v2753, %v2750
        %v2835 = vpack.c.b16 %v2754, %v2751
        %v2836 = vpack.c.b16 %v2758, %v2755
        %v2837 = vpack.c.b16 %v2759, %v2756
        %v2838 = vpack.c.b16 %v2760, %v2757
        %v2839 = vpack.c.b16 %v2764, %v2761
        %v2840 = vpack.c.b16 %v2765, %v2762
        %v2841 = vpack.c.b16 %v2766, %v2763
        %v2842 = vpack.c.b16 %v2770, %v2767
        %v2843 = vpack.c.b16 %v2771, %v2768
        %v2844 = vpack.c.b16 %v2772, %v2769
        %2917 = vmatprep.subr.bf16.mxu0 %v2774
        %2918 = vmatpush1.bf16.msra.mxu0 %v2773
        %2919 = vmatprep.subr.bf16.mxu0 %v2777
        %2920 = vmatpush1.bf16.msra.mxu0 %v2776
        %2921 = vmatprep.subr.bf16.mxu0 %v2780
        %2922 = vmatpush1.bf16.msra.mxu0 %v2779
        %2923 = vmatprep.subr.bf16.mxu0 %v2783
        %2924 = vmatpush1.bf16.msra.mxu0 %v2782
        %2925 = vmatprep.subr.bf16.mxu0 %v2786
        %2926 = vmatpush1.bf16.msra.mxu0 %v2785
        %2927 = vmatprep.subr.bf16.mxu0 %v2789
        %2928 = vmatpush1.bf16.msra.mxu0 %v2788
        %2929 = vmatprep.subr.bf16.mxu0 %v2792
        %2930 = vmatpush1.bf16.msra.mxu0 %v2791
        %2931 = vmatprep.subr.bf16.mxu0 %v2795
        %2932 = vmatpush1.bf16.msra.mxu0 %v2794
        %2933 = vmatprep.subr.bf16.mxu0 %v2798
        %2934 = vmatpush1.bf16.msra.mxu0 %v2797
        %2935 = vmatprep.subr.bf16.mxu0 %v2801
        %2936 = vmatpush1.bf16.msra.mxu0 %v2800
        %2937 = vmatprep.subr.bf16.mxu0 %v2804
        %2938 = vmatpush1.bf16.msra.mxu0 %v2803
        %2939 = vmatprep.subr.bf16.mxu0 %v2807
        %2940 = vmatpush1.bf16.msra.mxu0 %v2806
        %2941 = vmatprep.subr.bf16.mxu0 %v2810
        %2942 = vmatpush1.bf16.msra.mxu0 %v2809
        %2943 = vmatprep.subr.bf16.mxu0 %v2813
        %2944 = vmatpush1.bf16.msra.mxu0 %v2812
        %2945 = vmatprep.subr.bf16.mxu0 %v2816
        %2946 = vmatpush1.bf16.msra.mxu0 %v2815
        %2947 = vmatprep.subr.bf16.mxu0 %v2819
        %2948 = vmatpush1.bf16.msra.mxu0 %v2818
        %2949 = vmatprep.mubr.bf16.mxu0 %v2528
        %2950 = vmatmul.mubr.bf16.gmra.mrb[0].mxu0 %v2527
        %v2951 = vpop.f32.mrb[0].mxu0
        %v2952 = vadd.f32 0.0, %v2951
        %v2953 = vpop.f32.mrb[0].mxu0
        %v2954 = vadd.f32 0.0, %v2953
        %v2955 = vpop.f32.mrb[0].mxu0
        %v2956 = vadd.f32 0.0, %v2955
        %v2957 = vpop.f32.mrb[0].mxu0
        %v2958 = vadd.f32 0.0, %v2957
        %2959 = vmatprep.mubr.bf16.mxu0 %v2531
        %2960 = vmatmul.mubr.bf16.gmra.mrb[0].mxu0 %v2530
        %v2961 = vpop.f32.mrb[0].mxu0
        %v2962 = vadd.f32 0.0, %v2961
        %v2963 = vpop.f32.mrb[0].mxu0
        %v2964 = vadd.f32 0.0, %v2963
        %v2965 = vpop.f32.mrb[0].mxu0
        %v2966 = vadd.f32 0.0, %v2965
        %v2967 = vpop.f32.mrb[0].mxu0
        %v2968 = vadd.f32 0.0, %v2967
        %2969 = vdwg.mxu0
        %2970 = vmatprep.subr.bf16.mxu0 %v2822
        %2971 = vmatpush1.bf16.msra.mxu0 %v2821
        %2972 = vmatprep.subr.bf16.mxu0 %v2825
        %2973 = vmatpush1.bf16.msra.mxu0 %v2824
        %2974 = vmatprep.subr.bf16.mxu0 %v2828
        %2975 = vmatpush1.bf16.msra.mxu0 %v2827
        %2976 = vmatprep.subr.bf16.mxu0 %v2831
        %2977 = vmatpush1.bf16.msra.mxu0 %v2830
        %2978 = vmatprep.subr.bf16.mxu0 %v2834
        %2979 = vmatpush1.bf16.msra.mxu0 %v2833
        %2980 = vmatprep.subr.bf16.mxu0 %v2837
        %2981 = vmatpush1.bf16.msra.mxu0 %v2836
        %2982 = vmatprep.subr.bf16.mxu0 %v2840
        %2983 = vmatpush1.bf16.msra.mxu0 %v2839
        %2984 = vmatprep.subr.bf16.mxu0 %v2843
        %2985 = vmatpush1.bf16.msra.mxu0 %v2842
        %2986 = vmatprep.subr.bf16.mxu0 0
        %2987 = vmatpush1.bf16.msra.mxu0 0
        %2988 = vmatprep.subr.bf16.mxu0 0
        %2989 = vmatpush1.bf16.msra.mxu0 0
        %2990 = vmatprep.subr.bf16.mxu0 0
        %2991 = vmatpush1.bf16.msra.mxu0 0
        %2992 = vmatprep.subr.bf16.mxu0 0
        %2993 = vmatpush1.bf16.msra.mxu0 0
        %2994 = vmatprep.subr.bf16.mxu0 0
        %2995 = vmatpush1.bf16.msra.mxu0 0
        %2996 = vmatprep.subr.bf16.mxu0 0
        %2997 = vmatpush1.bf16.msra.mxu0 0
        %2998 = vmatprep.subr.bf16.mxu0 0
        %2999 = vmatpush1.bf16.msra.mxu0 0
        %3000 = vmatprep.subr.bf16.mxu0 0
        %3001 = vmatpush1.bf16.msra.mxu0 0
        %3002 = vmatprep.mubr.bf16.mxu0 0
        %3003 = vmatmul.mubr.bf16.gmra.mrb[0].mxu0 %v2529
        %v3004 = vpop.f32.mrb[0].mxu0
        %v3005 = vadd.f32 %v2952, %v3004
        %v3006 = vpop.f32.mrb[0].mxu0
        %v3007 = vadd.f32 %v2954, %v3006
        %v3008 = vpop.f32.mrb[0].mxu0
        %v3009 = vadd.f32 %v2956, %v3008
        %v3010 = vpop.f32.mrb[0].mxu0
        %v3011 = vadd.f32 %v2958, %v3010
        %3012 = vmatprep.mubr.bf16.mxu0 0
        %3013 = vmatmul.mubr.bf16.gmra.mrb[0].mxu0 %v2532
        %v3014 = vpop.f32.mrb[0].mxu0
        %v3015 = vadd.f32 %v2962, %v3014
        %v3016 = vpop.f32.mrb[0].mxu0
        %v3017 = vadd.f32 %v2964, %v3016
        %v3018 = vpop.f32.mrb[0].mxu0
        %v3019 = vadd.f32 %v2966, %v3018
        %v3020 = vpop.f32.mrb[0].mxu0
        %v3021 = vadd.f32 %v2968, %v3020
        %3022 = vdwg.mxu0
        %3023 = vmatprep.subr.bf16.mxu0 0
        %3024 = vmatpush1.bf16.msra.mxu0 %v2775
        %3025 = vmatprep.subr.bf16.mxu0 0
        %3026 = vmatpush1.bf16.msra.mxu0 %v2778
        %3027 = vmatprep.subr.bf16.mxu0 0
        %3028 = vmatpush1.bf16.msra.mxu0 %v2781
        %3029 = vmatprep.subr.bf16.mxu0 0
        %3030 = vmatpush1.bf16.msra.mxu0 %v2784
        %3031 = vmatprep.subr.bf16.mxu0 0
        %3032 = vmatpush1.bf16.msra.mxu0 %v2787
        %3033 = vmatprep.subr.bf16.mxu0 0
        %3034 = vmatpush1.bf16.msra.mxu0 %v2790
        %3035 = vmatprep.subr.bf16.mxu0 0
        %3036 = vmatpush1.bf16.msra.mxu0 %v2793
        %3037 = vmatprep.subr.bf16.mxu0 0
        %3038 = vmatpush1.bf16.msra.mxu0 %v2796
        %3039 = vmatprep.subr.bf16.mxu0 0
        %3040 = vmatpush1.bf16.msra.mxu0 %v2799
        %3041 = vmatprep.subr.bf16.mxu0 0
        %3042 = vmatpush1.bf16.msra.mxu0 %v2802
        %3043 = vmatprep.subr.bf16.mxu0 0
        %3044 = vmatpush1.bf16.msra.mxu0 %v2805
        %3045 = vmatprep.subr.bf16.mxu0 0
        %3046 = vmatpush1.bf16.msra.mxu0 %v2808
        %3047 = vmatprep.subr.bf16.mxu0 0
        %3048 = vmatpush1.bf16.msra.mxu0 %v2811
        %3049 = vmatprep.subr.bf16.mxu0 0
        %3050 = vmatpush1.bf16.msra.mxu0 %v2814
        %3051 = vmatprep.subr.bf16.mxu0 0
        %3052 = vmatpush1.bf16.msra.mxu0 %v2817
        %3053 = vmatprep.subr.bf16.mxu0 0
        %3054 = vmatpush1.bf16.msra.mxu0 %v2820
        %3055 = vmatprep.mubr.bf16.mxu0 %v2528
        %3056 = vmatmul.mubr.bf16.gmra.mrb[0].mxu0 %v2527
        %v3057 = vpop.f32.mrb[0].mxu0
        %v3058 = vadd.f32 0.0, %v3057
        %v3059 = vpop.f32.mrb[0].mxu0
        %v3060 = vpop.f32.mrb[0].mxu0
        %v3061 = vadd.f32 0.0, %v3060
        %v3062 = vpop.f32.mrb[0].mxu0
        %3063 = vmatprep.mubr.bf16.mxu0 %v2531
        %3064 = vmatmul.mubr.bf16.gmra.mrb[0].mxu0 %v2530
        %v3065 = vpop.f32.mrb[0].mxu0
        %v3066 = vadd.f32 0.0, %v3065
        %v3067 = vpop.f32.mrb[0].mxu0
        %v3068 = vpop.f32.mrb[0].mxu0
        %v3069 = vadd.f32 0.0, %v3068
        %v3070 = vpop.f32.mrb[0].mxu0
        %3071 = vdwg.mxu0
        %3072 = vmatprep.subr.bf16.mxu0 0
        %3073 = vmatpush1.bf16.msra.mxu0 %v2823
        %3074 = vmatprep.subr.bf16.mxu0 0
        %3075 = vmatpush1.bf16.msra.mxu0 %v2826
        %3076 = vmatprep.subr.bf16.mxu0 0
        %3077 = vmatpush1.bf16.msra.mxu0 %v2829
        %3078 = vmatprep.subr.bf16.mxu0 0
        %3079 = vmatpush1.bf16.msra.mxu0 %v2832
        %3080 = vmatprep.subr.bf16.mxu0 0
        %3081 = vmatpush1.bf16.msra.mxu0 %v2835
        %3082 = vmatprep.subr.bf16.mxu0 0
        %3083 = vmatpush1.bf16.msra.mxu0 %v2838
        %3084 = vmatprep.subr.bf16.mxu0 0
        %3085 = vmatpush1.bf16.msra.mxu0 %v2841
        %3086 = vmatprep.subr.bf16.mxu0 0
        %3087 = vmatpush1.bf16.msra.mxu0 %v2844
        %3088 = vmatprep.subr.bf16.mxu0 0
        %3089 = vmatpush1.bf16.msra.mxu0 0
        %3090 = vmatprep.subr.bf16.mxu0 0
        %3091 = vmatpush1.bf16.msra.mxu0 0
        %3092 = vmatprep.subr.bf16.mxu0 0
        %3093 = vmatpush1.bf16.msra.mxu0 0
        %3094 = vmatprep.subr.bf16.mxu0 0
        %3095 = vmatpush1.bf16.msra.mxu0 0
        %3096 = vmatprep.subr.bf16.mxu0 0
        %3097 = vmatpush1.bf16.msra.mxu0 0
        %3098 = vmatprep.subr.bf16.mxu0 0
        %3099 = vmatpush1.bf16.msra.mxu0 0
        %3100 = vmatprep.subr.bf16.mxu0 0
        %3101 = vmatpush1.bf16.msra.mxu0 0
        %3102 = vmatprep.subr.bf16.mxu0 0
        %3103 = vmatpush1.bf16.msra.mxu0 0
        %3104 = vmatprep.mubr.bf16.mxu0 0
        %3105 = vmatmul.mubr.bf16.gmra.mrb[0].mxu0 %v2529
        %v3106 = vpop.f32.mrb[0].mxu0
        %v3107 = vadd.f32 %v3058, %v3106
        %v3108 = vpop.f32.mrb[0].mxu0
        %v3109 = vpop.f32.mrb[0].mxu0
        %v3110 = vadd.f32 %v3061, %v3109
        %v3111 = vpop.f32.mrb[0].mxu0
        %3112 = vmatprep.mubr.bf16.mxu0 0
        %3113 = vmatmul.mubr.bf16.gmra.mrb[0].mxu0 %v2532
        %v3114 = vpop.f32.mrb[0].mxu0
        %v3115 = vadd.f32 %v3066, %v3114
        %v3116 = vpop.f32.mrb[0].mxu0
        %v3117 = vpop.f32.mrb[0].mxu0
        %v3118 = vadd.f32 %v3069, %v3117
        %v3119 = vpop.f32.mrb[0].mxu0
        %3120 = vdwg.mxu0
        %v3121 = vld [vmem:[%s7] sm:$0x7]
        %v3123 = vlaneseq
        %v3124 = vshrl.u32 %v3123, 7
        %v3125 = vsub.s32 0, %v3124
        %v3126 = vrot.slane %v3121, %v3125
        %v3127 = vlaneseq
        %v3128 = vshrl.u32 %v3127, 7
        %v3129 = vsub.s32 1, %v3128
        %v3130 = vrot.slane %v3121, %v3129
        %v3131 = vlaneseq
        %v3132 = vshrl.u32 %v3131, 7
        %v3133 = vsub.s32 2, %v3132
        %v3134 = vrot.slane %v3121, %v3133
        %v3138 = vmul.f32 %v3005, %v3126
        %v3139 = vmul.f32 %v3007, %v3130
        %v3140 = vmul.f32 %v3107, %v3134
        %v3141 = vmul.f32 %v3009, %v3126
        %v3142 = vmul.f32 %v3011, %v3130
        %v3143 = vmul.f32 %v3110, %v3134
        %v3144 = vmul.f32 %v3015, %v3126
        %v3145 = vmul.f32 %v3017, %v3130
        %v3146 = vmul.f32 %v3115, %v3134
        %v3147 = vmul.f32 %v3019, %v3126
        %v3148 = vmul.f32 %v3021, %v3130
        %v3149 = vmul.f32 %v3118, %v3134
        %v3150 = vld [vmem:[%s8] sm:$0x7]
        %v3152 = vlaneseq
        %v3153 = vshrl.u32 %v3152, 7
        %v3154 = vsub.s32 0, %v3153
        %v3155 = vrot.slane %v3150, %v3154
        %v3156 = vlaneseq
        %v3157 = vshrl.u32 %v3156, 7
        %v3158 = vsub.s32 1, %v3157
        %v3159 = vrot.slane %v3150, %v3158
        %v3160 = vlaneseq
        %v3161 = vshrl.u32 %v3160, 7
        %v3162 = vsub.s32 2, %v3161
        %v3163 = vrot.slane %v3150, %v3162
        %v3167 = vadd.f32 %v3138, %v3155
        %v3168 = vadd.f32 %v3139, %v3159
        %v3169 = vadd.f32 %v3140, %v3163
        %v3170 = vadd.f32 %v3141, %v3155
        %v3171 = vadd.f32 %v3142, %v3159
        %v3172 = vadd.f32 %v3143, %v3163
        %v3173 = vadd.f32 %v3144, %v3155
        %v3174 = vadd.f32 %v3145, %v3159
        %v3175 = vadd.f32 %v3146, %v3163
        %v3176 = vadd.f32 %v3147, %v3155
        %v3177 = vadd.f32 %v3148, %v3159
        %v3178 = vadd.f32 %v3149, %v3163
        %v3179 = vmax.f32 %v3167, 0.0
        %v3180 = vmax.f32 %v3168, 0.0
        %v3181 = vmax.f32 %v3169, 0.0
        %v3182 = vmax.f32 %v3170, 0.0
        %v3183 = vmax.f32 %v3171, 0.0
        %v3184 = vmax.f32 %v3172, 0.0
        %v3185 = vmax.f32 %v3173, 0.0
        %v3186 = vmax.f32 %v3174, 0.0
        %v3187 = vmax.f32 %v3175, 0.0
        %v3188 = vmax.f32 %v3176, 0.0
        %v3189 = vmax.f32 %v3177, 0.0
        %v3190 = vmax.f32 %v3178, 0.0
        %v3191 = vpack.c.bf16 %v3179, %v3179
        %v3192 = vpack.c.bf16 %v3180, %v3180
        %v3193 = vpack.c.bf16 %v3181, %v3181
        %v3194 = vpack.c.bf16 %v3182, %v3182
        %v3195 = vpack.c.bf16 %v3183, %v3183
        %v3196 = vpack.c.bf16 %v3184, %v3184
        %v3197 = vpack.c.bf16 %v3185, %v3185
        %v3198 = vpack.c.bf16 %v3186, %v3186
        %v3199 = vpack.c.bf16 %v3187, %v3187
        %v3200 = vpack.c.bf16 %v3188, %v3188
        %v3201 = vpack.c.bf16 %v3189, %v3189
        %v3202 = vpack.c.bf16 %v3190, %v3190
        %v3216 = vunpack.c.l.b16 0
        %v3217 = vunpack.c.l.b16 %v3191
        %v3218 = vunpack.c.l.b16 %v3192
        %v3219 = vunpack.c.l.b16 %v3193
        %v3220 = vunpack.c.l.b16 %v3194
        %v3221 = vunpack.c.l.b16 %v3195
        %v3222 = vunpack.c.l.b16 %v3196
        %v3223 = vunpack.c.l.b16 %v3197
        %v3224 = vunpack.c.l.b16 %v3198
        %v3225 = vunpack.c.l.b16 %v3199
        %v3226 = vunpack.c.l.b16 %v3200
        %v3227 = vunpack.c.l.b16 %v3201
        %v3228 = vunpack.c.l.b16 %v3202
        %v3229 = vpack.c.b16 %v3216, %v3216
        %v3230 = vpack.c.b16 %v3218, %v3217
        %v3231 = vpack.c.b16 %v3219, %v3219
        %v3232 = vpack.c.b16 %v3221, %v3220
        %v3233 = vpack.c.b16 %v3222, %v3222
        %v3234 = vpack.c.b16 %v3224, %v3223
        %v3235 = vpack.c.b16 %v3225, %v3225
        %v3236 = vpack.c.b16 %v3227, %v3226
        %v3237 = vpack.c.b16 %v3228, %v3228
        %3247 = vst [vmem:[#allocation5] sm:$0xff] %v3229
        %vm3248 = vcmask 257024
        %3249 = vst.msk [vmem:[#allocation5 + $0x8] sm:$0xf] %vm3248, %v3229
        %3250 = vst [vmem:[#allocation5 + $0xc] sm:$0xff] %v3230
        %3251 = vst.msk [vmem:[#allocation5 + $0x14] sm:$0xf] %vm3248, %v3231
        %3252 = vst [vmem:[#allocation5 + $0x18] sm:$0xff] %v3232
        %3253 = vst.msk [vmem:[#allocation5 + $0x20] sm:$0xf] %vm3248, %v3233
        %3254 = vst [vmem:[#allocation5 + $0x24] sm:$0xff] %v3234
        %3255 = vst.msk [vmem:[#allocation5 + $0x2c] sm:$0xf] %vm3248, %v3235
        %3256 = vst [vmem:[#allocation5 + $0x30] sm:$0xff] %v3236
        %3257 = vst.msk [vmem:[#allocation5 + $0x38] sm:$0xf] %vm3248, %v3237
        %3258 = vst [vmem:[#allocation5 + $0x3c] sm:$0xff] %v3229
        %3259 = vst.msk [vmem:[#allocation5 + $0x44] sm:$0xf] %vm3248, %v3229
        %v3260 = vld [vmem:[%s4] sm:$0xf]
        %v3261 = vld [vmem:[%s4 + $0x4] sm:$0xf]
        %v3262 = vld [vmem:[%s4 + $0x8] sm:$0xf]
        %v3263 = vld [vmem:[%s4 + $0xc] sm:$0xf]
        %v3264 = vld [vmem:[%s4 + $0x10] sm:$0xf]
        %v3265 = vld [vmem:[%s4 + $0x14] sm:$0xf]
        %v3266 = vld [vmem:[%s4 + $0x18] sm:$0xf]
        %v3267 = vld [vmem:[%s4 + $0x1c] sm:$0xf]
        %v3268 = vld [vmem:[%s4 + $0x20] sm:$0xf]
        %v3269 = vld [vmem:[%s4 + $0x24] sm:$0xf]
        %v3270 = vld [vmem:[%s4 + $0x28] sm:$0xf]
        %v3271 = vld [vmem:[%s4 + $0x2c] sm:$0xf]
        %v3272 = vld [vmem:[%s4 + $0x30] sm:$0xf]
        %v3273 = vld [vmem:[%s4 + $0x34] sm:$0xf]
        %v3274 = vld [vmem:[%s4 + $0x38] sm:$0xf]
        %v3275 = vld [vmem:[%s4 + $0x3c] sm:$0xf]
        %v3276 = vld [vmem:[%s4 + $0x40] sm:$0xf]
        %v3277 = vld [vmem:[%s4 + $0x44] sm:$0xf]
        %v3278 = vld [vmem:[%s4 + $0x48] sm:$0xf]
        %v3279 = vld [vmem:[%s4 + $0x4c] sm:$0xf]
        %v3280 = vld [vmem:[%s4 + $0x50] sm:$0xf]
        %v3281 = vld [vmem:[%s4 + $0x54] sm:$0xf]
        %v3282 = vld [vmem:[%s4 + $0x58] sm:$0xf]
        %v3283 = vld [vmem:[%s4 + $0x5c] sm:$0xf]
        %v3284 = vld [vmem:[%s4 + $0x60] sm:$0xf]
        %v3285 = vld [vmem:[%s4 + $0x64] sm:$0xf]
        %v3286 = vld [vmem:[%s4 + $0x68] sm:$0xf]
        %v3287 = vld [vmem:[%s4 + $0x6c] sm:$0xf]
        %v3288 = vld [vmem:[%s4 + $0x70] sm:$0xf]
        %v3289 = vld [vmem:[%s4 + $0x74] sm:$0xf]
        %v3290 = vld [vmem:[%s4 + $0x78] sm:$0xf]
        %v3291 = vld [vmem:[%s4 + $0x7c] sm:$0xf]
        %v3292 = vld [vmem:[%s4 + $0x80] sm:$0xf]
        %v3293 = vld [vmem:[%s4 + $0x84] sm:$0xf]
        %v3294 = vld [vmem:[%s4 + $0x88] sm:$0xf]
        %v3295 = vld [vmem:[%s4 + $0x8c] sm:$0xf]
        %v3296 = vld [vmem:[%s4 + $0x90] sm:$0xf]
        %v3297 = vld [vmem:[%s4 + $0x94] sm:$0xf]
        %v3298 = vld [vmem:[%s4 + $0x98] sm:$0xf]
        %v3299 = vld [vmem:[%s4 + $0x9c] sm:$0xf]
        %v3300 = vld [vmem:[%s4 + $0xa0] sm:$0xf]
        %v3301 = vld [vmem:[%s4 + $0xa4] sm:$0xf]
        %v3302 = vld [vmem:[%s4 + $0xa8] sm:$0xf]
        %v3303 = vld [vmem:[%s4 + $0xac] sm:$0xf]
        %v3304 = vld [vmem:[%s4 + $0xb0] sm:$0xf]
        %v3305 = vld [vmem:[%s4 + $0xb4] sm:$0xf]
        %v3306 = vld [vmem:[%s4 + $0xb8] sm:$0xf]
        %v3307 = vld [vmem:[%s4 + $0xbc] sm:$0xf]
        %v3308 = vld [vmem:[%s4 + $0xc0] sm:$0xf]
        %v3309 = vld [vmem:[%s4 + $0xc4] sm:$0xf]
        %v3310 = vld [vmem:[%s4 + $0xc8] sm:$0xf]
        %v3311 = vld [vmem:[%s4 + $0xcc] sm:$0xf]
        %v3312 = vld [vmem:[%s4 + $0xd0] sm:$0xf]
        %v3313 = vld [vmem:[%s4 + $0xd4] sm:$0xf]
        %v3314 = vld [vmem:[%s4 + $0xd8] sm:$0xf]
        %v3315 = vld [vmem:[%s4 + $0xdc] sm:$0xf]
        %v3316 = vld [vmem:[%s4 + $0xe0] sm:$0xf]
        %v3317 = vld [vmem:[%s4 + $0xe4] sm:$0xf]
        %v3318 = vld [vmem:[%s4 + $0xe8] sm:$0xf]
        %v3319 = vld [vmem:[%s4 + $0xec] sm:$0xf]
        %v3320 = vld [vmem:[%s4 + $0xf0] sm:$0xf]
        %v3321 = vld [vmem:[%s4 + $0xf4] sm:$0xf]
        %v3322 = vld [vmem:[%s4 + $0xf8] sm:$0xf]
        %v3323 = vld [vmem:[%s4 + $0xfc] sm:$0xf]
        %v3324 = vld [vmem:[%s4 + $0x100] sm:$0xf]
        %v3325 = vld [vmem:[%s4 + $0x104] sm:$0xf]
        %v3326 = vld [vmem:[%s4 + $0x108] sm:$0xf]
        %v3327 = vld [vmem:[%s4 + $0x10c] sm:$0xf]
        %v3328 = vld [vmem:[%s4 + $0x110] sm:$0xf]
        %v3329 = vld [vmem:[%s4 + $0x114] sm:$0xf]
        %v3330 = vld [vmem:[%s4 + $0x118] sm:$0xf]
        %v3331 = vld [vmem:[%s4 + $0x11c] sm:$0xf]
        %v3332 = vld [vmem:[%s4 + $0x120] sm:$0xf]
        %v3333 = vld [vmem:[%s4 + $0x124] sm:$0xf]
        %v3334 = vld [vmem:[%s4 + $0x128] sm:$0xf]
        %v3335 = vld [vmem:[%s4 + $0x12c] sm:$0xf]
        %v3336 = vld [vmem:[%s4 + $0x130] sm:$0xf]
        %v3337 = vld [vmem:[%s4 + $0x134] sm:$0xf]
        %v3338 = vld [vmem:[%s4 + $0x138] sm:$0xf]
        %v3339 = vld [vmem:[%s4 + $0x13c] sm:$0xf]
        %v3340 = vld [vmem:[%s4 + $0x140] sm:$0xf]
        %v3341 = vld [vmem:[%s4 + $0x144] sm:$0xf]
        %v3342 = vld [vmem:[%s4 + $0x148] sm:$0xf]
        %v3343 = vld [vmem:[%s4 + $0x14c] sm:$0xf]
        %v3344 = vld [vmem:[%s4 + $0x150] sm:$0xf]
        %v3345 = vld [vmem:[%s4 + $0x154] sm:$0xf]
        %v3346 = vld [vmem:[%s4 + $0x158] sm:$0xf]
        %v3347 = vld [vmem:[%s4 + $0x15c] sm:$0xf]
        %v3348 = vld [vmem:[%s4 + $0x160] sm:$0xf]
        %v3349 = vld [vmem:[%s4 + $0x164] sm:$0xf]
        %v3350 = vld [vmem:[%s4 + $0x168] sm:$0xf]
        %v3351 = vld [vmem:[%s4 + $0x16c] sm:$0xf]
        %v3352 = vld [vmem:[%s4 + $0x170] sm:$0xf]
        %v3353 = vld [vmem:[%s4 + $0x174] sm:$0xf]
        %v3354 = vld [vmem:[%s4 + $0x178] sm:$0xf]
        %v3355 = vld [vmem:[%s4 + $0x17c] sm:$0xf]
        %v3356 = vld [vmem:[%s4 + $0x180] sm:$0xf]
        %v3357 = vld [vmem:[%s4 + $0x184] sm:$0xf]
        %v3358 = vld [vmem:[%s4 + $0x188] sm:$0xf]
        %v3359 = vld [vmem:[%s4 + $0x18c] sm:$0xf]
        %v3360 = vld [vmem:[%s4 + $0x190] sm:$0xf]
        %v3361 = vld [vmem:[%s4 + $0x194] sm:$0xf]
        %v3362 = vld [vmem:[%s4 + $0x198] sm:$0xf]
        %v3363 = vld [vmem:[%s4 + $0x19c] sm:$0xf]
        %v3364 = vld [vmem:[%s4 + $0x1a0] sm:$0xf]
        %v3365 = vld [vmem:[%s4 + $0x1a4] sm:$0xf]
        %v3366 = vld [vmem:[%s4 + $0x1a8] sm:$0xf]
        %v3367 = vld [vmem:[%s4 + $0x1ac] sm:$0xf]
        %v3368 = vld [vmem:[#allocation5] sm:$0xff]
        %v3369 = vld [vmem:[#allocation5 + $0x8] sm:$0xf]
        %v3370 = vld [vmem:[#allocation5 + $0xc] sm:$0xff]
        %v3371 = vld [vmem:[#allocation5 + $0x14] sm:$0xf]
        %v3372 = vld [vmem:[#allocation5 + $0x18] sm:$0xff]
        %v3373 = vld [vmem:[#allocation5 + $0x20] sm:$0xf]
        %v3374 = vld [vmem:[#allocation5 + $0x24] sm:$0xff]
        %v3375 = vld [vmem:[#allocation5 + $0x2c] sm:$0xf]
        %s3376 = scalar_lea.vmem [#allocation5], 12
        %v3377 = vld [vmem:[%s3376] sm:$0xff]
        %v3378 = vld [vmem:[%s3376 + $0x8] sm:$0xf]
        %v3379 = vld [vmem:[%s3376 + $0xc] sm:$0xff]
        %v3380 = vld [vmem:[%s3376 + $0x14] sm:$0xf]
        %v3381 = vld [vmem:[%s3376 + $0x18] sm:$0xff]
        %v3382 = vld [vmem:[%s3376 + $0x20] sm:$0xf]
        %v3383 = vld [vmem:[%s3376 + $0x24] sm:$0xff]
        %v3384 = vld [vmem:[%s3376 + $0x2c] sm:$0xf]
        %s3385 = scalar_lea.vmem [#allocation5], 24
        %v3386 = vld [vmem:[%s3385] sm:$0xff]
        %v3387 = vld [vmem:[%s3385 + $0x8] sm:$0xf]
        %v3388 = vld [vmem:[%s3385 + $0xc] sm:$0xff]
        %v3389 = vld [vmem:[%s3385 + $0x14] sm:$0xf]
        %v3390 = vld [vmem:[%s3385 + $0x18] sm:$0xff]
        %v3391 = vld [vmem:[%s3385 + $0x20] sm:$0xf]
        %v3392 = vld [vmem:[%s3385 + $0x24] sm:$0xff]
        %v3393 = vld [vmem:[%s3385 + $0x2c] sm:$0xf]
        %v3402 = vunpack.c.l.b16 %v3368
        %v3403 = vunpack.c.h.b16 %v3368
        %v3404 = vunpack.c.l.b16 %v3369
        %v3405 = vunpack.c.l.b16 %v3370
        %v3406 = vunpack.c.h.b16 %v3370
        %v3407 = vunpack.c.l.b16 %v3371
        %v3408 = vunpack.c.l.b16 %v3372
        %v3409 = vunpack.c.h.b16 %v3372
        %v3410 = vunpack.c.l.b16 %v3373
        %v3411 = vunpack.c.l.b16 %v3374
        %v3412 = vunpack.c.h.b16 %v3374
        %v3413 = vunpack.c.l.b16 %v3375
        %v3414 = vpack.c.b16 %v3405, %v3402
        %v3415 = vpack.c.b16 %v3406, %v3403
        %v3416 = vpack.c.b16 %v3407, %v3404
        %v3417 = vpack.c.b16 %v3411, %v3408
        %v3418 = vpack.c.b16 %v3412, %v3409
        %v3419 = vpack.c.b16 %v3413, %v3410
        %v3432 = vunpack.c.l.b16 %v3377
        %v3433 = vunpack.c.h.b16 %v3377
        %v3434 = vunpack.c.l.b16 %v3378
        %v3435 = vunpack.c.l.b16 %v3379
        %v3436 = vunpack.c.h.b16 %v3379
        %v3437 = vunpack.c.l.b16 %v3380
        %v3438 = vunpack.c.l.b16 %v3381
        %v3439 = vunpack.c.h.b16 %v3381
        %v3440 = vunpack.c.l.b16 %v3382
        %v3441 = vunpack.c.l.b16 %v3383
        %v3442 = vunpack.c.h.b16 %v3383
        %v3443 = vunpack.c.l.b16 %v3384
        %v3444 = vpack.c.b16 %v3435, %v3432
        %v3445 = vpack.c.b16 %v3436, %v3433
        %v3446 = vpack.c.b16 %v3437, %v3434
        %v3447 = vpack.c.b16 %v3441, %v3438
        %v3448 = vpack.c.b16 %v3442, %v3439
        %v3449 = vpack.c.b16 %v3443, %v3440
        %3450 = vrot.lane.b32.xlu0 %v3444, 32
        %v3451 = vpop.permute.xlu0 %3450
        %3452 = vrot.lane.b32.xlu0 %v3445, 32
        %v3453 = vpop.permute.xlu0 %3452
        %3454 = vrot.lane.b32.xlu0 %v3446, 32
        %v3455 = vpop.permute.xlu0 %3454
        %3456 = vrot.lane.b32.xlu0 %v3447, 32
        %v3457 = vpop.permute.xlu0 %3456
        %3458 = vrot.lane.b32.xlu0 %v3448, 32
        %v3459 = vpop.permute.xlu0 %3458
        %3460 = vrot.lane.b32.xlu0 %v3449, 32
        %v3461 = vpop.permute.xlu0 %3460
        %vm3462 = vcmask 261120
        %v3463 = vsel %vm3462, %v3451, %v3453
        %v3464 = vsel %vm3462, %v3453, %v3455
        %v3465 = vsel %vm3462, %v3457, %v3459
        %v3466 = vsel %vm3462, %v3459, %v3461
        %v3477 = vunpack.c.l.b16 %v3386
        %v3478 = vunpack.c.h.b16 %v3386
        %v3479 = vunpack.c.l.b16 %v3387
        %v3480 = vunpack.c.l.b16 %v3388
        %v3481 = vunpack.c.h.b16 %v3388
        %v3482 = vunpack.c.l.b16 %v3389
        %v3483 = vunpack.c.l.b16 %v3390
        %v3484 = vunpack.c.h.b16 %v3390
        %v3485 = vunpack.c.l.b16 %v3391
        %v3486 = vunpack.c.l.b16 %v3392
        %v3487 = vunpack.c.h.b16 %v3392
        %v3488 = vunpack.c.l.b16 %v3393
        %v3489 = vpack.c.b16 %v3480, %v3477
        %v3490 = vpack.c.b16 %v3481, %v3478
        %v3491 = vpack.c.b16 %v3482, %v3479
        %v3492 = vpack.c.b16 %v3486, %v3483
        %v3493 = vpack.c.b16 %v3487, %v3484
        %v3494 = vpack.c.b16 %v3488, %v3485
        %3495 = vrot.lane.b32.xlu0 %v3489, 64
        %v3496 = vpop.permute.xlu0 %3495
        %3497 = vrot.lane.b32.xlu0 %v3490, 64
        %v3498 = vpop.permute.xlu0 %3497
        %3499 = vrot.lane.b32.xlu0 %v3491, 64
        %v3500 = vpop.permute.xlu0 %3499
        %3501 = vrot.lane.b32.xlu0 %v3492, 64
        %v3502 = vpop.permute.xlu0 %3501
        %3503 = vrot.lane.b32.xlu0 %v3493, 64
        %v3504 = vpop.permute.xlu0 %3503
        %3505 = vrot.lane.b32.xlu0 %v3494, 64
        %v3506 = vpop.permute.xlu0 %3505
        %vm3507 = vcmask 523264
        %v3508 = vsel %vm3507, %v3496, %v3498
        %v3509 = vsel %vm3507, %v3498, %v3500
        %v3510 = vsel %vm3507, %v3502, %v3504
        %v3511 = vsel %vm3507, %v3504, %v3506
        %vm3514 = vcmask 261120
        %v3517 = vsel %vm3514, %v3416, %v3451
        %v3521 = vsel %vm3514, %v3419, %v3457
        %vm3523 = vcmask 523264
        %v3526 = vsel %vm3523, %v3464, %v3496
        %v3530 = vsel %vm3523, %v3466, %v3502
        %v3640 = vunpack.c.l.b16 %v3260
        %v3641 = vunpack.c.l.b16 %v3261
        %v3642 = vunpack.c.l.b16 %v3262
        %v3643 = vunpack.c.l.b16 %v3263
        %v3644 = vunpack.c.l.b16 %v3264
        %v3645 = vunpack.c.l.b16 %v3265
        %v3646 = vunpack.c.l.b16 %v3266
        %v3647 = vunpack.c.l.b16 %v3267
        %v3648 = vunpack.c.l.b16 %v3268
        %v3649 = vunpack.c.l.b16 %v3269
        %v3650 = vunpack.c.l.b16 %v3270
        %v3651 = vunpack.c.l.b16 %v3271
        %v3652 = vunpack.c.l.b16 %v3272
        %v3653 = vunpack.c.l.b16 %v3273
        %v3654 = vunpack.c.l.b16 %v3274
        %v3655 = vunpack.c.l.b16 %v3275
        %v3656 = vunpack.c.l.b16 %v3276
        %v3657 = vunpack.c.l.b16 %v3277
        %v3658 = vunpack.c.l.b16 %v3278
        %v3659 = vunpack.c.l.b16 %v3279
        %v3660 = vunpack.c.l.b16 %v3280
        %v3661 = vunpack.c.l.b16 %v3281
        %v3662 = vunpack.c.l.b16 %v3282
        %v3663 = vunpack.c.l.b16 %v3283
        %v3664 = vunpack.c.l.b16 %v3284
        %v3665 = vunpack.c.l.b16 %v3285
        %v3666 = vunpack.c.l.b16 %v3286
        %v3667 = vunpack.c.l.b16 %v3287
        %v3668 = vunpack.c.l.b16 %v3288
        %v3669 = vunpack.c.l.b16 %v3289
        %v3670 = vunpack.c.l.b16 %v3290
        %v3671 = vunpack.c.l.b16 %v3291
        %v3672 = vunpack.c.l.b16 %v3292
        %v3673 = vunpack.c.l.b16 %v3293
        %v3674 = vunpack.c.l.b16 %v3294
        %v3675 = vunpack.c.l.b16 %v3295
        %v3676 = vunpack.c.l.b16 %v3296
        %v3677 = vunpack.c.l.b16 %v3297
        %v3678 = vunpack.c.l.b16 %v3298
        %v3679 = vunpack.c.l.b16 %v3299
        %v3680 = vunpack.c.l.b16 %v3300
        %v3681 = vunpack.c.l.b16 %v3301
        %v3682 = vunpack.c.l.b16 %v3302
        %v3683 = vunpack.c.l.b16 %v3303
        %v3684 = vunpack.c.l.b16 %v3304
        %v3685 = vunpack.c.l.b16 %v3305
        %v3686 = vunpack.c.l.b16 %v3306
        %v3687 = vunpack.c.l.b16 %v3307
        %v3688 = vunpack.c.l.b16 %v3308
        %v3689 = vunpack.c.l.b16 %v3309
        %v3690 = vunpack.c.l.b16 %v3310
        %v3691 = vunpack.c.l.b16 %v3311
        %v3692 = vunpack.c.l.b16 %v3312
        %v3693 = vunpack.c.l.b16 %v3313
        %v3694 = vunpack.c.l.b16 %v3314
        %v3695 = vunpack.c.l.b16 %v3315
        %v3696 = vunpack.c.l.b16 %v3316
        %v3697 = vunpack.c.l.b16 %v3317
        %v3698 = vunpack.c.l.b16 %v3318
        %v3699 = vunpack.c.l.b16 %v3319
        %v3700 = vunpack.c.l.b16 %v3320
        %v3701 = vunpack.c.l.b16 %v3321
        %v3702 = vunpack.c.l.b16 %v3322
        %v3703 = vunpack.c.l.b16 %v3323
        %v3704 = vunpack.c.l.b16 %v3324
        %v3705 = vunpack.c.l.b16 %v3325
        %v3706 = vunpack.c.l.b16 %v3326
        %v3707 = vunpack.c.l.b16 %v3327
        %v3708 = vunpack.c.l.b16 %v3328
        %v3709 = vunpack.c.l.b16 %v3329
        %v3710 = vunpack.c.l.b16 %v3330
        %v3711 = vunpack.c.l.b16 %v3331
        %v3712 = vunpack.c.l.b16 %v3332
        %v3713 = vunpack.c.l.b16 %v3333
        %v3714 = vunpack.c.l.b16 %v3334
        %v3715 = vunpack.c.l.b16 %v3335
        %v3716 = vunpack.c.l.b16 %v3336
        %v3717 = vunpack.c.l.b16 %v3337
        %v3718 = vunpack.c.l.b16 %v3338
        %v3719 = vunpack.c.l.b16 %v3339
        %v3720 = vunpack.c.l.b16 %v3340
        %v3721 = vunpack.c.l.b16 %v3341
        %v3722 = vunpack.c.l.b16 %v3342
        %v3723 = vunpack.c.l.b16 %v3343
        %v3724 = vunpack.c.l.b16 %v3344
        %v3725 = vunpack.c.l.b16 %v3345
        %v3726 = vunpack.c.l.b16 %v3346
        %v3727 = vunpack.c.l.b16 %v3347
        %v3728 = vunpack.c.l.b16 %v3348
        %v3729 = vunpack.c.l.b16 %v3349
        %v3730 = vunpack.c.l.b16 %v3350
        %v3731 = vunpack.c.l.b16 %v3351
        %v3732 = vunpack.c.l.b16 %v3352
        %v3733 = vunpack.c.l.b16 %v3353
        %v3734 = vunpack.c.l.b16 %v3354
        %v3735 = vunpack.c.l.b16 %v3355
        %v3736 = vunpack.c.l.b16 %v3356
        %v3737 = vunpack.c.l.b16 %v3357
        %v3738 = vunpack.c.l.b16 %v3358
        %v3739 = vunpack.c.l.b16 %v3359
        %v3740 = vunpack.c.l.b16 %v3360
        %v3741 = vunpack.c.l.b16 %v3361
        %v3742 = vunpack.c.l.b16 %v3362
        %v3743 = vunpack.c.l.b16 %v3363
        %v3744 = vunpack.c.l.b16 %v3364
        %v3745 = vunpack.c.l.b16 %v3365
        %v3746 = vunpack.c.l.b16 %v3366
        %v3747 = vunpack.c.l.b16 %v3367
        %v3748 = vpack.c.b16 %v3641, %v3640
        %v3749 = vpack.c.b16 %v3643, %v3642
        %v3750 = vpack.c.b16 %v3645, %v3644
        %v3751 = vpack.c.b16 %v3647, %v3646
        %v3752 = vpack.c.b16 %v3649, %v3648
        %v3753 = vpack.c.b16 %v3651, %v3650
        %v3754 = vpack.c.b16 %v3653, %v3652
        %v3755 = vpack.c.b16 %v3655, %v3654
        %v3756 = vpack.c.b16 %v3657, %v3656
        %v3757 = vpack.c.b16 %v3659, %v3658
        %v3758 = vpack.c.b16 %v3661, %v3660
        %v3759 = vpack.c.b16 %v3663, %v3662
        %v3760 = vpack.c.b16 %v3665, %v3664
        %v3761 = vpack.c.b16 %v3667, %v3666
        %v3762 = vpack.c.b16 %v3669, %v3668
        %v3763 = vpack.c.b16 %v3671, %v3670
        %v3764 = vpack.c.b16 %v3673, %v3672
        %v3765 = vpack.c.b16 %v3675, %v3674
        %v3766 = vpack.c.b16 %v3677, %v3676
        %v3767 = vpack.c.b16 %v3679, %v3678
        %v3768 = vpack.c.b16 %v3681, %v3680
        %v3769 = vpack.c.b16 %v3683, %v3682
        %v3770 = vpack.c.b16 %v3685, %v3684
        %v3771 = vpack.c.b16 %v3687, %v3686
        %v3772 = vpack.c.b16 %v3689, %v3688
        %v3773 = vpack.c.b16 %v3691, %v3690
        %v3774 = vpack.c.b16 %v3693, %v3692
        %v3775 = vpack.c.b16 %v3695, %v3694
        %v3776 = vpack.c.b16 %v3697, %v3696
        %v3777 = vpack.c.b16 %v3699, %v3698
        %v3778 = vpack.c.b16 %v3701, %v3700
        %v3779 = vpack.c.b16 %v3703, %v3702
        %v3780 = vpack.c.b16 %v3705, %v3704
        %v3781 = vpack.c.b16 %v3707, %v3706
        %v3782 = vpack.c.b16 %v3709, %v3708
        %v3783 = vpack.c.b16 %v3711, %v3710
        %v3784 = vpack.c.b16 %v3713, %v3712
        %v3785 = vpack.c.b16 %v3715, %v3714
        %v3786 = vpack.c.b16 %v3717, %v3716
        %v3787 = vpack.c.b16 %v3719, %v3718
        %v3788 = vpack.c.b16 %v3721, %v3720
        %v3789 = vpack.c.b16 %v3723, %v3722
        %v3790 = vpack.c.b16 %v3725, %v3724
        %v3791 = vpack.c.b16 %v3727, %v3726
        %v3792 = vpack.c.b16 %v3729, %v3728
        %v3793 = vpack.c.b16 %v3731, %v3730
        %v3794 = vpack.c.b16 %v3733, %v3732
        %v3795 = vpack.c.b16 %v3735, %v3734
        %v3796 = vpack.c.b16 %v3737, %v3736
        %v3797 = vpack.c.b16 %v3739, %v3738
        %v3798 = vpack.c.b16 %v3741, %v3740
        %v3799 = vpack.c.b16 %v3743, %v3742
        %v3800 = vpack.c.b16 %v3745, %v3744
        %v3801 = vpack.c.b16 %v3747, %v3746
        %vm3856 = vcmask 785408
        %v3858 = vsel %vm3856, %v3509, 0
        %v3861 = vsel %vm3856, %v3511, 0
        %3863 = vmatprep.subr.bf16.mxu0 0
        %3864 = vmatpush1.bf16.msra.mxu0 %v3748
        %3865 = vmatprep.subr.bf16.mxu0 0
        %3866 = vmatpush1.bf16.msra.mxu0 %v3749
        %3867 = vmatprep.subr.bf16.mxu0 0
        %3868 = vmatpush1.bf16.msra.mxu0 %v3750
        %3869 = vmatprep.subr.bf16.mxu0 0
        %3870 = vmatpush1.bf16.msra.mxu0 %v3751
        %3871 = vmatprep.subr.bf16.mxu0 0
        %3872 = vmatpush1.bf16.msra.mxu0 %v3752
        %3873 = vmatprep.subr.bf16.mxu0 0
        %3874 = vmatpush1.bf16.msra.mxu0 %v3753
        %3875 = vmatprep.subr.bf16.mxu0 0
        %3876 = vmatpush1.bf16.msra.mxu0 %v3754
        %3877 = vmatprep.subr.bf16.mxu0 0
        %3878 = vmatpush1.bf16.msra.mxu0 %v3755
        %3879 = vmatprep.subr.bf16.mxu0 0
        %3880 = vmatpush1.bf16.msra.mxu0 %v3756
        %3881 = vmatprep.subr.bf16.mxu0 0
        %3882 = vmatpush1.bf16.msra.mxu0 %v3757
        %3883 = vmatprep.subr.bf16.mxu0 0
        %3884 = vmatpush1.bf16.msra.mxu0 %v3758
        %3885 = vmatprep.subr.bf16.mxu0 0
        %3886 = vmatpush1.bf16.msra.mxu0 %v3759
        %3887 = vmatprep.subr.bf16.mxu0 0
        %3888 = vmatpush1.bf16.msra.mxu0 %v3760
        %3889 = vmatprep.subr.bf16.mxu0 0
        %3890 = vmatpush1.bf16.msra.mxu0 %v3761
        %3891 = vmatprep.subr.bf16.mxu0 0
        %3892 = vmatpush1.bf16.msra.mxu0 %v3762
        %3893 = vmatprep.subr.bf16.mxu0 0
        %3894 = vmatpush1.bf16.msra.mxu0 %v3763
        %3895 = vmatprep.mubr.bf16.mxu0 %v3415
        %3896 = vmatmul.mubr.bf16.gmra.mrb[0].mxu0 %v3414
        %v3897 = vpop.f32.mrb[0].mxu0
        %v3898 = vadd.f32 0.0, %v3897
        %v3899 = vpop.f32.mrb[0].mxu0
        %v3900 = vpop.f32.mrb[0].mxu0
        %v3901 = vadd.f32 0.0, %v3900
        %v3902 = vpop.f32.mrb[0].mxu0
        %3903 = vmatprep.mubr.bf16.mxu0 %v3418
        %3904 = vmatmul.mubr.bf16.gmra.mrb[0].mxu0 %v3417
        %v3905 = vpop.f32.mrb[0].mxu0
        %v3906 = vadd.f32 0.0, %v3905
        %v3907 = vpop.f32.mrb[0].mxu0
        %v3908 = vpop.f32.mrb[0].mxu0
        %v3909 = vadd.f32 0.0, %v3908
        %v3910 = vpop.f32.mrb[0].mxu0
        %3911 = vdwg.mxu0
        %3912 = vmatprep.subr.bf16.mxu0 0
        %3913 = vmatpush1.bf16.msra.mxu0 %v3764
        %3914 = vmatprep.subr.bf16.mxu0 0
        %3915 = vmatpush1.bf16.msra.mxu0 %v3765
        %3916 = vmatprep.subr.bf16.mxu0 0
        %3917 = vmatpush1.bf16.msra.mxu0 %v3766
        %3918 = vmatprep.subr.bf16.mxu0 0
        %3919 = vmatpush1.bf16.msra.mxu0 %v3767
        %3920 = vmatprep.subr.bf16.mxu0 0
        %3921 = vmatpush1.bf16.msra.mxu0 %v3768
        %3922 = vmatprep.subr.bf16.mxu0 0
        %3923 = vmatpush1.bf16.msra.mxu0 %v3769
        %3924 = vmatprep.subr.bf16.mxu0 0
        %3925 = vmatpush1.bf16.msra.mxu0 %v3770
        %3926 = vmatprep.subr.bf16.mxu0 0
        %3927 = vmatpush1.bf16.msra.mxu0 %v3771
        %3928 = vmatprep.subr.bf16.mxu0 0
        %3929 = vmatpush1.bf16.msra.mxu0 %v3772
        %3930 = vmatprep.subr.bf16.mxu0 0
        %3931 = vmatpush1.bf16.msra.mxu0 %v3773
        %3932 = vmatprep.subr.bf16.mxu0 0
        %3933 = vmatpush1.bf16.msra.mxu0 %v3774
        %3934 = vmatprep.subr.bf16.mxu0 0
        %3935 = vmatpush1.bf16.msra.mxu0 %v3775
        %3936 = vmatprep.subr.bf16.mxu0 0
        %3937 = vmatpush1.bf16.msra.mxu0 %v3776
        %3938 = vmatprep.subr.bf16.mxu0 0
        %3939 = vmatpush1.bf16.msra.mxu0 %v3777
        %3940 = vmatprep.subr.bf16.mxu0 0
        %3941 = vmatpush1.bf16.msra.mxu0 %v3778
        %3942 = vmatprep.subr.bf16.mxu0 0
        %3943 = vmatpush1.bf16.msra.mxu0 %v3779
        %3944 = vmatprep.mubr.bf16.mxu0 %v3463
        %3945 = vmatmul.mubr.bf16.gmra.mrb[0].mxu0 %v3517
        %v3946 = vpop.f32.mrb[0].mxu0
        %v3947 = vadd.f32 %v3898, %v3946
        %v3948 = vpop.f32.mrb[0].mxu0
        %v3949 = vpop.f32.mrb[0].mxu0
        %v3950 = vadd.f32 %v3901, %v3949
        %v3951 = vpop.f32.mrb[0].mxu0
        %3952 = vmatprep.mubr.bf16.mxu0 %v3465
        %3953 = vmatmul.mubr.bf16.gmra.mrb[0].mxu0 %v3521
        %v3954 = vpop.f32.mrb[0].mxu0
        %v3955 = vadd.f32 %v3906, %v3954
        %v3956 = vpop.f32.mrb[0].mxu0
        %v3957 = vpop.f32.mrb[0].mxu0
        %v3958 = vadd.f32 %v3909, %v3957
        %v3959 = vpop.f32.mrb[0].mxu0
        %3960 = vdwg.mxu0
        %3961 = vmatprep.subr.bf16.mxu0 0
        %3962 = vmatpush1.bf16.msra.mxu0 %v3780
        %3963 = vmatprep.subr.bf16.mxu0 0
        %3964 = vmatpush1.bf16.msra.mxu0 %v3781
        %3965 = vmatprep.subr.bf16.mxu0 0
        %3966 = vmatpush1.bf16.msra.mxu0 %v3782
        %3967 = vmatprep.subr.bf16.mxu0 0
        %3968 = vmatpush1.bf16.msra.mxu0 %v3783
        %3969 = vmatprep.subr.bf16.mxu0 0
        %3970 = vmatpush1.bf16.msra.mxu0 %v3784
        %3971 = vmatprep.subr.bf16.mxu0 0
        %3972 = vmatpush1.bf16.msra.mxu0 %v3785
        %3973 = vmatprep.subr.bf16.mxu0 0
        %3974 = vmatpush1.bf16.msra.mxu0 %v3786
        %3975 = vmatprep.subr.bf16.mxu0 0
        %3976 = vmatpush1.bf16.msra.mxu0 %v3787
        %3977 = vmatprep.subr.bf16.mxu0 0
        %3978 = vmatpush1.bf16.msra.mxu0 %v3788
        %3979 = vmatprep.subr.bf16.mxu0 0
        %3980 = vmatpush1.bf16.msra.mxu0 %v3789
        %3981 = vmatprep.subr.bf16.mxu0 0
        %3982 = vmatpush1.bf16.msra.mxu0 %v3790
        %3983 = vmatprep.subr.bf16.mxu0 0
        %3984 = vmatpush1.bf16.msra.mxu0 %v3791
        %3985 = vmatprep.subr.bf16.mxu0 0
        %3986 = vmatpush1.bf16.msra.mxu0 %v3792
        %3987 = vmatprep.subr.bf16.mxu0 0
        %3988 = vmatpush1.bf16.msra.mxu0 %v3793
        %3989 = vmatprep.subr.bf16.mxu0 0
        %3990 = vmatpush1.bf16.msra.mxu0 %v3794
        %3991 = vmatprep.subr.bf16.mxu0 0
        %3992 = vmatpush1.bf16.msra.mxu0 %v3795
        %3993 = vmatprep.mubr.bf16.mxu0 %v3508
        %3994 = vmatmul.mubr.bf16.gmra.mrb[0].mxu0 %v3526
        %v3995 = vpop.f32.mrb[0].mxu0
        %v3996 = vadd.f32 %v3947, %v3995
        %v3997 = vpop.f32.mrb[0].mxu0
        %v3998 = vpop.f32.mrb[0].mxu0
        %v3999 = vadd.f32 %v3950, %v3998
        %v4000 = vpop.f32.mrb[0].mxu0
        %4001 = vmatprep.mubr.bf16.mxu0 %v3510
        %4002 = vmatmul.mubr.bf16.gmra.mrb[0].mxu0 %v3530
        %v4003 = vpop.f32.mrb[0].mxu0
        %v4004 = vadd.f32 %v3955, %v4003
        %v4005 = vpop.f32.mrb[0].mxu0
        %v4006 = vpop.f32.mrb[0].mxu0
        %v4007 = vadd.f32 %v3958, %v4006
        %v4008 = vpop.f32.mrb[0].mxu0
        %4009 = vdwg.mxu0
        %4010 = vmatprep.subr.bf16.mxu0 0
        %4011 = vmatpush1.bf16.msra.mxu0 %v3796
        %4012 = vmatprep.subr.bf16.mxu0 0
        %4013 = vmatpush1.bf16.msra.mxu0 %v3797
        %4014 = vmatprep.subr.bf16.mxu0 0
        %4015 = vmatpush1.bf16.msra.mxu0 %v3798
        %4016 = vmatprep.subr.bf16.mxu0 0
        %4017 = vmatpush1.bf16.msra.mxu0 %v3799
        %4018 = vmatprep.subr.bf16.mxu0 0
        %4019 = vmatpush1.bf16.msra.mxu0 %v3800
        %4020 = vmatprep.subr.bf16.mxu0 0
        %4021 = vmatpush1.bf16.msra.mxu0 %v3801
        %4022 = vmatprep.subr.bf16.mxu0 0
        %4023 = vmatpush1.bf16.msra.mxu0 0
        %4024 = vmatprep.subr.bf16.mxu0 0
        %4025 = vmatpush1.bf16.msra.mxu0 0
        %4026 = vmatprep.subr.bf16.mxu0 0
        %4027 = vmatpush1.bf16.msra.mxu0 0
        %4028 = vmatprep.subr.bf16.mxu0 0
        %4029 = vmatpush1.bf16.msra.mxu0 0
        %4030 = vmatprep.subr.bf16.mxu0 0
        %4031 = vmatpush1.bf16.msra.mxu0 0
        %4032 = vmatprep.subr.bf16.mxu0 0
        %4033 = vmatpush1.bf16.msra.mxu0 0
        %4034 = vmatprep.subr.bf16.mxu0 0
        %4035 = vmatpush1.bf16.msra.mxu0 0
        %4036 = vmatprep.subr.bf16.mxu0 0
        %4037 = vmatpush1.bf16.msra.mxu0 0
        %4038 = vmatprep.subr.bf16.mxu0 0
        %4039 = vmatpush1.bf16.msra.mxu0 0
        %4040 = vmatprep.subr.bf16.mxu0 0
        %4041 = vmatpush1.bf16.msra.mxu0 0
        %4042 = vmatprep.mubr.bf16.mxu0 0
        %4043 = vmatmul.mubr.bf16.gmra.mrb[0].mxu0 %v3858
        %v4044 = vpop.f32.mrb[0].mxu0
        %v4045 = vadd.f32 %v3996, %v4044
        %v4046 = vpop.f32.mrb[0].mxu0
        %v4047 = vpop.f32.mrb[0].mxu0
        %v4048 = vadd.f32 %v3999, %v4047
        %v4049 = vpop.f32.mrb[0].mxu0
        %4050 = vmatprep.mubr.bf16.mxu0 0
        %4051 = vmatmul.mubr.bf16.gmra.mrb[0].mxu0 %v3861
        %v4052 = vpop.f32.mrb[0].mxu0
        %v4053 = vadd.f32 %v4004, %v4052
        %v4054 = vpop.f32.mrb[0].mxu0
        %v4055 = vpop.f32.mrb[0].mxu0
        %v4056 = vadd.f32 %v4007, %v4055
        %v4057 = vpop.f32.mrb[0].mxu0
        %4058 = vdwg.mxu0
        %v4059 = vmax.f32 %v4045, 0.0
        %v4060 = vmax.f32 %v4048, 0.0
        %v4061 = vmax.f32 %v4053, 0.0
        %v4062 = vmax.f32 %v4056, 0.0
        %v4067 = vrot.slane %v4059, 7
        %v4068 = vrot.slane %v4060, 7
        %v4069 = vrot.slane %v4061, 7
        %v4070 = vrot.slane %v4062, 7
        %v4075 = vsel %vm460, 0.0, %v4067
        %v4076 = vsel %vm460, 0.0, %v4068
        %v4077 = vsel %vm460, 0.0, %v4069
        %v4078 = vsel %vm460, 0.0, %v4070
        %v4079 = vsel %vm460, %v4067, 0.0
        %v4080 = vsel %vm460, %v4068, 0.0
        %v4081 = vsel %vm460, %v4069, 0.0
        %v4082 = vsel %vm460, %v4070, 0.0
        %4083 = vst.msk [vmem:[#allocation6] sm:$0xff] %vm3514, %v4075
        %vm4084 = vcmask 254976
        %4085 = vst.msk [vmem:[#allocation6 + $0x8] sm:$0x3] %vm4084, %v4079
        %4086 = vst.msk [vmem:[#allocation6 + $0x10] sm:$0xff] %vm3514, %v4076
        %4087 = vst.msk [vmem:[#allocation6 + $0x18] sm:$0x3] %vm4084, %v4080
        %4088 = vst.msk [vmem:[#allocation6 + $0x20] sm:$0xff] %vm3514, %v4077
        %4089 = vst.msk [vmem:[#allocation6 + $0x28] sm:$0x3] %vm4084, %v4081
        %4090 = vst.msk [vmem:[#allocation6 + $0x30] sm:$0xff] %vm3514, %v4078
        %4091 = vst.msk [vmem:[#allocation6 + $0x38] sm:$0x3] %vm4084, %v4082
        %v4092 = vld [vmem:[#allocation9] sm:$0xff]
        %v4093 = vld [vmem:[#allocation9 + $0x8] sm:$0xf]
        %v4094 = vld [vmem:[#allocation9 + $0xc] sm:$0xff]
        %v4095 = vld [vmem:[#allocation9 + $0x14] sm:$0xf]
        %v4096 = vld [vmem:[#allocation9 + $0x18] sm:$0xff]
        %v4097 = vld [vmem:[#allocation9 + $0x20] sm:$0xf]
        %v4098 = vld [vmem:[#allocation9 + $0x24] sm:$0xff]
        %v4099 = vld [vmem:[#allocation9 + $0x2c] sm:$0xf]
        %v4100 = vld [vmem:[#allocation9 + $0x30] sm:$0xff]
        %v4101 = vld [vmem:[#allocation9 + $0x38] sm:$0xf]
        %v4102 = vld [vmem:[#allocation9 + $0x3c] sm:$0xff]
        %v4103 = vld [vmem:[#allocation9 + $0x44] sm:$0xf]
        %v4104 = vld [vmem:[#allocation9 + $0x48] sm:$0xff]
        %v4105 = vld [vmem:[#allocation9 + $0x50] sm:$0xf]
        %v4106 = vld [vmem:[#allocation9 + $0x54] sm:$0xff]
        %v4107 = vld [vmem:[#allocation9 + $0x5c] sm:$0xf]
        %v4108 = vld [vmem:[#allocation9 + $0x60] sm:$0xff]
        %v4109 = vld [vmem:[#allocation9 + $0x68] sm:$0xf]
        %v4110 = vld [vmem:[#allocation9 + $0x6c] sm:$0xff]
        %v4111 = vld [vmem:[#allocation9 + $0x74] sm:$0xf]
        %v4112 = vld [vmem:[#allocation9 + $0x78] sm:$0xff]
        %v4113 = vld [vmem:[#allocation9 + $0x80] sm:$0xf]
        %v4114 = vld [vmem:[#allocation9 + $0x84] sm:$0xff]
        %v4115 = vld [vmem:[#allocation9 + $0x8c] sm:$0xf]
        %v4116 = vld [vmem:[#allocation6] sm:$0xff]
        %v4117 = vld [vmem:[#allocation6 + $0x10] sm:$0xff]
        %v4118 = vld [vmem:[#allocation6 + $0x20] sm:$0xff]
        %v4119 = vld [vmem:[#allocation6 + $0x30] sm:$0xff]
        %v4120 = vld [vmem:[#allocation6 + $0x1] sm:$0xff]
        %v4121 = vld [vmem:[#allocation6 + $0x11] sm:$0xff]
        %v4122 = vld [vmem:[#allocation6 + $0x21] sm:$0xff]
        %v4123 = vld [vmem:[#allocation6 + $0x31] sm:$0xff]
        %v4124 = vld [vmem:[#allocation6 + $0x2] sm:$0xff]
        %v4125 = vld [vmem:[#allocation6 + $0x12] sm:$0xff]
        %v4126 = vld [vmem:[#allocation6 + $0x22] sm:$0xff]
        %v4127 = vld [vmem:[#allocation6 + $0x32] sm:$0xff]
        %4132 = vrot.lane.b32.xlu0 %v4120, 32
        %v4133 = vpop.permute.xlu0 %4132
        %4134 = vrot.lane.b32.xlu0 %v4121, 32
        %v4135 = vpop.permute.xlu0 %4134
        %4136 = vrot.lane.b32.xlu0 %v4122, 32
        %v4137 = vpop.permute.xlu0 %4136
        %4138 = vrot.lane.b32.xlu0 %v4123, 32
        %v4139 = vpop.permute.xlu0 %4138
        %4148 = vrot.lane.b32.xlu0 %v4124, 64
        %v4149 = vpop.permute.xlu0 %4148
        %4150 = vrot.lane.b32.xlu0 %v4125, 64
        %v4151 = vpop.permute.xlu0 %4150
        %4152 = vrot.lane.b32.xlu0 %v4126, 64
        %v4153 = vpop.permute.xlu0 %4152
        %4154 = vrot.lane.b32.xlu0 %v4127, 64
        %v4155 = vpop.permute.xlu0 %4154
        %v4160 = vsel %vm3514, %v4116, %v4133
        %v4161 = vsel %vm3514, %v4117, %v4135
        %v4162 = vsel %vm3514, %v4118, %v4137
        %v4163 = vsel %vm3514, %v4119, %v4139
        %v4164 = vsel %vm3523, %v4160, %v4149
        %v4165 = vsel %vm3523, %v4161, %v4151
        %v4166 = vsel %vm3523, %v4162, %v4153
        %v4167 = vsel %vm3523, %v4163, %v4155
        %v4168 = vpack.c.bf16 %v4165, %v4164
        %v4169 = vpack.c.bf16 %v4167, %v4166
        %v4194 = vunpack.c.l.b16 %v4092
        %v4195 = vunpack.c.h.b16 %v4092
        %v4196 = vunpack.c.l.b16 %v4093
        %v4197 = vunpack.c.l.b16 %v4094
        %v4198 = vunpack.c.h.b16 %v4094
        %v4199 = vunpack.c.l.b16 %v4095
        %v4200 = vunpack.c.l.b16 %v4096
        %v4201 = vunpack.c.h.b16 %v4096
        %v4202 = vunpack.c.l.b16 %v4097
        %v4203 = vunpack.c.l.b16 %v4098
        %v4204 = vunpack.c.h.b16 %v4098
        %v4205 = vunpack.c.l.b16 %v4099
        %v4206 = vunpack.c.l.b16 %v4100
        %v4207 = vunpack.c.h.b16 %v4100
        %v4208 = vunpack.c.l.b16 %v4101
        %v4209 = vunpack.c.l.b16 %v4102
        %v4210 = vunpack.c.h.b16 %v4102
        %v4211 = vunpack.c.l.b16 %v4103
        %v4212 = vunpack.c.l.b16 %v4104
        %v4213 = vunpack.c.h.b16 %v4104
        %v4214 = vunpack.c.l.b16 %v4105
        %v4215 = vunpack.c.l.b16 %v4106
        %v4216 = vunpack.c.h.b16 %v4106
        %v4217 = vunpack.c.l.b16 %v4107
        %v4218 = vunpack.c.l.b16 %v4108
        %v4219 = vunpack.c.h.b16 %v4108
        %v4220 = vunpack.c.l.b16 %v4109
        %v4221 = vunpack.c.l.b16 %v4110
        %v4222 = vunpack.c.h.b16 %v4110
        %v4223 = vunpack.c.l.b16 %v4111
        %v4224 = vunpack.c.l.b16 %v4112
        %v4225 = vunpack.c.h.b16 %v4112
        %v4226 = vunpack.c.l.b16 %v4113
        %v4227 = vunpack.c.l.b16 %v4114
        %v4228 = vunpack.c.h.b16 %v4114
        %v4229 = vunpack.c.l.b16 %v4115
        %v4230 = vpack.c.b16 %v4197, %v4194
        %v4231 = vpack.c.b16 %v4198, %v4195
        %v4232 = vpack.c.b16 %v4199, %v4196
        %v4233 = vpack.c.b16 %v4203, %v4200
        %v4234 = vpack.c.b16 %v4204, %v4201
        %v4235 = vpack.c.b16 %v4205, %v4202
        %v4236 = vpack.c.b16 %v4209, %v4206
        %v4237 = vpack.c.b16 %v4210, %v4207
        %v4238 = vpack.c.b16 %v4211, %v4208
        %v4239 = vpack.c.b16 %v4215, %v4212
        %v4240 = vpack.c.b16 %v4216, %v4213
        %v4241 = vpack.c.b16 %v4217, %v4214
        %v4242 = vpack.c.b16 %v4221, %v4218
        %v4243 = vpack.c.b16 %v4222, %v4219
        %v4244 = vpack.c.b16 %v4223, %v4220
        %v4245 = vpack.c.b16 %v4227, %v4224
        %v4246 = vpack.c.b16 %v4228, %v4225
        %v4247 = vpack.c.b16 %v4229, %v4226
        %v4267 = vsel %vm3856, %v4168, 0
        %v4270 = vsel %vm3856, %v4169, 0
        %4272 = vmatprep.subr.bf16.mxu0 %v4231
        %4273 = vmatpush1.bf16.msra.mxu0 %v4230
        %4274 = vmatprep.subr.bf16.mxu0 %v4234
        %4275 = vmatpush1.bf16.msra.mxu0 %v4233
        %4276 = vmatprep.subr.bf16.mxu0 %v4237
        %4277 = vmatpush1.bf16.msra.mxu0 %v4236
        %4278 = vmatprep.subr.bf16.mxu0 %v4240
        %4279 = vmatpush1.bf16.msra.mxu0 %v4239
        %4280 = vmatprep.subr.bf16.mxu0 %v4243
        %4281 = vmatpush1.bf16.msra.mxu0 %v4242
        %4282 = vmatprep.subr.bf16.mxu0 %v4246
        %4283 = vmatpush1.bf16.msra.mxu0 %v4245
        %4284 = vmatprep.subr.bf16.mxu0 0
        %4285 = vmatpush1.bf16.msra.mxu0 0
        %4286 = vmatprep.subr.bf16.mxu0 0
        %4287 = vmatpush1.bf16.msra.mxu0 0
        %4288 = vmatprep.subr.bf16.mxu0 0
        %4289 = vmatpush1.bf16.msra.mxu0 0
        %4290 = vmatprep.subr.bf16.mxu0 0
        %4291 = vmatpush1.bf16.msra.mxu0 0
        %4292 = vmatprep.subr.bf16.mxu0 0
        %4293 = vmatpush1.bf16.msra.mxu0 0
        %4294 = vmatprep.subr.bf16.mxu0 0
        %4295 = vmatpush1.bf16.msra.mxu0 0
        %4296 = vmatprep.subr.bf16.mxu0 0
        %4297 = vmatpush1.bf16.msra.mxu0 0
        %4298 = vmatprep.subr.bf16.mxu0 0
        %4299 = vmatpush1.bf16.msra.mxu0 0
        %4300 = vmatprep.subr.bf16.mxu0 0
        %4301 = vmatpush1.bf16.msra.mxu0 0
        %4302 = vmatprep.subr.bf16.mxu0 0
        %4303 = vmatpush1.bf16.msra.mxu0 0
        %4304 = vmatprep.mubr.bf16.mxu0 0
        %4305 = vmatmul.mubr.bf16.gmra.mrb[0].mxu0 %v4267
        %v4306 = vpop.f32.mrb[0].mxu0
        %v4307 = vadd.f32 0.0, %v4306
        %v4308 = vpop.f32.mrb[0].mxu0
        %v4309 = vadd.f32 0.0, %v4308
        %v4310 = vpop.f32.mrb[0].mxu0
        %v4311 = vadd.f32 0.0, %v4310
        %v4312 = vpop.f32.mrb[0].mxu0
        %v4313 = vadd.f32 0.0, %v4312
        %4314 = vmatprep.mubr.bf16.mxu0 0
        %4315 = vmatmul.mubr.bf16.gmra.mrb[0].mxu0 %v4270
        %v4316 = vpop.f32.mrb[0].mxu0
        %v4317 = vadd.f32 0.0, %v4316
        %v4318 = vpop.f32.mrb[0].mxu0
        %v4319 = vadd.f32 0.0, %v4318
        %v4320 = vpop.f32.mrb[0].mxu0
        %v4321 = vadd.f32 0.0, %v4320
        %v4322 = vpop.f32.mrb[0].mxu0
        %v4323 = vadd.f32 0.0, %v4322
        %4324 = vdwg.mxu0
        %4325 = vmatprep.subr.bf16.mxu0 0
        %4326 = vmatpush1.bf16.msra.mxu0 %v4232
        %4327 = vmatprep.subr.bf16.mxu0 0
        %4328 = vmatpush1.bf16.msra.mxu0 %v4235
        %4329 = vmatprep.subr.bf16.mxu0 0
        %4330 = vmatpush1.bf16.msra.mxu0 %v4238
        %4331 = vmatprep.subr.bf16.mxu0 0
        %4332 = vmatpush1.bf16.msra.mxu0 %v4241
        %4333 = vmatprep.subr.bf16.mxu0 0
        %4334 = vmatpush1.bf16.msra.mxu0 %v4244
        %4335 = vmatprep.subr.bf16.mxu0 0
        %4336 = vmatpush1.bf16.msra.mxu0 %v4247
        %4337 = vmatprep.subr.bf16.mxu0 0
        %4338 = vmatpush1.bf16.msra.mxu0 0
        %4339 = vmatprep.subr.bf16.mxu0 0
        %4340 = vmatpush1.bf16.msra.mxu0 0
        %4341 = vmatprep.subr.bf16.mxu0 0
        %4342 = vmatpush1.bf16.msra.mxu0 0
        %4343 = vmatprep.subr.bf16.mxu0 0
        %4344 = vmatpush1.bf16.msra.mxu0 0
        %4345 = vmatprep.subr.bf16.mxu0 0
        %4346 = vmatpush1.bf16.msra.mxu0 0
        %4347 = vmatprep.subr.bf16.mxu0 0
        %4348 = vmatpush1.bf16.msra.mxu0 0
        %4349 = vmatprep.subr.bf16.mxu0 0
        %4350 = vmatpush1.bf16.msra.mxu0 0
        %4351 = vmatprep.subr.bf16.mxu0 0
        %4352 = vmatpush1.bf16.msra.mxu0 0
        %4353 = vmatprep.subr.bf16.mxu0 0
        %4354 = vmatpush1.bf16.msra.mxu0 0
        %4355 = vmatprep.subr.bf16.mxu0 0
        %4356 = vmatpush1.bf16.msra.mxu0 0
        %4357 = vmatprep.mubr.bf16.mxu0 0
        %4358 = vmatmul.mubr.bf16.gmra.mrb[0].mxu0 %v4267
        %v4359 = vpop.f32.mrb[0].mxu0
        %v4360 = vadd.f32 0.0, %v4359
        %v4361 = vpop.f32.mrb[0].mxu0
        %v4362 = vpop.f32.mrb[0].mxu0
        %v4363 = vadd.f32 0.0, %v4362
        %v4364 = vpop.f32.mrb[0].mxu0
        %4365 = vmatprep.mubr.bf16.mxu0 0
        %4366 = vmatmul.mubr.bf16.gmra.mrb[0].mxu0 %v4270
        %v4367 = vpop.f32.mrb[0].mxu0
        %v4368 = vadd.f32 0.0, %v4367
        %v4369 = vpop.f32.mrb[0].mxu0
        %v4370 = vpop.f32.mrb[0].mxu0
        %v4371 = vadd.f32 0.0, %v4370
        %v4372 = vpop.f32.mrb[0].mxu0
        %4373 = vdwg.mxu0
        %v4374 = vld [vmem:[#allocation11] sm:$0x7]
        %v4376 = vlaneseq
        %v4377 = vshrl.u32 %v4376, 7
        %v4378 = vsub.s32 0, %v4377
        %v4379 = vrot.slane %v4374, %v4378
        %v4380 = vlaneseq
        %v4381 = vshrl.u32 %v4380, 7
        %v4382 = vsub.s32 1, %v4381
        %v4383 = vrot.slane %v4374, %v4382
        %v4384 = vlaneseq
        %v4385 = vshrl.u32 %v4384, 7
        %v4386 = vsub.s32 2, %v4385
        %v4387 = vrot.slane %v4374, %v4386
        %v4391 = vmul.f32 %v4307, %v4379
        %v4392 = vmul.f32 %v4309, %v4383
        %v4393 = vmul.f32 %v4360, %v4387
        %v4394 = vmul.f32 %v4311, %v4379
        %v4395 = vmul.f32 %v4313, %v4383
        %v4396 = vmul.f32 %v4363, %v4387
        %v4397 = vmul.f32 %v4317, %v4379
        %v4398 = vmul.f32 %v4319, %v4383
        %v4399 = vmul.f32 %v4368, %v4387
        %v4400 = vmul.f32 %v4321, %v4379
        %v4401 = vmul.f32 %v4323, %v4383
        %v4402 = vmul.f32 %v4371, %v4387
        %v4403 = vld [vmem:[%s10] sm:$0x7]
        %v4405 = vlaneseq
        %v4406 = vshrl.u32 %v4405, 7
        %v4407 = vsub.s32 0, %v4406
        %v4408 = vrot.slane %v4403, %v4407
        %v4409 = vlaneseq
        %v4410 = vshrl.u32 %v4409, 7
        %v4411 = vsub.s32 1, %v4410
        %v4412 = vrot.slane %v4403, %v4411
        %v4413 = vlaneseq
        %v4414 = vshrl.u32 %v4413, 7
        %v4415 = vsub.s32 2, %v4414
        %v4416 = vrot.slane %v4403, %v4415
        %v4420 = vadd.f32 %v4391, %v4408
        %v4421 = vadd.f32 %v4392, %v4412
        %v4422 = vadd.f32 %v4393, %v4416
        %v4423 = vadd.f32 %v4394, %v4408
        %v4424 = vadd.f32 %v4395, %v4412
        %v4425 = vadd.f32 %v4396, %v4416
        %v4426 = vadd.f32 %v4397, %v4408
        %v4427 = vadd.f32 %v4398, %v4412
        %v4428 = vadd.f32 %v4399, %v4416
        %v4429 = vadd.f32 %v4400, %v4408
        %v4430 = vadd.f32 %v4401, %v4412
        %v4431 = vadd.f32 %v4402, %v4416
        %v4432 = vmax.f32 %v4420, 0.0
        %v4433 = vmax.f32 %v4421, 0.0
        %v4434 = vmax.f32 %v4422, 0.0
        %v4435 = vmax.f32 %v4423, 0.0
        %v4436 = vmax.f32 %v4424, 0.0
        %v4437 = vmax.f32 %v4425, 0.0
        %v4438 = vmax.f32 %v4426, 0.0
        %v4439 = vmax.f32 %v4427, 0.0
        %v4440 = vmax.f32 %v4428, 0.0
        %v4441 = vmax.f32 %v4429, 0.0
        %v4442 = vmax.f32 %v4430, 0.0
        %v4443 = vmax.f32 %v4431, 0.0
        %v4444 = vpack.c.bf16 %v4432, %v4432
        %v4445 = vpack.c.bf16 %v4433, %v4433
        %v4446 = vpack.c.bf16 %v4434, %v4434
        %v4447 = vpack.c.bf16 %v4435, %v4435
        %v4448 = vpack.c.bf16 %v4436, %v4436
        %v4449 = vpack.c.bf16 %v4437, %v4437
        %v4450 = vpack.c.bf16 %v4438, %v4438
        %v4451 = vpack.c.bf16 %v4439, %v4439
        %v4452 = vpack.c.bf16 %v4440, %v4440
        %v4453 = vpack.c.bf16 %v4441, %v4441
        %v4454 = vpack.c.bf16 %v4442, %v4442
        %v4455 = vpack.c.bf16 %v4443, %v4443
        %v4468 = vunpack.c.l.b16 %v4444
        %v4469 = vunpack.c.l.b16 %v4445
        %v4470 = vunpack.c.l.b16 %v4446
        %v4471 = vunpack.c.l.b16 %v4447
        %v4472 = vunpack.c.l.b16 %v4448
        %v4473 = vunpack.c.l.b16 %v4449
        %v4474 = vunpack.c.l.b16 %v4450
        %v4475 = vunpack.c.l.b16 %v4451
        %v4476 = vunpack.c.l.b16 %v4452
        %v4477 = vunpack.c.l.b16 %v4453
        %v4478 = vunpack.c.l.b16 %v4454
        %v4479 = vunpack.c.l.b16 %v4455
        %v4480 = vpack.c.b16 %v4469, %v4468
        %v4481 = vpack.c.b16 %v4470, %v4470
        %v4482 = vpack.c.b16 %v4472, %v4471
        %v4483 = vpack.c.b16 %v4473, %v4473
        %v4484 = vpack.c.b16 %v4475, %v4474
        %v4485 = vpack.c.b16 %v4476, %v4476
        %v4486 = vpack.c.b16 %v4478, %v4477
        %v4487 = vpack.c.b16 %v4479, %v4479
        %4496 = vst [vmem:[#allocation7] sm:$0xff] %v3229
        %4497 = vst.msk [vmem:[#allocation7 + $0x8] sm:$0xf] %vm3248, %v3229
        %4498 = vst [vmem:[#allocation7 + $0xc] sm:$0xff] %v4480
        %4499 = vst.msk [vmem:[#allocation7 + $0x14] sm:$0xf] %vm3248, %v4481
        %4500 = vst [vmem:[#allocation7 + $0x18] sm:$0xff] %v4482
        %4501 = vst.msk [vmem:[#allocation7 + $0x20] sm:$0xf] %vm3248, %v4483
        %4502 = vst [vmem:[#allocation7 + $0x24] sm:$0xff] %v4484
        %4503 = vst.msk [vmem:[#allocation7 + $0x2c] sm:$0xf] %vm3248, %v4485
        %4504 = vst [vmem:[#allocation7 + $0x30] sm:$0xff] %v4486
        %4505 = vst.msk [vmem:[#allocation7 + $0x38] sm:$0xf] %vm3248, %v4487
        %4506 = vst [vmem:[#allocation7 + $0x3c] sm:$0xff] %v3229
        %4507 = vst.msk [vmem:[#allocation7 + $0x44] sm:$0xf] %vm3248, %v3229
        %v4508 = vld [vmem:[%s6] sm:$0xf]
        %v4509 = vld [vmem:[%s6 + $0x4] sm:$0xf]
        %v4510 = vld [vmem:[%s6 + $0x8] sm:$0xf]
        %v4511 = vld [vmem:[%s6 + $0xc] sm:$0xf]
        %v4512 = vld [vmem:[%s6 + $0x10] sm:$0xf]
        %v4513 = vld [vmem:[%s6 + $0x14] sm:$0xf]
        %v4514 = vld [vmem:[%s6 + $0x18] sm:$0xf]
        %v4515 = vld [vmem:[%s6 + $0x1c] sm:$0xf]
        %v4516 = vld [vmem:[%s6 + $0x20] sm:$0xf]
        %v4517 = vld [vmem:[%s6 + $0x24] sm:$0xf]
        %v4518 = vld [vmem:[%s6 + $0x28] sm:$0xf]
        %v4519 = vld [vmem:[%s6 + $0x2c] sm:$0xf]
        %v4520 = vld [vmem:[%s6 + $0x30] sm:$0xf]
        %v4521 = vld [vmem:[%s6 + $0x34] sm:$0xf]
        %v4522 = vld [vmem:[%s6 + $0x38] sm:$0xf]
        %v4523 = vld [vmem:[%s6 + $0x3c] sm:$0xf]
        %v4524 = vld [vmem:[%s6 + $0x40] sm:$0xf]
        %v4525 = vld [vmem:[%s6 + $0x44] sm:$0xf]
        %v4526 = vld [vmem:[%s6 + $0x48] sm:$0xf]
        %v4527 = vld [vmem:[%s6 + $0x4c] sm:$0xf]
        %v4528 = vld [vmem:[%s6 + $0x50] sm:$0xf]
        %v4529 = vld [vmem:[%s6 + $0x54] sm:$0xf]
        %v4530 = vld [vmem:[%s6 + $0x58] sm:$0xf]
        %v4531 = vld [vmem:[%s6 + $0x5c] sm:$0xf]
        %v4532 = vld [vmem:[%s6 + $0x60] sm:$0xf]
        %v4533 = vld [vmem:[%s6 + $0x64] sm:$0xf]
        %v4534 = vld [vmem:[%s6 + $0x68] sm:$0xf]
        %v4535 = vld [vmem:[%s6 + $0x6c] sm:$0xf]
        %v4536 = vld [vmem:[%s6 + $0x70] sm:$0xf]
        %v4537 = vld [vmem:[%s6 + $0x74] sm:$0xf]
        %v4538 = vld [vmem:[%s6 + $0x78] sm:$0xf]
        %v4539 = vld [vmem:[%s6 + $0x7c] sm:$0xf]
        %v4540 = vld [vmem:[%s6 + $0x80] sm:$0xf]
        %v4541 = vld [vmem:[%s6 + $0x84] sm:$0xf]
        %v4542 = vld [vmem:[%s6 + $0x88] sm:$0xf]
        %v4543 = vld [vmem:[%s6 + $0x8c] sm:$0xf]
        %v4544 = vld [vmem:[%s6 + $0x90] sm:$0xf]
        %v4545 = vld [vmem:[%s6 + $0x94] sm:$0xf]
        %v4546 = vld [vmem:[%s6 + $0x98] sm:$0xf]
        %v4547 = vld [vmem:[%s6 + $0x9c] sm:$0xf]
        %v4548 = vld [vmem:[%s6 + $0xa0] sm:$0xf]
        %v4549 = vld [vmem:[%s6 + $0xa4] sm:$0xf]
        %v4550 = vld [vmem:[%s6 + $0xa8] sm:$0xf]
        %v4551 = vld [vmem:[%s6 + $0xac] sm:$0xf]
        %v4552 = vld [vmem:[%s6 + $0xb0] sm:$0xf]
        %v4553 = vld [vmem:[%s6 + $0xb4] sm:$0xf]
        %v4554 = vld [vmem:[%s6 + $0xb8] sm:$0xf]
        %v4555 = vld [vmem:[%s6 + $0xbc] sm:$0xf]
        %v4556 = vld [vmem:[%s6 + $0xc0] sm:$0xf]
        %v4557 = vld [vmem:[%s6 + $0xc4] sm:$0xf]
        %v4558 = vld [vmem:[%s6 + $0xc8] sm:$0xf]
        %v4559 = vld [vmem:[%s6 + $0xcc] sm:$0xf]
        %v4560 = vld [vmem:[%s6 + $0xd0] sm:$0xf]
        %v4561 = vld [vmem:[%s6 + $0xd4] sm:$0xf]
        %v4562 = vld [vmem:[%s6 + $0xd8] sm:$0xf]
        %v4563 = vld [vmem:[%s6 + $0xdc] sm:$0xf]
        %v4564 = vld [vmem:[%s6 + $0xe0] sm:$0xf]
        %v4565 = vld [vmem:[%s6 + $0xe4] sm:$0xf]
        %v4566 = vld [vmem:[%s6 + $0xe8] sm:$0xf]
        %v4567 = vld [vmem:[%s6 + $0xec] sm:$0xf]
        %v4568 = vld [vmem:[%s6 + $0xf0] sm:$0xf]
        %v4569 = vld [vmem:[%s6 + $0xf4] sm:$0xf]
        %v4570 = vld [vmem:[%s6 + $0xf8] sm:$0xf]
        %v4571 = vld [vmem:[%s6 + $0xfc] sm:$0xf]
        %v4572 = vld [vmem:[%s6 + $0x100] sm:$0xf]
        %v4573 = vld [vmem:[%s6 + $0x104] sm:$0xf]
        %v4574 = vld [vmem:[%s6 + $0x108] sm:$0xf]
        %v4575 = vld [vmem:[%s6 + $0x10c] sm:$0xf]
        %v4576 = vld [vmem:[%s6 + $0x110] sm:$0xf]
        %v4577 = vld [vmem:[%s6 + $0x114] sm:$0xf]
        %v4578 = vld [vmem:[%s6 + $0x118] sm:$0xf]
        %v4579 = vld [vmem:[%s6 + $0x11c] sm:$0xf]
        %v4580 = vld [vmem:[%s6 + $0x120] sm:$0xf]
        %v4581 = vld [vmem:[%s6 + $0x124] sm:$0xf]
        %v4582 = vld [vmem:[%s6 + $0x128] sm:$0xf]
        %v4583 = vld [vmem:[%s6 + $0x12c] sm:$0xf]
        %v4584 = vld [vmem:[%s6 + $0x130] sm:$0xf]
        %v4585 = vld [vmem:[%s6 + $0x134] sm:$0xf]
        %v4586 = vld [vmem:[%s6 + $0x138] sm:$0xf]
        %v4587 = vld [vmem:[%s6 + $0x13c] sm:$0xf]
        %v4588 = vld [vmem:[%s6 + $0x140] sm:$0xf]
        %v4589 = vld [vmem:[%s6 + $0x144] sm:$0xf]
        %v4590 = vld [vmem:[%s6 + $0x148] sm:$0xf]
        %v4591 = vld [vmem:[%s6 + $0x14c] sm:$0xf]
        %v4592 = vld [vmem:[%s6 + $0x150] sm:$0xf]
        %v4593 = vld [vmem:[%s6 + $0x154] sm:$0xf]
        %v4594 = vld [vmem:[%s6 + $0x158] sm:$0xf]
        %v4595 = vld [vmem:[%s6 + $0x15c] sm:$0xf]
        %v4596 = vld [vmem:[%s6 + $0x160] sm:$0xf]
        %v4597 = vld [vmem:[%s6 + $0x164] sm:$0xf]
        %v4598 = vld [vmem:[%s6 + $0x168] sm:$0xf]
        %v4599 = vld [vmem:[%s6 + $0x16c] sm:$0xf]
        %v4600 = vld [vmem:[%s6 + $0x170] sm:$0xf]
        %v4601 = vld [vmem:[%s6 + $0x174] sm:$0xf]
        %v4602 = vld [vmem:[%s6 + $0x178] sm:$0xf]
        %v4603 = vld [vmem:[%s6 + $0x17c] sm:$0xf]
        %v4604 = vld [vmem:[%s6 + $0x180] sm:$0xf]
        %v4605 = vld [vmem:[%s6 + $0x184] sm:$0xf]
        %v4606 = vld [vmem:[%s6 + $0x188] sm:$0xf]
        %v4607 = vld [vmem:[%s6 + $0x18c] sm:$0xf]
        %v4608 = vld [vmem:[%s6 + $0x190] sm:$0xf]
        %v4609 = vld [vmem:[%s6 + $0x194] sm:$0xf]
        %v4610 = vld [vmem:[%s6 + $0x198] sm:$0xf]
        %v4611 = vld [vmem:[%s6 + $0x19c] sm:$0xf]
        %v4612 = vld [vmem:[%s6 + $0x1a0] sm:$0xf]
        %v4613 = vld [vmem:[%s6 + $0x1a4] sm:$0xf]
        %v4614 = vld [vmem:[%s6 + $0x1a8] sm:$0xf]
        %v4615 = vld [vmem:[%s6 + $0x1ac] sm:$0xf]
        %v4616 = vld [vmem:[#allocation7] sm:$0xff]
        %v4617 = vld [vmem:[#allocation7 + $0x8] sm:$0xf]
        %v4618 = vld [vmem:[#allocation7 + $0xc] sm:$0xff]
        %v4619 = vld [vmem:[#allocation7 + $0x14] sm:$0xf]
        %v4620 = vld [vmem:[#allocation7 + $0x18] sm:$0xff]
        %v4621 = vld [vmem:[#allocation7 + $0x20] sm:$0xf]
        %v4622 = vld [vmem:[#allocation7 + $0x24] sm:$0xff]
        %v4623 = vld [vmem:[#allocation7 + $0x2c] sm:$0xf]
        %s4624 = scalar_lea.vmem [#allocation7], 12
        %v4625 = vld [vmem:[%s4624] sm:$0xff]
        %v4626 = vld [vmem:[%s4624 + $0x8] sm:$0xf]
        %v4627 = vld [vmem:[%s4624 + $0xc] sm:$0xff]
        %v4628 = vld [vmem:[%s4624 + $0x14] sm:$0xf]
        %v4629 = vld [vmem:[%s4624 + $0x18] sm:$0xff]
        %v4630 = vld [vmem:[%s4624 + $0x20] sm:$0xf]
        %v4631 = vld [vmem:[%s4624 + $0x24] sm:$0xff]
        %v4632 = vld [vmem:[%s4624 + $0x2c] sm:$0xf]
        %s4633 = scalar_lea.vmem [#allocation7], 24
        %v4634 = vld [vmem:[%s4633] sm:$0xff]
        %v4635 = vld [vmem:[%s4633 + $0x8] sm:$0xf]
        %v4636 = vld [vmem:[%s4633 + $0xc] sm:$0xff]
        %v4637 = vld [vmem:[%s4633 + $0x14] sm:$0xf]
        %v4638 = vld [vmem:[%s4633 + $0x18] sm:$0xff]
        %v4639 = vld [vmem:[%s4633 + $0x20] sm:$0xf]
        %v4640 = vld [vmem:[%s4633 + $0x24] sm:$0xff]
        %v4641 = vld [vmem:[%s4633 + $0x2c] sm:$0xf]
        %v4650 = vunpack.c.l.b16 %v4616
        %v4651 = vunpack.c.h.b16 %v4616
        %v4652 = vunpack.c.l.b16 %v4617
        %v4653 = vunpack.c.l.b16 %v4618
        %v4654 = vunpack.c.h.b16 %v4618
        %v4655 = vunpack.c.l.b16 %v4619
        %v4656 = vunpack.c.l.b16 %v4620
        %v4657 = vunpack.c.h.b16 %v4620
        %v4658 = vunpack.c.l.b16 %v4621
        %v4659 = vunpack.c.l.b16 %v4622
        %v4660 = vunpack.c.h.b16 %v4622
        %v4661 = vunpack.c.l.b16 %v4623
        %v4662 = vpack.c.b16 %v4653, %v4650
        %v4663 = vpack.c.b16 %v4654, %v4651
        %v4664 = vpack.c.b16 %v4655, %v4652
        %v4665 = vpack.c.b16 %v4659, %v4656
        %v4666 = vpack.c.b16 %v4660, %v4657
        %v4667 = vpack.c.b16 %v4661, %v4658
        %v4680 = vunpack.c.l.b16 %v4625
        %v4681 = vunpack.c.h.b16 %v4625
        %v4682 = vunpack.c.l.b16 %v4626
        %v4683 = vunpack.c.l.b16 %v4627
        %v4684 = vunpack.c.h.b16 %v4627
        %v4685 = vunpack.c.l.b16 %v4628
        %v4686 = vunpack.c.l.b16 %v4629
        %v4687 = vunpack.c.h.b16 %v4629
        %v4688 = vunpack.c.l.b16 %v4630
        %v4689 = vunpack.c.l.b16 %v4631
        %v4690 = vunpack.c.h.b16 %v4631
        %v4691 = vunpack.c.l.b16 %v4632
        %v4692 = vpack.c.b16 %v4683, %v4680
        %v4693 = vpack.c.b16 %v4684, %v4681
        %v4694 = vpack.c.b16 %v4685, %v4682
        %v4695 = vpack.c.b16 %v4689, %v4686
        %v4696 = vpack.c.b16 %v4690, %v4687
        %v4697 = vpack.c.b16 %v4691, %v4688
        %4698 = vrot.lane.b32.xlu0 %v4692, 32
        %v4699 = vpop.permute.xlu0 %4698
        %4700 = vrot.lane.b32.xlu0 %v4693, 32
        %v4701 = vpop.permute.xlu0 %4700
        %4702 = vrot.lane.b32.xlu0 %v4694, 32
        %v4703 = vpop.permute.xlu0 %4702
        %4704 = vrot.lane.b32.xlu0 %v4695, 32
        %v4705 = vpop.permute.xlu0 %4704
        %4706 = vrot.lane.b32.xlu0 %v4696, 32
        %v4707 = vpop.permute.xlu0 %4706
        %4708 = vrot.lane.b32.xlu0 %v4697, 32
        %v4709 = vpop.permute.xlu0 %4708
        %v4710 = vsel %vm3462, %v4699, %v4701
        %v4711 = vsel %vm3462, %v4701, %v4703
        %v4712 = vsel %vm3462, %v4705, %v4707
        %v4713 = vsel %vm3462, %v4707, %v4709
        %v4724 = vunpack.c.l.b16 %v4634
        %v4725 = vunpack.c.h.b16 %v4634
        %v4726 = vunpack.c.l.b16 %v4635
        %v4727 = vunpack.c.l.b16 %v4636
        %v4728 = vunpack.c.h.b16 %v4636
        %v4729 = vunpack.c.l.b16 %v4637
        %v4730 = vunpack.c.l.b16 %v4638
        %v4731 = vunpack.c.h.b16 %v4638
        %v4732 = vunpack.c.l.b16 %v4639
        %v4733 = vunpack.c.l.b16 %v4640
        %v4734 = vunpack.c.h.b16 %v4640
        %v4735 = vunpack.c.l.b16 %v4641
        %v4736 = vpack.c.b16 %v4727, %v4724
        %v4737 = vpack.c.b16 %v4728, %v4725
        %v4738 = vpack.c.b16 %v4729, %v4726
        %v4739 = vpack.c.b16 %v4733, %v4730
        %v4740 = vpack.c.b16 %v4734, %v4731
        %v4741 = vpack.c.b16 %v4735, %v4732
        %4742 = vrot.lane.b32.xlu0 %v4736, 64
        %v4743 = vpop.permute.xlu0 %4742
        %4744 = vrot.lane.b32.xlu0 %v4737, 64
        %v4745 = vpop.permute.xlu0 %4744
        %4746 = vrot.lane.b32.xlu0 %v4738, 64
        %v4747 = vpop.permute.xlu0 %4746
        %4748 = vrot.lane.b32.xlu0 %v4739, 64
        %v4749 = vpop.permute.xlu0 %4748
        %4750 = vrot.lane.b32.xlu0 %v4740, 64
        %v4751 = vpop.permute.xlu0 %4750
        %4752 = vrot.lane.b32.xlu0 %v4741, 64
        %v4753 = vpop.permute.xlu0 %4752
        %v4754 = vsel %vm3507, %v4743, %v4745
        %v4755 = vsel %vm3507, %v4745, %v4747
        %v4756 = vsel %vm3507, %v4749, %v4751
        %v4757 = vsel %vm3507, %v4751, %v4753
        %v4762 = vsel %vm3514, %v4664, %v4699
        %v4766 = vsel %vm3514, %v4667, %v4705
        %v4770 = vsel %vm3523, %v4711, %v4743
        %v4774 = vsel %vm3523, %v4713, %v4749
        %v4884 = vunpack.c.l.b16 %v4508
        %v4885 = vunpack.c.l.b16 %v4509
        %v4886 = vunpack.c.l.b16 %v4510
        %v4887 = vunpack.c.l.b16 %v4511
        %v4888 = vunpack.c.l.b16 %v4512
        %v4889 = vunpack.c.l.b16 %v4513
        %v4890 = vunpack.c.l.b16 %v4514
        %v4891 = vunpack.c.l.b16 %v4515
        %v4892 = vunpack.c.l.b16 %v4516
        %v4893 = vunpack.c.l.b16 %v4517
        %v4894 = vunpack.c.l.b16 %v4518
        %v4895 = vunpack.c.l.b16 %v4519
        %v4896 = vunpack.c.l.b16 %v4520
        %v4897 = vunpack.c.l.b16 %v4521
        %v4898 = vunpack.c.l.b16 %v4522
        %v4899 = vunpack.c.l.b16 %v4523
        %v4900 = vunpack.c.l.b16 %v4524
        %v4901 = vunpack.c.l.b16 %v4525
        %v4902 = vunpack.c.l.b16 %v4526
        %v4903 = vunpack.c.l.b16 %v4527
        %v4904 = vunpack.c.l.b16 %v4528
        %v4905 = vunpack.c.l.b16 %v4529
        %v4906 = vunpack.c.l.b16 %v4530
        %v4907 = vunpack.c.l.b16 %v4531
        %v4908 = vunpack.c.l.b16 %v4532
        %v4909 = vunpack.c.l.b16 %v4533
        %v4910 = vunpack.c.l.b16 %v4534
        %v4911 = vunpack.c.l.b16 %v4535
        %v4912 = vunpack.c.l.b16 %v4536
        %v4913 = vunpack.c.l.b16 %v4537
        %v4914 = vunpack.c.l.b16 %v4538
        %v4915 = vunpack.c.l.b16 %v4539
        %v4916 = vunpack.c.l.b16 %v4540
        %v4917 = vunpack.c.l.b16 %v4541
        %v4918 = vunpack.c.l.b16 %v4542
        %v4919 = vunpack.c.l.b16 %v4543
        %v4920 = vunpack.c.l.b16 %v4544
        %v4921 = vunpack.c.l.b16 %v4545
        %v4922 = vunpack.c.l.b16 %v4546
        %v4923 = vunpack.c.l.b16 %v4547
        %v4924 = vunpack.c.l.b16 %v4548
        %v4925 = vunpack.c.l.b16 %v4549
        %v4926 = vunpack.c.l.b16 %v4550
        %v4927 = vunpack.c.l.b16 %v4551
        %v4928 = vunpack.c.l.b16 %v4552
        %v4929 = vunpack.c.l.b16 %v4553
        %v4930 = vunpack.c.l.b16 %v4554
        %v4931 = vunpack.c.l.b16 %v4555
        %v4932 = vunpack.c.l.b16 %v4556
        %v4933 = vunpack.c.l.b16 %v4557
        %v4934 = vunpack.c.l.b16 %v4558
        %v4935 = vunpack.c.l.b16 %v4559
        %v4936 = vunpack.c.l.b16 %v4560
        %v4937 = vunpack.c.l.b16 %v4561
        %v4938 = vunpack.c.l.b16 %v4562
        %v4939 = vunpack.c.l.b16 %v4563
        %v4940 = vunpack.c.l.b16 %v4564
        %v4941 = vunpack.c.l.b16 %v4565
        %v4942 = vunpack.c.l.b16 %v4566
        %v4943 = vunpack.c.l.b16 %v4567
        %v4944 = vunpack.c.l.b16 %v4568
        %v4945 = vunpack.c.l.b16 %v4569
        %v4946 = vunpack.c.l.b16 %v4570
        %v4947 = vunpack.c.l.b16 %v4571
        %v4948 = vunpack.c.l.b16 %v4572
        %v4949 = vunpack.c.l.b16 %v4573
        %v4950 = vunpack.c.l.b16 %v4574
        %v4951 = vunpack.c.l.b16 %v4575
        %v4952 = vunpack.c.l.b16 %v4576
        %v4953 = vunpack.c.l.b16 %v4577
        %v4954 = vunpack.c.l.b16 %v4578
        %v4955 = vunpack.c.l.b16 %v4579
        %v4956 = vunpack.c.l.b16 %v4580
        %v4957 = vunpack.c.l.b16 %v4581
        %v4958 = vunpack.c.l.b16 %v4582
        %v4959 = vunpack.c.l.b16 %v4583
        %v4960 = vunpack.c.l.b16 %v4584
        %v4961 = vunpack.c.l.b16 %v4585
        %v4962 = vunpack.c.l.b16 %v4586
        %v4963 = vunpack.c.l.b16 %v4587
        %v4964 = vunpack.c.l.b16 %v4588
        %v4965 = vunpack.c.l.b16 %v4589
        %v4966 = vunpack.c.l.b16 %v4590
        %v4967 = vunpack.c.l.b16 %v4591
        %v4968 = vunpack.c.l.b16 %v4592
        %v4969 = vunpack.c.l.b16 %v4593
        %v4970 = vunpack.c.l.b16 %v4594
        %v4971 = vunpack.c.l.b16 %v4595
        %v4972 = vunpack.c.l.b16 %v4596
        %v4973 = vunpack.c.l.b16 %v4597
        %v4974 = vunpack.c.l.b16 %v4598
        %v4975 = vunpack.c.l.b16 %v4599
        %v4976 = vunpack.c.l.b16 %v4600
        %v4977 = vunpack.c.l.b16 %v4601
        %v4978 = vunpack.c.l.b16 %v4602
        %v4979 = vunpack.c.l.b16 %v4603
        %v4980 = vunpack.c.l.b16 %v4604
        %v4981 = vunpack.c.l.b16 %v4605
        %v4982 = vunpack.c.l.b16 %v4606
        %v4983 = vunpack.c.l.b16 %v4607
        %v4984 = vunpack.c.l.b16 %v4608
        %v4985 = vunpack.c.l.b16 %v4609
        %v4986 = vunpack.c.l.b16 %v4610
        %v4987 = vunpack.c.l.b16 %v4611
        %v4988 = vunpack.c.l.b16 %v4612
        %v4989 = vunpack.c.l.b16 %v4613
        %v4990 = vunpack.c.l.b16 %v4614
        %v4991 = vunpack.c.l.b16 %v4615
        %v4992 = vpack.c.b16 %v4885, %v4884
        %v4993 = vpack.c.b16 %v4887, %v4886
        %v4994 = vpack.c.b16 %v4889, %v4888
        %v4995 = vpack.c.b16 %v4891, %v4890
        %v4996 = vpack.c.b16 %v4893, %v4892
        %v4997 = vpack.c.b16 %v4895, %v4894
        %v4998 = vpack.c.b16 %v4897, %v4896
        %v4999 = vpack.c.b16 %v4899, %v4898
        %v5000 = vpack.c.b16 %v4901, %v4900
        %v5001 = vpack.c.b16 %v4903, %v4902
        %v5002 = vpack.c.b16 %v4905, %v4904
        %v5003 = vpack.c.b16 %v4907, %v4906
        %v5004 = vpack.c.b16 %v4909, %v4908
        %v5005 = vpack.c.b16 %v4911, %v4910
        %v5006 = vpack.c.b16 %v4913, %v4912
        %v5007 = vpack.c.b16 %v4915, %v4914
        %v5008 = vpack.c.b16 %v4917, %v4916
        %v5009 = vpack.c.b16 %v4919, %v4918
        %v5010 = vpack.c.b16 %v4921, %v4920
        %v5011 = vpack.c.b16 %v4923, %v4922
        %v5012 = vpack.c.b16 %v4925, %v4924
        %v5013 = vpack.c.b16 %v4927, %v4926
        %v5014 = vpack.c.b16 %v4929, %v4928
        %v5015 = vpack.c.b16 %v4931, %v4930
        %v5016 = vpack.c.b16 %v4933, %v4932
        %v5017 = vpack.c.b16 %v4935, %v4934
        %v5018 = vpack.c.b16 %v4937, %v4936
        %v5019 = vpack.c.b16 %v4939, %v4938
        %v5020 = vpack.c.b16 %v4941, %v4940
        %v5021 = vpack.c.b16 %v4943, %v4942
        %v5022 = vpack.c.b16 %v4945, %v4944
        %v5023 = vpack.c.b16 %v4947, %v4946
        %v5024 = vpack.c.b16 %v4949, %v4948
        %v5025 = vpack.c.b16 %v4951, %v4950
        %v5026 = vpack.c.b16 %v4953, %v4952
        %v5027 = vpack.c.b16 %v4955, %v4954
        %v5028 = vpack.c.b16 %v4957, %v4956
        %v5029 = vpack.c.b16 %v4959, %v4958
        %v5030 = vpack.c.b16 %v4961, %v4960
        %v5031 = vpack.c.b16 %v4963, %v4962
        %v5032 = vpack.c.b16 %v4965, %v4964
        %v5033 = vpack.c.b16 %v4967, %v4966
        %v5034 = vpack.c.b16 %v4969, %v4968
        %v5035 = vpack.c.b16 %v4971, %v4970
        %v5036 = vpack.c.b16 %v4973, %v4972
        %v5037 = vpack.c.b16 %v4975, %v4974
        %v5038 = vpack.c.b16 %v4977, %v4976
        %v5039 = vpack.c.b16 %v4979, %v4978
        %v5040 = vpack.c.b16 %v4981, %v4980
        %v5041 = vpack.c.b16 %v4983, %v4982
        %v5042 = vpack.c.b16 %v4985, %v4984
        %v5043 = vpack.c.b16 %v4987, %v4986
        %v5044 = vpack.c.b16 %v4989, %v4988
        %v5045 = vpack.c.b16 %v4991, %v4990
        %v5101 = vsel %vm3856, %v4755, 0
        %v5104 = vsel %vm3856, %v4757, 0
        %5106 = vmatprep.subr.bf16.mxu0 0
        %5107 = vmatpush1.bf16.msra.mxu0 %v4992
        %5108 = vmatprep.subr.bf16.mxu0 0
        %5109 = vmatpush1.bf16.msra.mxu0 %v4993
        %5110 = vmatprep.subr.bf16.mxu0 0
        %5111 = vmatpush1.bf16.msra.mxu0 %v4994
        %5112 = vmatprep.subr.bf16.mxu0 0
        %5113 = vmatpush1.bf16.msra.mxu0 %v4995
        %5114 = vmatprep.subr.bf16.mxu0 0
        %5115 = vmatpush1.bf16.msra.mxu0 %v4996
        %5116 = vmatprep.subr.bf16.mxu0 0
        %5117 = vmatpush1.bf16.msra.mxu0 %v4997
        %5118 = vmatprep.subr.bf16.mxu0 0
        %5119 = vmatpush1.bf16.msra.mxu0 %v4998
        %5120 = vmatprep.subr.bf16.mxu0 0
        %5121 = vmatpush1.bf16.msra.mxu0 %v4999
        %5122 = vmatprep.subr.bf16.mxu0 0
        %5123 = vmatpush1.bf16.msra.mxu0 %v5000
        %5124 = vmatprep.subr.bf16.mxu0 0
        %5125 = vmatpush1.bf16.msra.mxu0 %v5001
        %5126 = vmatprep.subr.bf16.mxu0 0
        %5127 = vmatpush1.bf16.msra.mxu0 %v5002
        %5128 = vmatprep.subr.bf16.mxu0 0
        %5129 = vmatpush1.bf16.msra.mxu0 %v5003
        %5130 = vmatprep.subr.bf16.mxu0 0
        %5131 = vmatpush1.bf16.msra.mxu0 %v5004
        %5132 = vmatprep.subr.bf16.mxu0 0
        %5133 = vmatpush1.bf16.msra.mxu0 %v5005
        %5134 = vmatprep.subr.bf16.mxu0 0
        %5135 = vmatpush1.bf16.msra.mxu0 %v5006
        %5136 = vmatprep.subr.bf16.mxu0 0
        %5137 = vmatpush1.bf16.msra.mxu0 %v5007
        %5138 = vmatprep.mubr.bf16.mxu0 %v4663
        %5139 = vmatmul.mubr.bf16.gmra.mrb[0].mxu0 %v4662
        %v5140 = vpop.f32.mrb[0].mxu0
        %v5141 = vadd.f32 0.0, %v5140
        %v5142 = vpop.f32.mrb[0].mxu0
        %v5143 = vpop.f32.mrb[0].mxu0
        %v5144 = vadd.f32 0.0, %v5143
        %v5145 = vpop.f32.mrb[0].mxu0
        %5146 = vmatprep.mubr.bf16.mxu0 %v4666
        %5147 = vmatmul.mubr.bf16.gmra.mrb[0].mxu0 %v4665
        %v5148 = vpop.f32.mrb[0].mxu0
        %v5149 = vadd.f32 0.0, %v5148
        %v5150 = vpop.f32.mrb[0].mxu0
        %v5151 = vpop.f32.mrb[0].mxu0
        %v5152 = vadd.f32 0.0, %v5151
        %v5153 = vpop.f32.mrb[0].mxu0
        %5154 = vdwg.mxu0
        %5155 = vmatprep.subr.bf16.mxu0 0
        %5156 = vmatpush1.bf16.msra.mxu0 %v5008
        %5157 = vmatprep.subr.bf16.mxu0 0
        %5158 = vmatpush1.bf16.msra.mxu0 %v5009
        %5159 = vmatprep.subr.bf16.mxu0 0
        %5160 = vmatpush1.bf16.msra.mxu0 %v5010
        %5161 = vmatprep.subr.bf16.mxu0 0
        %5162 = vmatpush1.bf16.msra.mxu0 %v5011
        %5163 = vmatprep.subr.bf16.mxu0 0
        %5164 = vmatpush1.bf16.msra.mxu0 %v5012
        %5165 = vmatprep.subr.bf16.mxu0 0
        %5166 = vmatpush1.bf16.msra.mxu0 %v5013
        %5167 = vmatprep.subr.bf16.mxu0 0
        %5168 = vmatpush1.bf16.msra.mxu0 %v5014
        %5169 = vmatprep.subr.bf16.mxu0 0
        %5170 = vmatpush1.bf16.msra.mxu0 %v5015
        %5171 = vmatprep.subr.bf16.mxu0 0
        %5172 = vmatpush1.bf16.msra.mxu0 %v5016
        %5173 = vmatprep.subr.bf16.mxu0 0
        %5174 = vmatpush1.bf16.msra.mxu0 %v5017
        %5175 = vmatprep.subr.bf16.mxu0 0
        %5176 = vmatpush1.bf16.msra.mxu0 %v5018
        %5177 = vmatprep.subr.bf16.mxu0 0
        %5178 = vmatpush1.bf16.msra.mxu0 %v5019
        %5179 = vmatprep.subr.bf16.mxu0 0
        %5180 = vmatpush1.bf16.msra.mxu0 %v5020
        %5181 = vmatprep.subr.bf16.mxu0 0
        %5182 = vmatpush1.bf16.msra.mxu0 %v5021
        %5183 = vmatprep.subr.bf16.mxu0 0
        %5184 = vmatpush1.bf16.msra.mxu0 %v5022
        %5185 = vmatprep.subr.bf16.mxu0 0
        %5186 = vmatpush1.bf16.msra.mxu0 %v5023
        %5187 = vmatprep.mubr.bf16.mxu0 %v4710
        %5188 = vmatmul.mubr.bf16.gmra.mrb[0].mxu0 %v4762
        %v5189 = vpop.f32.mrb[0].mxu0
        %v5190 = vadd.f32 %v5141, %v5189
        %v5191 = vpop.f32.mrb[0].mxu0
        %v5192 = vpop.f32.mrb[0].mxu0
        %v5193 = vadd.f32 %v5144, %v5192
        %v5194 = vpop.f32.mrb[0].mxu0
        %5195 = vmatprep.mubr.bf16.mxu0 %v4712
        %5196 = vmatmul.mubr.bf16.gmra.mrb[0].mxu0 %v4766
        %v5197 = vpop.f32.mrb[0].mxu0
        %v5198 = vadd.f32 %v5149, %v5197
        %v5199 = vpop.f32.mrb[0].mxu0
        %v5200 = vpop.f32.mrb[0].mxu0
        %v5201 = vadd.f32 %v5152, %v5200
        %v5202 = vpop.f32.mrb[0].mxu0
        %5203 = vdwg.mxu0
        %5204 = vmatprep.subr.bf16.mxu0 0
        %5205 = vmatpush1.bf16.msra.mxu0 %v5024
        %5206 = vmatprep.subr.bf16.mxu0 0
        %5207 = vmatpush1.bf16.msra.mxu0 %v5025
        %5208 = vmatprep.subr.bf16.mxu0 0
        %5209 = vmatpush1.bf16.msra.mxu0 %v5026
        %5210 = vmatprep.subr.bf16.mxu0 0
        %5211 = vmatpush1.bf16.msra.mxu0 %v5027
        %5212 = vmatprep.subr.bf16.mxu0 0
        %5213 = vmatpush1.bf16.msra.mxu0 %v5028
        %5214 = vmatprep.subr.bf16.mxu0 0
        %5215 = vmatpush1.bf16.msra.mxu0 %v5029
        %5216 = vmatprep.subr.bf16.mxu0 0
        %5217 = vmatpush1.bf16.msra.mxu0 %v5030
        %5218 = vmatprep.subr.bf16.mxu0 0
        %5219 = vmatpush1.bf16.msra.mxu0 %v5031
        %5220 = vmatprep.subr.bf16.mxu0 0
        %5221 = vmatpush1.bf16.msra.mxu0 %v5032
        %5222 = vmatprep.subr.bf16.mxu0 0
        %5223 = vmatpush1.bf16.msra.mxu0 %v5033
        %5224 = vmatprep.subr.bf16.mxu0 0
        %5225 = vmatpush1.bf16.msra.mxu0 %v5034
        %5226 = vmatprep.subr.bf16.mxu0 0
        %5227 = vmatpush1.bf16.msra.mxu0 %v5035
        %5228 = vmatprep.subr.bf16.mxu0 0
        %5229 = vmatpush1.bf16.msra.mxu0 %v5036
        %5230 = vmatprep.subr.bf16.mxu0 0
        %5231 = vmatpush1.bf16.msra.mxu0 %v5037
        %5232 = vmatprep.subr.bf16.mxu0 0
        %5233 = vmatpush1.bf16.msra.mxu0 %v5038
        %5234 = vmatprep.subr.bf16.mxu0 0
        %5235 = vmatpush1.bf16.msra.mxu0 %v5039
        %5236 = vmatprep.mubr.bf16.mxu0 %v4754
        %5237 = vmatmul.mubr.bf16.gmra.mrb[0].mxu0 %v4770
        %v5238 = vpop.f32.mrb[0].mxu0
        %v5239 = vadd.f32 %v5190, %v5238
        %v5240 = vpop.f32.mrb[0].mxu0
        %v5241 = vpop.f32.mrb[0].mxu0
        %v5242 = vadd.f32 %v5193, %v5241
        %v5243 = vpop.f32.mrb[0].mxu0
        %5244 = vmatprep.mubr.bf16.mxu0 %v4756
        %5245 = vmatmul.mubr.bf16.gmra.mrb[0].mxu0 %v4774
        %v5246 = vpop.f32.mrb[0].mxu0
        %v5247 = vadd.f32 %v5198, %v5246
        %v5248 = vpop.f32.mrb[0].mxu0
        %v5249 = vpop.f32.mrb[0].mxu0
        %v5250 = vadd.f32 %v5201, %v5249
        %v5251 = vpop.f32.mrb[0].mxu0
        %5252 = vdwg.mxu0
        %5253 = vmatprep.subr.bf16.mxu0 0
        %5254 = vmatpush1.bf16.msra.mxu0 %v5040
        %5255 = vmatprep.subr.bf16.mxu0 0
        %5256 = vmatpush1.bf16.msra.mxu0 %v5041
        %5257 = vmatprep.subr.bf16.mxu0 0
        %5258 = vmatpush1.bf16.msra.mxu0 %v5042
        %5259 = vmatprep.subr.bf16.mxu0 0
        %5260 = vmatpush1.bf16.msra.mxu0 %v5043
        %5261 = vmatprep.subr.bf16.mxu0 0
        %5262 = vmatpush1.bf16.msra.mxu0 %v5044
        %5263 = vmatprep.subr.bf16.mxu0 0
        %5264 = vmatpush1.bf16.msra.mxu0 %v5045
        %5265 = vmatprep.subr.bf16.mxu0 0
        %5266 = vmatpush1.bf16.msra.mxu0 0
        %5267 = vmatprep.subr.bf16.mxu0 0
        %5268 = vmatpush1.bf16.msra.mxu0 0
        %5269 = vmatprep.subr.bf16.mxu0 0
        %5270 = vmatpush1.bf16.msra.mxu0 0
        %5271 = vmatprep.subr.bf16.mxu0 0
        %5272 = vmatpush1.bf16.msra.mxu0 0
        %5273 = vmatprep.subr.bf16.mxu0 0
        %5274 = vmatpush1.bf16.msra.mxu0 0
        %5275 = vmatprep.subr.bf16.mxu0 0
        %5276 = vmatpush1.bf16.msra.mxu0 0
        %5277 = vmatprep.subr.bf16.mxu0 0
        %5278 = vmatpush1.bf16.msra.mxu0 0
        %5279 = vmatprep.subr.bf16.mxu0 0
        %5280 = vmatpush1.bf16.msra.mxu0 0
        %5281 = vmatprep.subr.bf16.mxu0 0
        %5282 = vmatpush1.bf16.msra.mxu0 0
        %5283 = vmatprep.subr.bf16.mxu0 0
        %5284 = vmatpush1.bf16.msra.mxu0 0
        %5285 = vmatprep.mubr.bf16.mxu0 0
        %5286 = vmatmul.mubr.bf16.gmra.mrb[0].mxu0 %v5101
        %v5287 = vpop.f32.mrb[0].mxu0
        %v5288 = vadd.f32 %v5239, %v5287
        %v5289 = vpop.f32.mrb[0].mxu0
        %v5290 = vpop.f32.mrb[0].mxu0
        %v5291 = vadd.f32 %v5242, %v5290
        %v5292 = vpop.f32.mrb[0].mxu0
        %5293 = vmatprep.mubr.bf16.mxu0 0
        %5294 = vmatmul.mubr.bf16.gmra.mrb[0].mxu0 %v5104
        %v5295 = vpop.f32.mrb[0].mxu0
        %v5296 = vadd.f32 %v5247, %v5295
        %v5297 = vpop.f32.mrb[0].mxu0
        %v5298 = vpop.f32.mrb[0].mxu0
        %v5299 = vadd.f32 %v5250, %v5298
        %v5300 = vpop.f32.mrb[0].mxu0
        %5301 = vdwg.mxu0
        %v5302 = vxor.u32 %v5288, 2147483648
        %v5303 = vxor.u32 %v5291, 2147483648
        %v5304 = vxor.u32 %v5296, 2147483648
        %v5305 = vxor.u32 %v5299, 2147483648
        %v5306 = vmul.f32 %v5302, 1.442695
        %v5307 = vpow.pop %v5306
        %v5308 = vmul.f32 %v5303, 1.442695
        %v5309 = vpow.pop %v5308
        %v5310 = vmul.f32 %v5304, 1.442695
        %v5311 = vpow.pop %v5310
        %v5312 = vmul.f32 %v5305, 1.442695
        %v5313 = vpow.pop %v5312
        %v5314 = vadd.f32 %v5307, 1.0
        %v5315 = vadd.f32 %v5309, 1.0
        %v5316 = vadd.f32 %v5311, 1.0
        %v5317 = vadd.f32 %v5313, 1.0
        %v5318 = vrcp.pop %v5314
        %v5319 = vmul.f32 1.0, %v5318
        %v5320 = vrcp.pop %v5315
        %v5321 = vmul.f32 1.0, %v5320
        %v5322 = vrcp.pop %v5316
        %v5323 = vmul.f32 1.0, %v5322
        %v5324 = vrcp.pop %v5317
        %v5325 = vmul.f32 1.0, %v5324
        %v5326 = vadd.f32 %v5319, %v5321
        %v5327 = vadd.f32 %v5326, %v5323
        %v5328 = vadd.f32 %v5327, %v5325
        %v5329 = vrot.slane %v5328, 4
        %v5330 = vadd.f32 %v5328, %v5329
        %v5331 = vrot.slane %v5330, 2
        %v5332 = vadd.f32 %v5330, %v5331
        %v5333 = vrot.slane %v5332, 1
        %v5334 = vadd.f32 %v5332, %v5333
        %v5335 = vrcp.pop 32.0
        %v5336 = vmul.f32 %v5334, %v5335
        %5337 = vrot.lane.b32.xlu0 %v5336, 16
        %v5338 = vpop.permute.xlu0 %5337
        %v5339 = vadd.f32 %v5336, %v5338
        %5340 = vrot.lane.b32.xlu0 %v5339, 32
        %v5341 = vpop.permute.xlu0 %5340
        %v5342 = vadd.f32 %v5339, %v5341
        %5343 = vrot.lane.b32.xlu0 %v5342, 64
        %v5344 = vpop.permute.xlu0 %5343
        %v5345 = vadd.f32 %v5342, %v5344
        %v5346 = vmul.f32 %v5345, 0.125
        %v5347 = vlaneseq
        %v5348 = vshrl.u32 %v5347, 7
        %v5349 = vsub.s32 0, %v5348
        %v5350 = vrot.slane %v5346, %v5349
        %v5351 = vmul.f32 %v2387, %v5350
        %v5352 = vmul.f32 %v2388, %v5350
        %v5353 = vmul.f32 %v2389, %v5350
        %v5354 = vmul.f32 %v2390, %v5350
        %v5355 = vadd.f32 %v5351, %v444
        %v5356 = vadd.f32 %v5352, %v445
        %v5357 = vadd.f32 %v5353, %v446
        %v5358 = vadd.f32 %v5354, %v447
        %5359 = vst [vmem:[%s442] sm:$0xff] %v5355
        %5360 = vst [vmem:[%s442 + $0x8] sm:$0xff] %v5356
        %5361 = vst [vmem:[%s442 + $0x10] sm:$0xff] %v5357
        %5362 = vst [vmem:[%s442 + $0x18] sm:$0xff] %v5358
        %p5363 = scmp.lt.s32.totalorder %s26, 1
        %s5364 = scalar_select %p5363, %s26, 1
        %s5365 = smul.addr %s5364, 4
        %s5366 = smul.addr %s5365, 8
        %s5367 = scalar_lea.vmem %s12, %s5366
        // Predicated region
        $region77: #{cab3d_forward.1} parent=67 // pred_check
          %p5368 = pneg %p301
        $region78: #{cab3d_forward.1} parent=67 // pred_check_branch
          %5370 = sbr.rel (%p5368) target = $region80
        $region79: #{cab3d_forward.1} parent=67 // pred_region
          _
        $region80: #{cab3d_forward.1} parent=67 // pred_fallthru
          _
      $region68: #{cab3d_forward.1} parent=5 // pred_fallthru
        _
      %p5371 = scmp.le.s32.totalorder 2, %s21
      // Predicated region
      $region81: #{cab3d_forward.1} parent=5 // pred_check
        %p5372 = pneg %p5371
      $region82: #{cab3d_forward.1} parent=5 // pred_check_branch
        %5374 = sbr.rel (%p5372) target = $region84
      $region83: #{cab3d_forward.1} parent=5 // pred_region
        %s5375 = ssub.s32 %s21, 2
        // Predicated region
        $region85: #{cab3d_forward.1} parent=83 // pred_check
          %p5376 = pneg %p307
        $region86: #{cab3d_forward.1} parent=83 // pred_check_branch
          %5378 = sbr.rel (%p5376) target = $region88
        $region87: #{cab3d_forward.1} parent=83 // pred_region
          %p5379 = scmp.lt.s32.totalorder %s27, 1
          %s5380 = scalar_select %p5379, %s27, 1
          %s5381 = smul.addr %s5380, 4
          %s5382 = smul.addr %s5381, 8
          %s5383 = scalar_lea.vmem %s12, %s5382
        $region88: #{cab3d_forward.1} parent=83 // pred_fallthru
          _
      $region84: #{cab3d_forward.1} parent=5 // pred_fallthru
        _
    $region6: #{cab3d_forward.1} parent=1 // loop_footer
      %s25 = sadd.s32 1, %s21
    $region7: #{cab3d_forward.1} parent=1 // loop_footer_branch
      %20 = sbr.rel target = $region3
    $region8: #{cab3d_forward.1} parent=1 // loop_exit
      _
    %5384 = vsyncpa [#allocation10], 1
    %s5385 = scalar_lea.sflag [#allocation10], 1
    %5386 = vsyncpa %s5385, 1
    %5387 = vsyncpa [#allocation12], 1

</llo_original>
